<compile_context>
chip_gen: v7x
topology: tpu7x:2x2x1
jax: 0.10.0
libtpu: 0.0.40
codegen_flags: <defaults>
</compile_context>

<pallas_src>
import jax
import jax.numpy as jnp
from jax import lax
from jax.experimental import pallas as pl
from jax.experimental.pallas import tpu as pltpu


def _react_kernel(x1_ref, x2_ref,
                  wat_ref, wab_ref, ba_ref,
                  wb_ref, bb_ref,
                  o1_ref, o2_ref,
                  pad_ref):
    # x*_ref blocks: (1, H, W, C). Weights are full arrays (bf16 except biases).
    _, H, W, C = x1_ref.shape
    C4 = 4 * C
    HW = H * W

    x1 = x1_ref[0].reshape(HW, C)                 # f32, kept for re-weighting
    x2 = x2_ref[0].reshape(HW, C)
    x1b = x1.astype(jnp.bfloat16)
    x2b = x2.astype(jnp.bfloat16)

    # --- fused 1x1 convs of both branches: h12 = [h1 | h2]  (HW, 4C) f32 ----
    h12 = (jnp.dot(x1b, wat_ref[...], preferred_element_type=jnp.float32)
           + jnp.dot(x2b, wab_ref[...], preferred_element_type=jnp.float32)
           + ba_ref[...])

    # --- W-axis (+/-1) shifts via XLU roll + boundary masks -----------------
    xpos = lax.broadcasted_iota(jnp.int32, (HW, C4), 0) % W
    h_m1 = jnp.where(xpos == 0, 0.0, pltpu.roll(h12, 1, axis=0))        # x-1
    h_p1 = jnp.where(xpos == W - 1, 0.0, pltpu.roll(h12, HW - 1, axis=0))  # x+1
    hcat = jnp.concatenate([h_m1, h12, h_p1], axis=1)                   # (HW, 12C)

    # --- H-halo padded scratch: zero ONLY the top/bottom halo row-blocks ----
    halo = jnp.zeros((W, pad_ref.shape[1]), pad_ref.dtype)
    pad_ref[0:W, :] = halo
    pad_ref[(H + 1) * W:(H + 2) * W, :] = halo
    pad_ref[W:W + HW, :] = hcat.astype(pad_ref.dtype)

    # --- 3x3 convs of both branches as 3 matmuls with K = 12C ---------------
    # ky=0/1/2 taps are aligned leading-dim slices of the padded scratch.
    acc = jnp.dot(pad_ref[0:HW, :], wb_ref[0],
                  preferred_element_type=jnp.float32)
    acc = acc + jnp.dot(pad_ref[W:W + HW, :], wb_ref[1],
                        preferred_element_type=jnp.float32)
    acc = acc + jnp.dot(pad_ref[2 * W:2 * W + HW, :], wb_ref[2],
                        preferred_element_type=jnp.float32)
    acc = acc + bb_ref[...]                                             # (HW, 2C)

    s = jax.nn.sigmoid(acc[:, :C])
    t = jnp.tanh(acc[:, C:])

    # AdaptiveAvgPool2d(1) + re-weighting of x1 / x2.
    avg = jnp.mean(s * t, axis=0, keepdims=True)                        # (1, C)
    o1_ref[0] = (avg * x1).reshape(H, W, C).astype(o1_ref.dtype)
    o2_ref[0] = ((1.0 - avg) * x2).reshape(H, W, C).astype(o2_ref.dtype)


def react_forward(x1, x2, params):
    """Pallas implementation of react.forward. Inputs/outputs are NHWC."""
    B, H, W, C = x1.shape
    C2 = 2 * C
    bf16 = jnp.bfloat16

    # ---- fuse the two branches' 1x1 convs along the output dim -------------
    w1a, b1a = params["w1a"], params["b1a"]          # (2C, 2C), (1, 2C)
    w2a, b2a = params["w2a"], params["b2a"]
    wa_top = jnp.concatenate([w1a[:C, :], w2a[:C, :]], axis=1).astype(bf16)  # (C, 4C)
    wa_bot = jnp.concatenate([w1a[C:, :], w2a[C:, :]], axis=1).astype(bf16)  # (C, 4C)
    ba_cat = jnp.concatenate([b1a, b2a], axis=1)                             # (1, 4C) f32

    # ---- fuse 3x3 convs: kx taps + both branches into the contraction dim --
    # params["w*b"]: (9, 2C, C) with tap order k = ky*3 + kx.
    w1b = params["w1b"].reshape(3, 3, C2, C)
    w2b = params["w2b"].reshape(3, 3, C2, C)
    zpad = jnp.zeros((3, 3, C2, C), w1b.dtype)
    top = jnp.concatenate([w1b, zpad], axis=-1)      # branch-1 rows -> cols [:C]
    bot = jnp.concatenate([zpad, w2b], axis=-1)      # branch-2 rows -> cols [C:]
    wb_cat = jnp.concatenate([top, bot], axis=2)     # (3, 3, 4C, 2C)
    wb_cat = wb_cat.reshape(3, 12 * C, C2).astype(bf16)                      # (3, 12C, 2C)
    bb_cat = jnp.concatenate([params["b1b"], params["b2b"]], axis=1)         # (1, 2C) f32

    weights = [wa_top, wa_bot, ba_cat, wb_cat, bb_cat]

    x_spec = pl.BlockSpec((1, H, W, C), lambda b: (b, 0, 0, 0))

    def full_spec(a):
        return pl.BlockSpec(a.shape, lambda b, nd=a.ndim: (0,) * nd)

    grid_spec = pltpu.PrefetchScalarGridSpec(
        num_scalar_prefetch=0,
        grid=(B,),
        in_specs=[x_spec, x_spec] + [full_spec(w) for w in weights],
        out_specs=[x_spec, x_spec],
        # H-halo padded im2col-ish scratch, bf16: ((H+2)*W, 12C).
        scratch_shapes=[pltpu.VMEM(((H + 2) * W, 12 * C), jnp.bfloat16)],
    )

    return pl.pallas_call(
        _react_kernel,
        out_shape=(jax.ShapeDtypeStruct((B, H, W, C), x1.dtype),
                   jax.ShapeDtypeStruct((B, H, W, C), x2.dtype)),
        grid_spec=grid_spec,
        compiler_params=pltpu.CompilerParams(
            dimension_semantics=("parallel",),
            vmem_limit_bytes=32 * 1024 * 1024),
    )(x1, x2, *weights)


def make_params(key, dim):
    """Deterministic parameter init (shapes from react.__init__)."""
    C2 = 2 * dim
    ks = jax.random.split(key, 8)
    scale = 0.1
    return {
        # conv1: 1x1 (2dim->2dim), then 3x3 (2dim->dim), both with bias.
        "w1a": scale * jax.random.normal(ks[0], (C2, C2), jnp.float32),
        "b1a": scale * jax.random.normal(ks[1], (1, C2), jnp.float32),
        "w1b": scale * jax.random.normal(ks[2], (9, C2, dim), jnp.float32),
        "b1b": scale * jax.random.normal(ks[3], (1, dim), jnp.float32),
        # conv2: same structure.
        "w2a": scale * jax.random.normal(ks[4], (C2, C2), jnp.float32),
        "b2a": scale * jax.random.normal(ks[5], (1, C2), jnp.float32),
        "w2b": scale * jax.random.normal(ks[6], (9, C2, dim), jnp.float32),
        "b2b": scale * jax.random.normal(ks[7], (1, dim), jnp.float32),
    }


def react_reference(x1, x2, params):
    """Pure-JAX f32 reference matching the PyTorch module (NHWC layout)."""
    def conv1x1(x, w, b):                         # w: (in, out)
        y = jnp.einsum("bhwi,io->bhwo", x, w, precision=lax.Precision.HIGHEST)
        return y + b.reshape(1, 1, 1, -1)

    def conv3x3(x, w9, b):                        # w9: (9, in, out), k = ky*3+kx
        w4 = w9.reshape(3, 3, w9.shape[1], w9.shape[2])          # HWIO
        y = lax.conv_general_dilated(x, w4, (1, 1), ((1, 1), (1, 1)),
                                     dimension_numbers=("NHWC", "HWIO", "NHWC"),
                                     precision=lax.Precision.HIGHEST)
        return y + b.reshape(1, 1, 1, -1)

    x = jnp.concatenate([x1, x2], axis=-1)
    x11 = jax.nn.sigmoid(conv3x3(conv1x1(x, params["w1a"], params["b1a"]),
                                 params["w1b"], params["b1b"]))
    x22 = jnp.tanh(conv3x3(conv1x1(x, params["w2a"], params["b2a"]),
                           params["w2b"], params["b2b"]))
    xxx = x11 * x22
    avg = jnp.mean(xxx, axis=(1, 2), keepdims=True)               # (B, 1, 1, dim)
    return avg * x1, (1.0 - avg) * x2


if __name__ == "__main__":
    B, dim, H, W = 2, 4, 16, 16
    key = jax.random.PRNGKey(0)
    k1, k2, kp = jax.random.split(key, 3)
    x1 = jax.random.normal(k1, (B, H, W, dim), jnp.float32)   # NHWC
    x2 = jax.random.normal(k2, (B, H, W, dim), jnp.float32)
    params = make_params(kp, dim)

    o1, o2 = jax.jit(react_forward)(x1, x2, params)
    o1 = jax.block_until_ready(o1)
    o2 = jax.block_until_ready(o2)

    r1, r2 = react_reference(x1, x2, params)
    # bf16 MXU operands (f32 accumulation) -> relaxed tolerance.
    assert jnp.allclose(o1, r1, atol=1e-2, rtol=1e-2), "x1 output mismatch"
    assert jnp.allclose(o2, r2, atol=1e-2, rtol=1e-2), "x2 output mismatch"

    print("KERNEL_OK")
</pallas_src>

<mosaic_0001>
module attributes {stable_mosaic.version = 11 : i64} {
  func.func @_react_kernel(%arg0: i32, %arg1: memref<1x16x16x4xf32, #tpu.memory_space<vmem>>, %arg2: memref<1x16x16x4xf32, #tpu.memory_space<vmem>>, %arg3: memref<4x16xbf16, #tpu.memory_space<vmem>>, %arg4: memref<4x16xbf16, #tpu.memory_space<vmem>>, %arg5: memref<1x16xf32, #tpu.memory_space<vmem>>, %arg6: memref<3x48x8xbf16, #tpu.memory_space<vmem>>, %arg7: memref<1x8xf32, #tpu.memory_space<vmem>>, %arg8: memref<1x16x16x4xf32, #tpu.memory_space<vmem>>, %arg9: memref<1x16x16x4xf32, #tpu.memory_space<vmem>>, %arg10: memref<288x48xbf16, #tpu.memory_space<vmem>>) attributes {dimension_semantics = [#tpu.dimension_semantics<parallel>], iteration_bounds = array<i64: 2>, scalar_prefetch = 0 : i64, scratch_operands = 1 : i64, tpu.core_type = #tpu.core_type<tc>, window_params = [{transform_indices = @transform_0, window_bounds = array<i64: 1, 16, 16, 4>}, {transform_indices = @transform_1, window_bounds = array<i64: 1, 16, 16, 4>}, {pipeline_mode = #tpu.pipeline_mode<synchronous>, transform_indices = @transform_2, window_bounds = array<i64: 4, 16>}, {pipeline_mode = #tpu.pipeline_mode<synchronous>, transform_indices = @transform_3, window_bounds = array<i64: 4, 16>}, {pipeline_mode = #tpu.pipeline_mode<synchronous>, transform_indices = @transform_4, window_bounds = array<i64: 1, 16>}, {pipeline_mode = #tpu.pipeline_mode<synchronous>, transform_indices = @transform_5, window_bounds = array<i64: 3, 48, 8>}, {pipeline_mode = #tpu.pipeline_mode<synchronous>, transform_indices = @transform_6, window_bounds = array<i64: 1, 8>}, {transform_indices = @transform_7, window_bounds = array<i64: 1, 16, 16, 4>}, {transform_indices = @transform_8, window_bounds = array<i64: 1, 16, 16, 4>}]} {
    %c0 = arith.constant 0 : index
    %c0_0 = arith.constant 0 : index
    %c0_1 = arith.constant 0 : index
    %c0_2 = arith.constant 0 : index
    %0 = vector.load %arg1[%c0, %c0_0, %c0_1, %c0_2] : memref<1x16x16x4xf32, #tpu.memory_space<vmem>>, vector<1x16x16x4xf32>
    %1 = vector.shape_cast %0 : vector<1x16x16x4xf32> to vector<16x16x4xf32>
    %2 = vector.shape_cast %1 : vector<16x16x4xf32> to vector<256x4xf32>
    %c0_3 = arith.constant 0 : index
    %c0_4 = arith.constant 0 : index
    %c0_5 = arith.constant 0 : index
    %c0_6 = arith.constant 0 : index
    %3 = vector.load %arg2[%c0_3, %c0_4, %c0_5, %c0_6] : memref<1x16x16x4xf32, #tpu.memory_space<vmem>>, vector<1x16x16x4xf32>
    %4 = vector.shape_cast %3 : vector<1x16x16x4xf32> to vector<16x16x4xf32>
    %5 = vector.shape_cast %4 : vector<16x16x4xf32> to vector<256x4xf32>
    %6 = arith.truncf %2 : vector<256x4xf32> to vector<256x4xbf16>
    %7 = arith.truncf %5 : vector<256x4xf32> to vector<256x4xbf16>
    %c0_7 = arith.constant 0 : index
    %c0_8 = arith.constant 0 : index
    %8 = vector.load %arg3[%c0_7, %c0_8] : memref<4x16xbf16, #tpu.memory_space<vmem>>, vector<4x16xbf16>
    %cst = arith.constant dense<0.000000e+00> : vector<256x16xf32>
    %9 = tpu.matmul %6, %8, %cst {dimension_numbers = #tpu.dot_dimension_numbers<[1], [0], [0], [1], [0, 0, 1, 1], [], []>} : vector<256x4xbf16>, vector<4x16xbf16>, vector<256x16xf32> -> vector<256x16xf32>
    %c0_9 = arith.constant 0 : index
    %c0_10 = arith.constant 0 : index
    %10 = vector.load %arg4[%c0_9, %c0_10] : memref<4x16xbf16, #tpu.memory_space<vmem>>, vector<4x16xbf16>
    %cst_11 = arith.constant dense<0.000000e+00> : vector<256x16xf32>
    %11 = tpu.matmul %7, %10, %cst_11 {dimension_numbers = #tpu.dot_dimension_numbers<[1], [0], [0], [1], [0, 0, 1, 1], [], []>} : vector<256x4xbf16>, vector<4x16xbf16>, vector<256x16xf32> -> vector<256x16xf32>
    %12 = arith.addf %9, %11 : vector<256x16xf32>
    %c0_12 = arith.constant 0 : index
    %c0_13 = arith.constant 0 : index
    %13 = vector.load %arg5[%c0_12, %c0_13] : memref<1x16xf32, #tpu.memory_space<vmem>>, vector<1x16xf32>
    %14 = vector.broadcast %13 : vector<1x16xf32> to vector<256x16xf32>
    %15 = arith.addf %12, %14 : vector<256x16xf32>
    %16 = tpu.iota {dimensions = array<i32: 0>} : vector<256x16xi32>
    %c16_i32 = arith.constant 16 : i32
    %c0_i32 = arith.constant 0 : i32
    %17 = arith.cmpi eq, %c16_i32, %c0_i32 : i32
    %c1_i32 = arith.constant 1 : i32
    %18 = arith.select %17, %c1_i32, %c16_i32 : i32
    %19 = vector.broadcast %18 : i32 to vector<256x16xi32>
    %20 = arith.remsi %16, %19 : vector<256x16xi32>
    %c0_i32_14 = arith.constant 0 : i32
    %21 = vector.broadcast %c0_i32_14 : i32 to vector<256x16xi32>
    %22 = arith.cmpi ne, %20, %21 : vector<256x16xi32>
    %c0_i32_15 = arith.constant 0 : i32
    %23 = vector.broadcast %c0_i32_15 : i32 to vector<256x16xi32>
    %24 = arith.cmpi slt, %20, %23 : vector<256x16xi32>
    %c0_i32_16 = arith.constant 0 : i32
    %25 = arith.cmpi slt, %18, %c0_i32_16 : i32
    %26 = vector.broadcast %25 : i1 to vector<256x16xi1>
    %27 = vector.broadcast %26 : vector<256x16xi1> to vector<256x16xi1>
    %28 = arith.xori %24, %27 : vector<256x16xi1>
    %29 = arith.andi %28, %22 : vector<256x16xi1>
    %30 = vector.broadcast %18 : i32 to vector<256x16xi32>
    %31 = arith.addi %20, %30 : vector<256x16xi32>
    %32 = arith.select %29, %31, %20 : vector<256x16xi1>, vector<256x16xi32>
    %c0_i32_17 = arith.constant 0 : i32
    %33 = vector.broadcast %c0_i32_17 : i32 to vector<256x16xi32>
    %34 = arith.cmpi eq, %32, %33 : vector<256x16xi32>
    %c1_i32_18 = arith.constant 1 : i32
    %35 = tpu.dynamic_rotate %15 by %c1_i32_18 dim 0 : vector<256x16xf32>, i32 -> vector<256x16xf32>
    %cst_19 = arith.constant 0.000000e+00 : f32
    %36 = vector.broadcast %cst_19 : f32 to vector<256x16xf32>
    %37 = arith.select %34, %36, %35 : vector<256x16xi1>, vector<256x16xf32>
    %c15_i32 = arith.constant 15 : i32
    %38 = vector.broadcast %c15_i32 : i32 to vector<256x16xi32>
    %39 = arith.cmpi eq, %32, %38 : vector<256x16xi32>
    %c255_i32 = arith.constant 255 : i32
    %40 = tpu.dynamic_rotate %15 by %c255_i32 dim 0 : vector<256x16xf32>, i32 -> vector<256x16xf32>
    %cst_20 = arith.constant 0.000000e+00 : f32
    %41 = vector.broadcast %cst_20 : f32 to vector<256x16xf32>
    %42 = arith.select %39, %41, %40 : vector<256x16xi1>, vector<256x16xf32>
    %43 = tpu.concatenate %37, %15, %42 in 1 : vector<256x16xf32>, vector<256x16xf32>, vector<256x16xf32> -> vector<256x48xf32>
    %cst_21 = arith.constant 0.000000e+00 : bf16
    %44 = vector.broadcast %cst_21 : bf16 to vector<16x48xbf16>
    %c0_22 = arith.constant 0 : index
    %c0_23 = arith.constant 0 : index
    %45 = vector.load %arg10[%c0_22, %c0_23] : memref<288x48xbf16, #tpu.memory_space<vmem>>, vector<16x48xbf16>
    tpu.vector_store %arg10[%c0_22, %c0_23], %44 {strides = array<i32>} : memref<288x48xbf16, #tpu.memory_space<vmem>>, vector<16x48xbf16>,
    %c272 = arith.constant 272 : index
    %c0_24 = arith.constant 0 : index
    %46 = vector.load %arg10[%c272, %c0_24] : memref<288x48xbf16, #tpu.memory_space<vmem>>, vector<16x48xbf16>
    tpu.vector_store %arg10[%c272, %c0_24], %44 {strides = array<i32>} : memref<288x48xbf16, #tpu.memory_space<vmem>>, vector<16x48xbf16>,
    %47 = arith.truncf %43 : vector<256x48xf32> to vector<256x48xbf16>
    %c16 = arith.constant 16 : index
    %c0_25 = arith.constant 0 : index
    %48 = vector.load %arg10[%c16, %c0_25] : memref<288x48xbf16, #tpu.memory_space<vmem>>, vector<256x48xbf16>
    tpu.vector_store %arg10[%c16, %c0_25], %47 {strides = array<i32>} : memref<288x48xbf16, #tpu.memory_space<vmem>>, vector<256x48xbf16>,
    %c0_26 = arith.constant 0 : index
    %c0_27 = arith.constant 0 : index
    %49 = vector.load %arg10[%c0_26, %c0_27] : memref<288x48xbf16, #tpu.memory_space<vmem>>, vector<256x48xbf16>
    %c0_28 = arith.constant 0 : index
    %c0_29 = arith.constant 0 : index
    %c0_30 = arith.constant 0 : index
    %50 = vector.load %arg6[%c0_28, %c0_29, %c0_30] : memref<3x48x8xbf16, #tpu.memory_space<vmem>>, vector<1x48x8xbf16>
    %51 = vector.shape_cast %50 : vector<1x48x8xbf16> to vector<48x8xbf16>
    %cst_31 = arith.constant dense<0.000000e+00> : vector<256x8xf32>
    %52 = tpu.matmul %49, %51, %cst_31 {dimension_numbers = #tpu.dot_dimension_numbers<[1], [0], [0], [1], [0, 0, 1, 1], [], []>} : vector<256x48xbf16>, vector<48x8xbf16>, vector<256x8xf32> -> vector<256x8xf32>
    %c16_32 = arith.constant 16 : index
    %c0_33 = arith.constant 0 : index
    %53 = vector.load %arg10[%c16_32, %c0_33] : memref<288x48xbf16, #tpu.memory_space<vmem>>, vector<256x48xbf16>
    %c1 = arith.constant 1 : index
    %c0_34 = arith.constant 0 : index
    %c0_35 = arith.constant 0 : index
    %54 = vector.load %arg6[%c1, %c0_34, %c0_35] : memref<3x48x8xbf16, #tpu.memory_space<vmem>>, vector<1x48x8xbf16>
    %55 = vector.shape_cast %54 : vector<1x48x8xbf16> to vector<48x8xbf16>
    %cst_36 = arith.constant dense<0.000000e+00> : vector<256x8xf32>
    %56 = tpu.matmul %53, %55, %cst_36 {dimension_numbers = #tpu.dot_dimension_numbers<[1], [0], [0], [1], [0, 0, 1, 1], [], []>} : vector<256x48xbf16>, vector<48x8xbf16>, vector<256x8xf32> -> vector<256x8xf32>
    %57 = arith.addf %52, %56 : vector<256x8xf32>
    %c32 = arith.constant 32 : index
    %c0_37 = arith.constant 0 : index
    %58 = vector.load %arg10[%c32, %c0_37] : memref<288x48xbf16, #tpu.memory_space<vmem>>, vector<256x48xbf16>
    %c2 = arith.constant 2 : index
    %c0_38 = arith.constant 0 : index
    %c0_39 = arith.constant 0 : index
    %59 = vector.load %arg6[%c2, %c0_38, %c0_39] : memref<3x48x8xbf16, #tpu.memory_space<vmem>>, vector<1x48x8xbf16>
    %60 = vector.shape_cast %59 : vector<1x48x8xbf16> to vector<48x8xbf16>
    %cst_40 = arith.constant dense<0.000000e+00> : vector<256x8xf32>
    %61 = tpu.matmul %58, %60, %cst_40 {dimension_numbers = #tpu.dot_dimension_numbers<[1], [0], [0], [1], [0, 0, 1, 1], [], []>} : vector<256x48xbf16>, vector<48x8xbf16>, vector<256x8xf32> -> vector<256x8xf32>
    %62 = arith.addf %57, %61 : vector<256x8xf32>
    %c0_41 = arith.constant 0 : index
    %c0_42 = arith.constant 0 : index
    %63 = vector.load %arg7[%c0_41, %c0_42] : memref<1x8xf32, #tpu.memory_space<vmem>>, vector<1x8xf32>
    %64 = vector.broadcast %63 : vector<1x8xf32> to vector<256x8xf32>
    %65 = arith.addf %62, %64 : vector<256x8xf32>
    %66 = vector.extract_strided_slice %65 {offsets = [0, 0], sizes = [256, 4], strides = [1, 1]} : vector<256x8xf32> to vector<256x4xf32>
    %67 = arith.negf %66 : vector<256x4xf32>
    %68 = math.exp %67 : vector<256x4xf32>
    %cst_43 = arith.constant 1.000000e+00 : f32
    %69 = vector.broadcast %cst_43 : f32 to vector<256x4xf32>
    %70 = arith.addf %69, %68 : vector<256x4xf32>
    %71 = arith.divf %69, %70 : vector<256x4xf32>
    %72 = vector.extract_strided_slice %65 {offsets = [0, 4], sizes = [256, 4], strides = [1, 1]} : vector<256x8xf32> to vector<256x4xf32>
    %73 = math.tanh %72 : vector<256x4xf32>
    %74 = arith.mulf %71, %73 : vector<256x4xf32>
    %cst_44 = arith.constant dense<0.000000e+00> : vector<4xf32>
    %75 = vector.multi_reduction <add>, %74, %cst_44 [0] : vector<256x4xf32> to vector<4xf32>
    %76 = vector.shape_cast %75 : vector<4xf32> to vector<1x4xf32>
    %cst_45 = arith.constant 2.560000e+02 : f32
    %77 = vector.broadcast %cst_45 : f32 to vector<1x4xf32>
    %78 = arith.divf %76, %77 : vector<1x4xf32>
    %79 = vector.broadcast %78 : vector<1x4xf32> to vector<256x4xf32>
    %80 = arith.mulf %79, %2 : vector<256x4xf32>
    %81 = vector.shape_cast %80 : vector<256x4xf32> to vector<16x16x4xf32>
    %c0_46 = arith.constant 0 : index
    %c0_47 = arith.constant 0 : index
    %c0_48 = arith.constant 0 : index
    %c0_49 = arith.constant 0 : index
    %82 = vector.load %arg8[%c0_46, %c0_47, %c0_48, %c0_49] : memref<1x16x16x4xf32, #tpu.memory_space<vmem>>, vector<1x16x16x4xf32>
    %83 = vector.shape_cast %82 : vector<1x16x16x4xf32> to vector<16x16x4xf32>
    %84 = vector.shape_cast %81 : vector<16x16x4xf32> to vector<1x16x16x4xf32>
    tpu.vector_store %arg8[%c0_46, %c0_47, %c0_48, %c0_49], %84 {strides = array<i32>} : memref<1x16x16x4xf32, #tpu.memory_space<vmem>>, vector<1x16x16x4xf32>,
    %cst_50 = arith.constant 1.000000e+00 : f32
    %85 = vector.broadcast %cst_50 : f32 to vector<1x4xf32>
    %86 = arith.subf %85, %78 : vector<1x4xf32>
    %87 = vector.broadcast %86 : vector<1x4xf32> to vector<256x4xf32>
    %88 = arith.mulf %87, %5 : vector<256x4xf32>
    %89 = vector.shape_cast %88 : vector<256x4xf32> to vector<16x16x4xf32>
    %c0_51 = arith.constant 0 : index
    %c0_52 = arith.constant 0 : index
    %c0_53 = arith.constant 0 : index
    %c0_54 = arith.constant 0 : index
    %90 = vector.load %arg9[%c0_51, %c0_52, %c0_53, %c0_54] : memref<1x16x16x4xf32, #tpu.memory_space<vmem>>, vector<1x16x16x4xf32>
    %91 = vector.shape_cast %90 : vector<1x16x16x4xf32> to vector<16x16x4xf32>
    %92 = vector.shape_cast %89 : vector<16x16x4xf32> to vector<1x16x16x4xf32>
    tpu.vector_store %arg9[%c0_51, %c0_52, %c0_53, %c0_54], %92 {strides = array<i32>} : memref<1x16x16x4xf32, #tpu.memory_space<vmem>>, vector<1x16x16x4xf32>,
    return
  }
  func.func @transform_0(%arg0: i32) -> (i32, i32, i32, i32) {
    %c0_i32 = arith.constant 0 : i32
    %c0_i32_0 = arith.constant 0 : i32
    %c0_i32_1 = arith.constant 0 : i32
    %c0_i32_2 = arith.constant 0 : i32
    return %arg0, %c0_i32, %c0_i32_0, %c0_i32_1 : i32, i32, i32, i32
  }
  func.func @transform_1(%arg0: i32) -> (i32, i32, i32, i32) {
    %c0_i32 = arith.constant 0 : i32
    %c0_i32_0 = arith.constant 0 : i32
    %c0_i32_1 = arith.constant 0 : i32
    %c0_i32_2 = arith.constant 0 : i32
    return %arg0, %c0_i32, %c0_i32_0, %c0_i32_1 : i32, i32, i32, i32
  }
  func.func @transform_2(%arg0: i32) -> (i32, i32) {
    %c0_i32 = arith.constant 0 : i32
    %c0_i32_0 = arith.constant 0 : i32
    %c0_i32_1 = arith.constant 0 : i32
    return %c0_i32, %c0_i32_0 : i32, i32
  }
  func.func @transform_3(%arg0: i32) -> (i32, i32) {
    %c0_i32 = arith.constant 0 : i32
    %c0_i32_0 = arith.constant 0 : i32
    %c0_i32_1 = arith.constant 0 : i32
    return %c0_i32, %c0_i32_0 : i32, i32
  }
  func.func @transform_4(%arg0: i32) -> (i32, i32) {
    %c0_i32 = arith.constant 0 : i32
    %c0_i32_0 = arith.constant 0 : i32
    %c0_i32_1 = arith.constant 0 : i32
    return %c0_i32, %c0_i32_0 : i32, i32
  }
  func.func @transform_5(%arg0: i32) -> (i32, i32, i32) {
    %c0_i32 = arith.constant 0 : i32
    %c0_i32_0 = arith.constant 0 : i32
    %c0_i32_1 = arith.constant 0 : i32
    %c0_i32_2 = arith.constant 0 : i32
    return %c0_i32, %c0_i32_0, %c0_i32_1 : i32, i32, i32
  }
  func.func @transform_6(%arg0: i32) -> (i32, i32) {
    %c0_i32 = arith.constant 0 : i32
    %c0_i32_0 = arith.constant 0 : i32
    %c0_i32_1 = arith.constant 0 : i32
    return %c0_i32, %c0_i32_0 : i32, i32
  }
  func.func @transform_7(%arg0: i32) -> (i32, i32, i32, i32) {
    %c0_i32 = arith.constant 0 : i32
    %c0_i32_0 = arith.constant 0 : i32
    %c0_i32_1 = arith.constant 0 : i32
    %c0_i32_2 = arith.constant 0 : i32
    return %arg0, %c0_i32, %c0_i32_0, %c0_i32_1 : i32, i32, i32, i32
  }
  func.func @transform_8(%arg0: i32) -> (i32, i32, i32, i32) {
    %c0_i32 = arith.constant 0 : i32
    %c0_i32_0 = arith.constant 0 : i32
    %c0_i32_1 = arith.constant 0 : i32
    %c0_i32_2 = arith.constant 0 : i32
    return %arg0, %c0_i32, %c0_i32_0, %c0_i32_1 : i32, i32, i32, i32
  }
}

</mosaic_0001>

<llo_original>
// kernel: react_forward.1
$region0: #{react_forward.1}
  #allocation0 [shape = 'u32[]', space=smem, size = 0x4, offset = 0x4, fixed_abs, tag = 'smem constant byte address 0x4 - core index']
  #allocation1 [shape = 'u32[144,128]{1,0:T(1,128)}', space=vmem, size = 0x12000, scoped, tag = 'internal scratch']
  #allocation2 [shape = 'bf16[288,48]{1,0:T(16,128)(2,1)}', space=vmem, size = 0x12000, scoped, tag = 'scratch operand']
  %s0 = inlined_call_operand.vmem [shape: f32[2,16,16,4], index: 0, kind: input, shape index: {}]
  %s1 = inlined_call_operand.vmem [shape: f32[2,16,16,4], index: 1, kind: input, shape index: {}]
  %s2 = inlined_call_operand.vmem [shape: bf16[4,16], index: 2, kind: input, shape index: {}]
  %s3 = inlined_call_operand.vmem [shape: bf16[4,16], index: 3, kind: input, shape index: {}]
  %s4 = inlined_call_operand.vmem [shape: f32[1,16], index: 4, kind: input, shape index: {}]
  %s5 = inlined_call_operand.vmem [shape: bf16[3,48,8], index: 5, kind: input, shape index: {}]
  %s6 = inlined_call_operand.vmem [shape: f32[1,8], index: 6, kind: input, shape index: {}]
  %s7 = inlined_call_operand.vmem [shape: f32[2,16,16,4], index: 7, kind: output, shape index: {0}]
  %s8 = inlined_call_operand.vmem [shape: f32[2,16,16,4], index: 8, kind: output, shape index: {1}]
  %9 = xla_tuple %s7, %s8
  %s10 = sld [smem:[#allocation0]]
  $region69: #{react_forward.1} parent=0
    _
  %s12 = ssub.s32 1, %s10
  %s13 = scalar_select 0, %s12, %s10
  loop: start=0, step=1, limit=4
  $region2: #{react_forward.1} parent=0 // loop_pre_header
    _
  $region3: #{react_forward.1} parent=0 // loop_header
    %s15 = sphi 0, %s19
    %p16 = scmp.ge.s32.totalorder %s15, 4
    %s25 = sphi 0, %s27
    %s28 = sphi 0, %s25
    %s29 = sphi 0, %s28
    %s45 = sphi 0, %s29
    %s51 = sphi 0, %s53
    %s54 = sphi 0, %s51
    %s55 = sphi 0, %s54
    %s71 = sphi 0, %s55
    %s75 = sphi 0, %s75
    %s77 = sphi 0, %s75
    %s78 = sphi 0, %s77
    %s92 = sphi 0, %s78
    %s96 = sphi 0, %s96
    %s98 = sphi 0, %s96
    %s99 = sphi 0, %s98
    %s113 = sphi 0, %s99
    %s117 = sphi 0, %s117
    %s119 = sphi 0, %s117
    %s120 = sphi 0, %s119
    %s134 = sphi 0, %s120
    %s138 = sphi 0, %s138
    %s140 = sphi 0, %s138
    %s141 = sphi 0, %s140
    %s155 = sphi 0, %s141
    %s159 = sphi 0, %s159
    %s161 = sphi 0, %s159
    %s162 = sphi 0, %s161
    %s176 = sphi 0, %s162
    %s182 = sphi 0, %s184
    %s185 = sphi 0, %s182
    %s186 = sphi 0, %s185
    %s202 = sphi 0, %s186
    %s208 = sphi 0, %s210
    %s211 = sphi 0, %s208
    %s212 = sphi 0, %s211
    %s228 = sphi 0, %s212
  $region4: #{react_forward.1} parent=0 // loop_header_branch
    %18 = sbr.rel (%p16) target = $region8
  $region5: #{react_forward.1} parent=0 // loop_body
    %s20 = ssub.s32 %s15, 1
    %s21 = ssub.s32 %s15, 2
    %s22 = sadd.s32 %s15, 1
    %s23 = ssub.s32 %s15, %s22
    %p24 = scmp.eq.s32.totalorder %s23, 0
    %s26 = sadd.s32 %s25, 1
    %s27 = scalar_select %p24, %s25, %s26
    %p30 = pneg %p24
    %p31 = scmp.eq.s32.totalorder %s15, 1
    %p32 = por %p30, %p31
    %p33 = scmp.ne.s32.totalorder %s25, %s28
    %p34 = scmp.eq.s32.totalorder %s15, 0
    %p35 = por %p33, %p34
    %p36 = scmp.ne.s32.totalorder %s25, %s28
    %p37 = scmp.eq.s32.totalorder %s20, 1
    %p38 = por %p36, %p37
    %p39 = scmp.ne.s32.totalorder %s28, %s29
    %p40 = scmp.eq.s32.totalorder %s20, 0
    %p41 = por %p39, %p40
    %p42 = scmp.ne.s32.totalorder %s28, %s29
    %p43 = scmp.eq.s32.totalorder %s21, 1
    %p44 = por %p42, %p43
    %p46 = scmp.ne.s32.totalorder %s29, %s45
    %p47 = scmp.eq.s32.totalorder %s21, 0
    %p48 = por %p46, %p47
    %s49 = ssub.s32 %s15, %s22
    %p50 = scmp.eq.s32.totalorder %s49, 0
    %s52 = sadd.s32 %s51, 1
    %s53 = scalar_select %p50, %s51, %s52
    %p56 = pneg %p50
    %p57 = scmp.eq.s32.totalorder %s15, 1
    %p58 = por %p56, %p57
    %p59 = scmp.ne.s32.totalorder %s51, %s54
    %p60 = scmp.eq.s32.totalorder %s15, 0
    %p61 = por %p59, %p60
    %p62 = scmp.ne.s32.totalorder %s51, %s54
    %p63 = scmp.eq.s32.totalorder %s20, 1
    %p64 = por %p62, %p63
    %p65 = scmp.ne.s32.totalorder %s54, %s55
    %p66 = scmp.eq.s32.totalorder %s20, 0
    %p67 = por %p65, %p66
    %p68 = scmp.ne.s32.totalorder %s54, %s55
    %p69 = scmp.eq.s32.totalorder %s21, 1
    %p70 = por %p68, %p69
    %p72 = scmp.ne.s32.totalorder %s55, %s71
    %p73 = scmp.eq.s32.totalorder %s21, 0
    %p74 = por %p72, %p73
    %s76 = sadd.s32 %s75, 1
    %p79 = scmp.eq.s32.totalorder %s15, 1
    %p80 = scmp.ne.s32.totalorder %s75, %s77
    %p81 = scmp.eq.s32.totalorder %s15, 0
    %p82 = por %p80, %p81
    %p83 = scmp.ne.s32.totalorder %s75, %s77
    %p84 = scmp.eq.s32.totalorder %s20, 1
    %p85 = por %p83, %p84
    %p86 = scmp.ne.s32.totalorder %s77, %s78
    %p87 = scmp.eq.s32.totalorder %s20, 0
    %p88 = por %p86, %p87
    %p89 = scmp.ne.s32.totalorder %s77, %s78
    %p90 = scmp.eq.s32.totalorder %s21, 1
    %p91 = por %p89, %p90
    %p93 = scmp.ne.s32.totalorder %s78, %s92
    %p94 = scmp.eq.s32.totalorder %s21, 0
    %p95 = por %p93, %p94
    %s97 = sadd.s32 %s96, 1
    %p100 = scmp.eq.s32.totalorder %s15, 1
    %p101 = scmp.ne.s32.totalorder %s96, %s98
    %p102 = scmp.eq.s32.totalorder %s15, 0
    %p103 = por %p101, %p102
    %p104 = scmp.ne.s32.totalorder %s96, %s98
    %p105 = scmp.eq.s32.totalorder %s20, 1
    %p106 = por %p104, %p105
    %p107 = scmp.ne.s32.totalorder %s98, %s99
    %p108 = scmp.eq.s32.totalorder %s20, 0
    %p109 = por %p107, %p108
    %p110 = scmp.ne.s32.totalorder %s98, %s99
    %p111 = scmp.eq.s32.totalorder %s21, 1
    %p112 = por %p110, %p111
    %p114 = scmp.ne.s32.totalorder %s99, %s113
    %p115 = scmp.eq.s32.totalorder %s21, 0
    %p116 = por %p114, %p115
    %s118 = sadd.s32 %s117, 1
    %p121 = scmp.eq.s32.totalorder %s15, 1
    %p122 = scmp.ne.s32.totalorder %s117, %s119
    %p123 = scmp.eq.s32.totalorder %s15, 0
    %p124 = por %p122, %p123
    %p125 = scmp.ne.s32.totalorder %s117, %s119
    %p126 = scmp.eq.s32.totalorder %s20, 1
    %p127 = por %p125, %p126
    %p128 = scmp.ne.s32.totalorder %s119, %s120
    %p129 = scmp.eq.s32.totalorder %s20, 0
    %p130 = por %p128, %p129
    %p131 = scmp.ne.s32.totalorder %s119, %s120
    %p132 = scmp.eq.s32.totalorder %s21, 1
    %p133 = por %p131, %p132
    %p135 = scmp.ne.s32.totalorder %s120, %s134
    %p136 = scmp.eq.s32.totalorder %s21, 0
    %p137 = por %p135, %p136
    %s139 = sadd.s32 %s138, 1
    %p142 = scmp.eq.s32.totalorder %s15, 1
    %p143 = scmp.ne.s32.totalorder %s138, %s140
    %p144 = scmp.eq.s32.totalorder %s15, 0
    %p145 = por %p143, %p144
    %p146 = scmp.ne.s32.totalorder %s138, %s140
    %p147 = scmp.eq.s32.totalorder %s20, 1
    %p148 = por %p146, %p147
    %p149 = scmp.ne.s32.totalorder %s140, %s141
    %p150 = scmp.eq.s32.totalorder %s20, 0
    %p151 = por %p149, %p150
    %p152 = scmp.ne.s32.totalorder %s140, %s141
    %p153 = scmp.eq.s32.totalorder %s21, 1
    %p154 = por %p152, %p153
    %p156 = scmp.ne.s32.totalorder %s141, %s155
    %p157 = scmp.eq.s32.totalorder %s21, 0
    %p158 = por %p156, %p157
    %s160 = sadd.s32 %s159, 1
    %p163 = scmp.eq.s32.totalorder %s15, 1
    %p164 = scmp.ne.s32.totalorder %s159, %s161
    %p165 = scmp.eq.s32.totalorder %s15, 0
    %p166 = por %p164, %p165
    %p167 = scmp.ne.s32.totalorder %s159, %s161
    %p168 = scmp.eq.s32.totalorder %s20, 1
    %p169 = por %p167, %p168
    %p170 = scmp.ne.s32.totalorder %s161, %s162
    %p171 = scmp.eq.s32.totalorder %s20, 0
    %p172 = por %p170, %p171
    %p173 = scmp.ne.s32.totalorder %s161, %s162
    %p174 = scmp.eq.s32.totalorder %s21, 1
    %p175 = por %p173, %p174
    %p177 = scmp.ne.s32.totalorder %s162, %s176
    %p178 = scmp.eq.s32.totalorder %s21, 0
    %p179 = por %p177, %p178
    %s180 = ssub.s32 %s15, %s22
    %p181 = scmp.eq.s32.totalorder %s180, 0
    %s183 = sadd.s32 %s182, 1
    %s184 = scalar_select %p181, %s182, %s183
    %p187 = pneg %p181
    %p188 = scmp.eq.s32.totalorder %s15, 1
    %p189 = por %p187, %p188
    %p190 = scmp.ne.s32.totalorder %s182, %s185
    %p191 = scmp.eq.s32.totalorder %s15, 0
    %p192 = por %p190, %p191
    %p193 = scmp.ne.s32.totalorder %s182, %s185
    %p194 = scmp.eq.s32.totalorder %s20, 1
    %p195 = por %p193, %p194
    %p196 = scmp.ne.s32.totalorder %s185, %s186
    %p197 = scmp.eq.s32.totalorder %s20, 0
    %p198 = por %p196, %p197
    %p199 = scmp.ne.s32.totalorder %s185, %s186
    %p200 = scmp.eq.s32.totalorder %s21, 1
    %p201 = por %p199, %p200
    %p203 = scmp.ne.s32.totalorder %s186, %s202
    %p204 = scmp.eq.s32.totalorder %s21, 0
    %p205 = por %p203, %p204
    %s206 = ssub.s32 %s15, %s22
    %p207 = scmp.eq.s32.totalorder %s206, 0
    %s209 = sadd.s32 %s208, 1
    %s210 = scalar_select %p207, %s208, %s209
    %p213 = pneg %p207
    %p214 = scmp.eq.s32.totalorder %s15, 1
    %p215 = por %p213, %p214
    %p216 = scmp.ne.s32.totalorder %s208, %s211
    %p217 = scmp.eq.s32.totalorder %s15, 0
    %p218 = por %p216, %p217
    %p219 = scmp.ne.s32.totalorder %s208, %s211
    %p220 = scmp.eq.s32.totalorder %s20, 1
    %p221 = por %p219, %p220
    %p222 = scmp.ne.s32.totalorder %s211, %s212
    %p223 = scmp.eq.s32.totalorder %s20, 0
    %p224 = por %p222, %p223
    %p225 = scmp.ne.s32.totalorder %s211, %s212
    %p226 = scmp.eq.s32.totalorder %s21, 1
    %p227 = por %p225, %p226
    %p229 = scmp.ne.s32.totalorder %s212, %s228
    %p230 = scmp.eq.s32.totalorder %s21, 0
    %p231 = por %p229, %p230
    %p232 = scmp.le.s32.totalorder 1, %s15
    %p233 = scmp.lt.s32.totalorder %s15, 3
    %p234 = pnand %p232, %p233
    %p235 = pneg %p234
    // Predicated region
    $region9: #{react_forward.1} parent=5 // pred_check
      _
    $region10: #{react_forward.1} parent=5 // pred_check_branch
      %237 = sbr.rel (%p234) target = $region12
    $region11: #{react_forward.1} parent=5 // pred_region
      %s238 = ssub.s32 %s15, 1
      // Predicated region
      $region13: #{react_forward.1} parent=11 // pred_check
        %p239 = pneg %p88
      $region14: #{react_forward.1} parent=11 // pred_check_branch
        %241 = sbr.rel (%p239) target = $region16
      $region15: #{react_forward.1} parent=11 // pred_region
        _
      $region16: #{react_forward.1} parent=11 // pred_fallthru
        _
      // Predicated region
      $region17: #{react_forward.1} parent=11 // pred_check
        %p242 = pneg %p109
      $region18: #{react_forward.1} parent=11 // pred_check_branch
        %244 = sbr.rel (%p242) target = $region20
      $region19: #{react_forward.1} parent=11 // pred_region
        _
      $region20: #{react_forward.1} parent=11 // pred_fallthru
        _
      // Predicated region
      $region21: #{react_forward.1} parent=11 // pred_check
        %p245 = pneg %p130
      $region22: #{react_forward.1} parent=11 // pred_check_branch
        %247 = sbr.rel (%p245) target = $region24
      $region23: #{react_forward.1} parent=11 // pred_region
        _
      $region24: #{react_forward.1} parent=11 // pred_fallthru
        _
      // Predicated region
      $region25: #{react_forward.1} parent=11 // pred_check
        %p248 = pneg %p151
      $region26: #{react_forward.1} parent=11 // pred_check_branch
        %250 = sbr.rel (%p248) target = $region28
      $region27: #{react_forward.1} parent=11 // pred_region
        _
      $region28: #{react_forward.1} parent=11 // pred_fallthru
        _
      // Predicated region
      $region29: #{react_forward.1} parent=11 // pred_check
        %p251 = pneg %p172
      $region30: #{react_forward.1} parent=11 // pred_check_branch
        %253 = sbr.rel (%p251) target = $region32
      $region31: #{react_forward.1} parent=11 // pred_region
        _
      $region32: #{react_forward.1} parent=11 // pred_fallthru
        _
    $region12: #{react_forward.1} parent=5 // pred_fallthru
      _
    %p254 = scmp.lt.s32.totalorder %s15, 2
    // Predicated region
    $region33: #{react_forward.1} parent=5 // pred_check
      %p255 = pneg %p254
    $region34: #{react_forward.1} parent=5 // pred_check_branch
      %257 = sbr.rel (%p255) target = $region36
    $region35: #{react_forward.1} parent=5 // pred_region
      // Predicated region
      $region37: #{react_forward.1} parent=35 // pred_check
        %p258 = pneg %p35
      $region38: #{react_forward.1} parent=35 // pred_check_branch
        %260 = sbr.rel (%p258) target = $region40
      $region39: #{react_forward.1} parent=35 // pred_region
        %p261 = scmp.lt.s32.totalorder %s15, 1
        %s262 = scalar_select %p261, %s15, 1
        %s263 = smul.addr %s262, 32
        %s264 = smul.addr %s263, 8
        %s265 = scalar_lea.vmem %s0, %s264
      $region40: #{react_forward.1} parent=35 // pred_fallthru
        _
      // Predicated region
      $region41: #{react_forward.1} parent=35 // pred_check
        %p266 = pneg %p61
      $region42: #{react_forward.1} parent=35 // pred_check_branch
        %268 = sbr.rel (%p266) target = $region44
      $region43: #{react_forward.1} parent=35 // pred_region
        %p269 = scmp.lt.s32.totalorder %s15, 1
        %s270 = scalar_select %p269, %s15, 1
        %s271 = smul.addr %s270, 32
        %s272 = smul.addr %s271, 8
        %s273 = scalar_lea.vmem %s1, %s272
      $region44: #{react_forward.1} parent=35 // pred_fallthru
        _
    $region36: #{react_forward.1} parent=5 // pred_fallthru
      _
    %p274 = scmp.le.s32.totalorder 1, %s15
    %p275 = scmp.lt.s32.totalorder %s15, 3
    %p276 = pnand %p274, %p275
    %p277 = pneg %p276
    // Predicated region
    $region45: #{react_forward.1} parent=5 // pred_check
      _
    $region46: #{react_forward.1} parent=5 // pred_check_branch
      %279 = sbr.rel (%p276) target = $region48
    $region47: #{react_forward.1} parent=5 // pred_region
      %s280 = ssub.s32 %s15, 1
      %p281 = scmp.lt.s32.totalorder %s20, 1
      %s282 = scalar_select %p281, %s20, 1
      %s283 = smul.addr %s282, 32
      %s284 = smul.addr %s283, 8
      %s285 = scalar_lea.vmem %s0, %s284
      %p286 = pneg %p41
      %p287 = pneg %p38
      %p288 = scmp.lt.s32.totalorder %s20, 1
      %s289 = scalar_select %p288, %s20, 1
      %s290 = smul.addr %s289, 32
      %s291 = smul.addr %s290, 8
      %s292 = scalar_lea.vmem %s1, %s291
      %p293 = pneg %p67
      %p294 = pneg %p64
      %p295 = pneg %p88
      %p296 = pneg %p85
      %p297 = pneg %p109
      %p298 = pneg %p106
      %p299 = pneg %p130
      %p300 = pneg %p127
      %p301 = pneg %p151
      %p302 = pneg %p148
      %p303 = pneg %p172
      %p304 = pneg %p169
      %p305 = pneg %p198
      %p306 = pneg %p195
      %p307 = scmp.lt.s32.totalorder %s20, 1
      %s308 = scalar_select %p307, %s20, 1
      %s309 = smul.addr %s308, 32
      %s310 = smul.addr %s309, 8
      %s311 = scalar_lea.vmem %s7, %s310
      %p312 = pneg %p224
      %p313 = pneg %p221
      %p314 = scmp.lt.s32.totalorder %s20, 1
      %s315 = scalar_select %p314, %s20, 1
      %s316 = smul.addr %s315, 32
      %s317 = smul.addr %s316, 8
      %s318 = scalar_lea.vmem %s8, %s317
      %p319 = scmp.lt.s32.totalorder %s20, 1
      %s320 = scalar_select %p319, %s20, 1
      %s321 = smul.addr %s320, 32
      %s322 = smul.addr %s321, 8
      %s323 = scalar_lea.vmem %s0, %s322
      %p324 = scmp.lt.s32.totalorder %s20, 1
      %s325 = scalar_select %p324, %s20, 1
      %s326 = smul.addr %s325, 32
      %s327 = smul.addr %s326, 8
      %s328 = scalar_lea.vmem %s1, %s327
      %p329 = scmp.lt.s32.totalorder %s20, 1
      %s330 = scalar_select %p329, %s20, 1
      %s331 = smul.addr %s330, 32
      %s332 = smul.addr %s331, 8
      %s333 = scalar_lea.vmem %s7, %s332
      %p334 = scmp.lt.s32.totalorder %s20, 1
      %s335 = scalar_select %p334, %s20, 1
      %s336 = smul.addr %s335, 32
      %s337 = smul.addr %s336, 8
      %s338 = scalar_lea.vmem %s8, %s337
      %v340 = vld [vmem:[%s323] sm:$0xff]
      %v341 = vld [vmem:[%s323 + $0x8] sm:$0xff]
      %v342 = vld [vmem:[%s323 + $0x10] sm:$0xff]
      %v343 = vld [vmem:[%s323 + $0x18] sm:$0xff]
      %v344 = vld [vmem:[%s323 + $0x20] sm:$0xff]
      %v345 = vld [vmem:[%s323 + $0x28] sm:$0xff]
      %v346 = vld [vmem:[%s323 + $0x30] sm:$0xff]
      %v347 = vld [vmem:[%s323 + $0x38] sm:$0xff]
      %v348 = vld [vmem:[%s323 + $0x40] sm:$0xff]
      %v349 = vld [vmem:[%s323 + $0x48] sm:$0xff]
      %v350 = vld [vmem:[%s323 + $0x50] sm:$0xff]
      %v351 = vld [vmem:[%s323 + $0x58] sm:$0xff]
      %v352 = vld [vmem:[%s323 + $0x60] sm:$0xff]
      %v353 = vld [vmem:[%s323 + $0x68] sm:$0xff]
      %v354 = vld [vmem:[%s323 + $0x70] sm:$0xff]
      %v355 = vld [vmem:[%s323 + $0x78] sm:$0xff]
      %v356 = vld [vmem:[%s323 + $0x80] sm:$0xff]
      %v357 = vld [vmem:[%s323 + $0x88] sm:$0xff]
      %v358 = vld [vmem:[%s323 + $0x90] sm:$0xff]
      %v359 = vld [vmem:[%s323 + $0x98] sm:$0xff]
      %v360 = vld [vmem:[%s323 + $0xa0] sm:$0xff]
      %v361 = vld [vmem:[%s323 + $0xa8] sm:$0xff]
      %v362 = vld [vmem:[%s323 + $0xb0] sm:$0xff]
      %v363 = vld [vmem:[%s323 + $0xb8] sm:$0xff]
      %v364 = vld [vmem:[%s323 + $0xc0] sm:$0xff]
      %v365 = vld [vmem:[%s323 + $0xc8] sm:$0xff]
      %v366 = vld [vmem:[%s323 + $0xd0] sm:$0xff]
      %v367 = vld [vmem:[%s323 + $0xd8] sm:$0xff]
      %v368 = vld [vmem:[%s323 + $0xe0] sm:$0xff]
      %v369 = vld [vmem:[%s323 + $0xe8] sm:$0xff]
      %v370 = vld [vmem:[%s323 + $0xf0] sm:$0xff]
      %v371 = vld [vmem:[%s323 + $0xf8] sm:$0xff]
      %v372 = vld [vmem:[%s328] sm:$0xff]
      %v373 = vld [vmem:[%s328 + $0x8] sm:$0xff]
      %v374 = vld [vmem:[%s328 + $0x10] sm:$0xff]
      %v375 = vld [vmem:[%s328 + $0x18] sm:$0xff]
      %v376 = vld [vmem:[%s328 + $0x20] sm:$0xff]
      %v377 = vld [vmem:[%s328 + $0x28] sm:$0xff]
      %v378 = vld [vmem:[%s328 + $0x30] sm:$0xff]
      %v379 = vld [vmem:[%s328 + $0x38] sm:$0xff]
      %v380 = vld [vmem:[%s328 + $0x40] sm:$0xff]
      %v381 = vld [vmem:[%s328 + $0x48] sm:$0xff]
      %v382 = vld [vmem:[%s328 + $0x50] sm:$0xff]
      %v383 = vld [vmem:[%s328 + $0x58] sm:$0xff]
      %v384 = vld [vmem:[%s328 + $0x60] sm:$0xff]
      %v385 = vld [vmem:[%s328 + $0x68] sm:$0xff]
      %v386 = vld [vmem:[%s328 + $0x70] sm:$0xff]
      %v387 = vld [vmem:[%s328 + $0x78] sm:$0xff]
      %v388 = vld [vmem:[%s328 + $0x80] sm:$0xff]
      %v389 = vld [vmem:[%s328 + $0x88] sm:$0xff]
      %v390 = vld [vmem:[%s328 + $0x90] sm:$0xff]
      %v391 = vld [vmem:[%s328 + $0x98] sm:$0xff]
      %v392 = vld [vmem:[%s328 + $0xa0] sm:$0xff]
      %v393 = vld [vmem:[%s328 + $0xa8] sm:$0xff]
      %v394 = vld [vmem:[%s328 + $0xb0] sm:$0xff]
      %v395 = vld [vmem:[%s328 + $0xb8] sm:$0xff]
      %v396 = vld [vmem:[%s328 + $0xc0] sm:$0xff]
      %v397 = vld [vmem:[%s328 + $0xc8] sm:$0xff]
      %v398 = vld [vmem:[%s328 + $0xd0] sm:$0xff]
      %v399 = vld [vmem:[%s328 + $0xd8] sm:$0xff]
      %v400 = vld [vmem:[%s328 + $0xe0] sm:$0xff]
      %v401 = vld [vmem:[%s328 + $0xe8] sm:$0xff]
      %v402 = vld [vmem:[%s328 + $0xf0] sm:$0xff]
      %v403 = vld [vmem:[%s328 + $0xf8] sm:$0xff]
      %v404 = vpack.c.bf16 %v341, %v340
      %v405 = vpack.c.bf16 %v343, %v342
      %v406 = vpack.c.bf16 %v345, %v344
      %v407 = vpack.c.bf16 %v347, %v346
      %v408 = vpack.c.bf16 %v349, %v348
      %v409 = vpack.c.bf16 %v351, %v350
      %v410 = vpack.c.bf16 %v353, %v352
      %v411 = vpack.c.bf16 %v355, %v354
      %v412 = vpack.c.bf16 %v357, %v356
      %v413 = vpack.c.bf16 %v359, %v358
      %v414 = vpack.c.bf16 %v361, %v360
      %v415 = vpack.c.bf16 %v363, %v362
      %v416 = vpack.c.bf16 %v365, %v364
      %v417 = vpack.c.bf16 %v367, %v366
      %v418 = vpack.c.bf16 %v369, %v368
      %v419 = vpack.c.bf16 %v371, %v370
      %v420 = vpack.c.bf16 %v373, %v372
      %v421 = vpack.c.bf16 %v375, %v374
      %v422 = vpack.c.bf16 %v377, %v376
      %v423 = vpack.c.bf16 %v379, %v378
      %v424 = vpack.c.bf16 %v381, %v380
      %v425 = vpack.c.bf16 %v383, %v382
      %v426 = vpack.c.bf16 %v385, %v384
      %v427 = vpack.c.bf16 %v387, %v386
      %v428 = vpack.c.bf16 %v389, %v388
      %v429 = vpack.c.bf16 %v391, %v390
      %v430 = vpack.c.bf16 %v393, %v392
      %v431 = vpack.c.bf16 %v395, %v394
      %v432 = vpack.c.bf16 %v397, %v396
      %v433 = vpack.c.bf16 %v399, %v398
      %v434 = vpack.c.bf16 %v401, %v400
      %v435 = vpack.c.bf16 %v403, %v402
      %v436 = vld [vmem:[%s2] sm:$0x3]
      %v437 = vld [vmem:[%s3] sm:$0x3]
      %vm438 = vcmask 31744
      %v440 = vsel %vm438, %v420, 0
      %v443 = vsel %vm438, %v421, 0
      %v446 = vsel %vm438, %v422, 0
      %v449 = vsel %vm438, %v423, 0
      %v452 = vsel %vm438, %v424, 0
      %v455 = vsel %vm438, %v425, 0
      %v458 = vsel %vm438, %v426, 0
      %v461 = vsel %vm438, %v427, 0
      %v464 = vsel %vm438, %v428, 0
      %v467 = vsel %vm438, %v429, 0
      %v470 = vsel %vm438, %v430, 0
      %v473 = vsel %vm438, %v431, 0
      %v476 = vsel %vm438, %v432, 0
      %v479 = vsel %vm438, %v433, 0
      %v482 = vsel %vm438, %v434, 0
      %v485 = vsel %vm438, %v435, 0
      %vm487 = vcmask 1041408
      %v489 = vsel %vm487, %v437, 0
      %491 = vmatprep.subr.bf16.mxu0 0
      %492 = vmatpush1.bf16.msra.mxu0 %v489
      %493 = vmatprep.subr.bf16.mxu0 0
      %494 = vmatpush1.bf16.msra.mxu0 0
      %495 = vmatprep.subr.bf16.mxu0 0
      %496 = vmatpush1.bf16.msra.mxu0 0
      %497 = vmatprep.subr.bf16.mxu0 0
      %498 = vmatpush1.bf16.msra.mxu0 0
      %499 = vmatprep.subr.bf16.mxu0 0
      %500 = vmatpush1.bf16.msra.mxu0 0
      %501 = vmatprep.subr.bf16.mxu0 0
      %502 = vmatpush1.bf16.msra.mxu0 0
      %503 = vmatprep.subr.bf16.mxu0 0
      %504 = vmatpush1.bf16.msra.mxu0 0
      %505 = vmatprep.subr.bf16.mxu0 0
      %506 = vmatpush1.bf16.msra.mxu0 0
      %507 = vmatprep.subr.bf16.mxu0 0
      %508 = vmatpush1.bf16.msra.mxu0 0
      %509 = vmatprep.subr.bf16.mxu0 0
      %510 = vmatpush1.bf16.msra.mxu0 0
      %511 = vmatprep.subr.bf16.mxu0 0
      %512 = vmatpush1.bf16.msra.mxu0 0
      %513 = vmatprep.subr.bf16.mxu0 0
      %514 = vmatpush1.bf16.msra.mxu0 0
      %515 = vmatprep.subr.bf16.mxu0 0
      %516 = vmatpush1.bf16.msra.mxu0 0
      %517 = vmatprep.subr.bf16.mxu0 0
      %518 = vmatpush1.bf16.msra.mxu0 0
      %519 = vmatprep.subr.bf16.mxu0 0
      %520 = vmatpush1.bf16.msra.mxu0 0
      %521 = vmatprep.subr.bf16.mxu0 0
      %522 = vmatpush1.bf16.msra.mxu0 0
      %523 = vmatprep.mubr.bf16.mxu0 0
      %524 = vmatmul.mubr.bf16.gmra.mrb[0].mxu0 %v440
      %v525 = vpop.f32.mrb[0].mxu0
      %v526 = vadd.f32 0.0, %v525
      %v527 = vpop.f32.mrb[0].mxu0
      %v528 = vpop.f32.mrb[0].mxu0
      %v529 = vadd.f32 0.0, %v528
      %v530 = vpop.f32.mrb[0].mxu0
      %531 = vmatprep.mubr.bf16.mxu0 0
      %532 = vmatmul.mubr.bf16.gmra.mrb[0].mxu0 %v443
      %v533 = vpop.f32.mrb[0].mxu0
      %v534 = vadd.f32 0.0, %v533
      %v535 = vpop.f32.mrb[0].mxu0
      %v536 = vpop.f32.mrb[0].mxu0
      %v537 = vadd.f32 0.0, %v536
      %v538 = vpop.f32.mrb[0].mxu0
      %539 = vmatprep.mubr.bf16.mxu0 0
      %540 = vmatmul.mubr.bf16.gmra.mrb[0].mxu0 %v446
      %v541 = vpop.f32.mrb[0].mxu0
      %v542 = vadd.f32 0.0, %v541
      %v543 = vpop.f32.mrb[0].mxu0
      %v544 = vpop.f32.mrb[0].mxu0
      %v545 = vadd.f32 0.0, %v544
      %v546 = vpop.f32.mrb[0].mxu0
      %547 = vmatprep.mubr.bf16.mxu0 0
      %548 = vmatmul.mubr.bf16.gmra.mrb[0].mxu0 %v449
      %v549 = vpop.f32.mrb[0].mxu0
      %v550 = vadd.f32 0.0, %v549
      %v551 = vpop.f32.mrb[0].mxu0
      %v552 = vpop.f32.mrb[0].mxu0
      %v553 = vadd.f32 0.0, %v552
      %v554 = vpop.f32.mrb[0].mxu0
      %555 = vmatprep.mubr.bf16.mxu0 0
      %556 = vmatmul.mubr.bf16.gmra.mrb[0].mxu0 %v452
      %v557 = vpop.f32.mrb[0].mxu0
      %v558 = vadd.f32 0.0, %v557
      %v559 = vpop.f32.mrb[0].mxu0
      %v560 = vpop.f32.mrb[0].mxu0
      %v561 = vadd.f32 0.0, %v560
      %v562 = vpop.f32.mrb[0].mxu0
      %563 = vmatprep.mubr.bf16.mxu0 0
      %564 = vmatmul.mubr.bf16.gmra.mrb[0].mxu0 %v455
      %v565 = vpop.f32.mrb[0].mxu0
      %v566 = vadd.f32 0.0, %v565
      %v567 = vpop.f32.mrb[0].mxu0
      %v568 = vpop.f32.mrb[0].mxu0
      %v569 = vadd.f32 0.0, %v568
      %v570 = vpop.f32.mrb[0].mxu0
      %571 = vmatprep.mubr.bf16.mxu0 0
      %572 = vmatmul.mubr.bf16.gmra.mrb[0].mxu0 %v458
      %v573 = vpop.f32.mrb[0].mxu0
      %v574 = vadd.f32 0.0, %v573
      %v575 = vpop.f32.mrb[0].mxu0
      %v576 = vpop.f32.mrb[0].mxu0
      %v577 = vadd.f32 0.0, %v576
      %v578 = vpop.f32.mrb[0].mxu0
      %579 = vmatprep.mubr.bf16.mxu0 0
      %580 = vmatmul.mubr.bf16.gmra.mrb[0].mxu0 %v461
      %v581 = vpop.f32.mrb[0].mxu0
      %v582 = vadd.f32 0.0, %v581
      %v583 = vpop.f32.mrb[0].mxu0
      %v584 = vpop.f32.mrb[0].mxu0
      %v585 = vadd.f32 0.0, %v584
      %v586 = vpop.f32.mrb[0].mxu0
      %587 = vmatprep.mubr.bf16.mxu0 0
      %588 = vmatmul.mubr.bf16.gmra.mrb[0].mxu0 %v464
      %v589 = vpop.f32.mrb[0].mxu0
      %v590 = vadd.f32 0.0, %v589
      %v591 = vpop.f32.mrb[0].mxu0
      %v592 = vpop.f32.mrb[0].mxu0
      %v593 = vadd.f32 0.0, %v592
      %v594 = vpop.f32.mrb[0].mxu0
      %595 = vmatprep.mubr.bf16.mxu0 0
      %596 = vmatmul.mubr.bf16.gmra.mrb[0].mxu0 %v467
      %v597 = vpop.f32.mrb[0].mxu0
      %v598 = vadd.f32 0.0, %v597
      %v599 = vpop.f32.mrb[0].mxu0
      %v600 = vpop.f32.mrb[0].mxu0
      %v601 = vadd.f32 0.0, %v600
      %v602 = vpop.f32.mrb[0].mxu0
      %603 = vmatprep.mubr.bf16.mxu0 0
      %604 = vmatmul.mubr.bf16.gmra.mrb[0].mxu0 %v470
      %v605 = vpop.f32.mrb[0].mxu0
      %v606 = vadd.f32 0.0, %v605
      %v607 = vpop.f32.mrb[0].mxu0
      %v608 = vpop.f32.mrb[0].mxu0
      %v609 = vadd.f32 0.0, %v608
      %v610 = vpop.f32.mrb[0].mxu0
      %611 = vmatprep.mubr.bf16.mxu0 0
      %612 = vmatmul.mubr.bf16.gmra.mrb[0].mxu0 %v473
      %v613 = vpop.f32.mrb[0].mxu0
      %v614 = vadd.f32 0.0, %v613
      %v615 = vpop.f32.mrb[0].mxu0
      %v616 = vpop.f32.mrb[0].mxu0
      %v617 = vadd.f32 0.0, %v616
      %v618 = vpop.f32.mrb[0].mxu0
      %619 = vmatprep.mubr.bf16.mxu0 0
      %620 = vmatmul.mubr.bf16.gmra.mrb[0].mxu0 %v476
      %v621 = vpop.f32.mrb[0].mxu0
      %v622 = vadd.f32 0.0, %v621
      %v623 = vpop.f32.mrb[0].mxu0
      %v624 = vpop.f32.mrb[0].mxu0
      %v625 = vadd.f32 0.0, %v624
      %v626 = vpop.f32.mrb[0].mxu0
      %627 = vmatprep.mubr.bf16.mxu0 0
      %628 = vmatmul.mubr.bf16.gmra.mrb[0].mxu0 %v479
      %v629 = vpop.f32.mrb[0].mxu0
      %v630 = vadd.f32 0.0, %v629
      %v631 = vpop.f32.mrb[0].mxu0
      %v632 = vpop.f32.mrb[0].mxu0
      %v633 = vadd.f32 0.0, %v632
      %v634 = vpop.f32.mrb[0].mxu0
      %635 = vmatprep.mubr.bf16.mxu0 0
      %636 = vmatmul.mubr.bf16.gmra.mrb[0].mxu0 %v482
      %v637 = vpop.f32.mrb[0].mxu0
      %v638 = vadd.f32 0.0, %v637
      %v639 = vpop.f32.mrb[0].mxu0
      %v640 = vpop.f32.mrb[0].mxu0
      %v641 = vadd.f32 0.0, %v640
      %v642 = vpop.f32.mrb[0].mxu0
      %643 = vmatprep.mubr.bf16.mxu0 0
      %644 = vmatmul.mubr.bf16.gmra.mrb[0].mxu0 %v485
      %v645 = vpop.f32.mrb[0].mxu0
      %v646 = vadd.f32 0.0, %v645
      %v647 = vpop.f32.mrb[0].mxu0
      %v648 = vpop.f32.mrb[0].mxu0
      %v649 = vadd.f32 0.0, %v648
      %v650 = vpop.f32.mrb[0].mxu0
      %651 = vdwg.mxu0
      %v653 = vsel %vm438, %v404, 0
      %v656 = vsel %vm438, %v405, 0
      %v659 = vsel %vm438, %v406, 0
      %v662 = vsel %vm438, %v407, 0
      %v665 = vsel %vm438, %v408, 0
      %v668 = vsel %vm438, %v409, 0
      %v671 = vsel %vm438, %v410, 0
      %v674 = vsel %vm438, %v411, 0
      %v677 = vsel %vm438, %v412, 0
      %v680 = vsel %vm438, %v413, 0
      %v683 = vsel %vm438, %v414, 0
      %v686 = vsel %vm438, %v415, 0
      %v689 = vsel %vm438, %v416, 0
      %v692 = vsel %vm438, %v417, 0
      %v695 = vsel %vm438, %v418, 0
      %v698 = vsel %vm438, %v419, 0
      %v701 = vsel %vm487, %v436, 0
      %703 = vmatprep.subr.bf16.mxu0 0
      %704 = vmatpush1.bf16.msra.mxu0 %v701
      %705 = vmatprep.subr.bf16.mxu0 0
      %706 = vmatpush1.bf16.msra.mxu0 0
      %707 = vmatprep.subr.bf16.mxu0 0
      %708 = vmatpush1.bf16.msra.mxu0 0
      %709 = vmatprep.subr.bf16.mxu0 0
      %710 = vmatpush1.bf16.msra.mxu0 0
      %711 = vmatprep.subr.bf16.mxu0 0
      %712 = vmatpush1.bf16.msra.mxu0 0
      %713 = vmatprep.subr.bf16.mxu0 0
      %714 = vmatpush1.bf16.msra.mxu0 0
      %715 = vmatprep.subr.bf16.mxu0 0
      %716 = vmatpush1.bf16.msra.mxu0 0
      %717 = vmatprep.subr.bf16.mxu0 0
      %718 = vmatpush1.bf16.msra.mxu0 0
      %719 = vmatprep.subr.bf16.mxu0 0
      %720 = vmatpush1.bf16.msra.mxu0 0
      %721 = vmatprep.subr.bf16.mxu0 0
      %722 = vmatpush1.bf16.msra.mxu0 0
      %723 = vmatprep.subr.bf16.mxu0 0
      %724 = vmatpush1.bf16.msra.mxu0 0
      %725 = vmatprep.subr.bf16.mxu0 0
      %726 = vmatpush1.bf16.msra.mxu0 0
      %727 = vmatprep.subr.bf16.mxu0 0
      %728 = vmatpush1.bf16.msra.mxu0 0
      %729 = vmatprep.subr.bf16.mxu0 0
      %730 = vmatpush1.bf16.msra.mxu0 0
      %731 = vmatprep.subr.bf16.mxu0 0
      %732 = vmatpush1.bf16.msra.mxu0 0
      %733 = vmatprep.subr.bf16.mxu0 0
      %734 = vmatpush1.bf16.msra.mxu0 0
      %735 = vmatprep.mubr.bf16.mxu0 0
      %736 = vmatmul.mubr.bf16.gmra.mrb[0].mxu0 %v653
      %v737 = vpop.f32.mrb[0].mxu0
      %v738 = vadd.f32 %v526, %v737
      %v739 = vpop.f32.mrb[0].mxu0
      %v740 = vpop.f32.mrb[0].mxu0
      %v741 = vadd.f32 %v529, %v740
      %v742 = vpop.f32.mrb[0].mxu0
      %743 = vmatprep.mubr.bf16.mxu0 0
      %744 = vmatmul.mubr.bf16.gmra.mrb[0].mxu0 %v656
      %v745 = vpop.f32.mrb[0].mxu0
      %v746 = vadd.f32 %v534, %v745
      %v747 = vpop.f32.mrb[0].mxu0
      %v748 = vpop.f32.mrb[0].mxu0
      %v749 = vadd.f32 %v537, %v748
      %v750 = vpop.f32.mrb[0].mxu0
      %751 = vmatprep.mubr.bf16.mxu0 0
      %752 = vmatmul.mubr.bf16.gmra.mrb[0].mxu0 %v659
      %v753 = vpop.f32.mrb[0].mxu0
      %v754 = vadd.f32 %v542, %v753
      %v755 = vpop.f32.mrb[0].mxu0
      %v756 = vpop.f32.mrb[0].mxu0
      %v757 = vadd.f32 %v545, %v756
      %v758 = vpop.f32.mrb[0].mxu0
      %759 = vmatprep.mubr.bf16.mxu0 0
      %760 = vmatmul.mubr.bf16.gmra.mrb[0].mxu0 %v662
      %v761 = vpop.f32.mrb[0].mxu0
      %v762 = vadd.f32 %v550, %v761
      %v763 = vpop.f32.mrb[0].mxu0
      %v764 = vpop.f32.mrb[0].mxu0
      %v765 = vadd.f32 %v553, %v764
      %v766 = vpop.f32.mrb[0].mxu0
      %767 = vmatprep.mubr.bf16.mxu0 0
      %768 = vmatmul.mubr.bf16.gmra.mrb[0].mxu0 %v665
      %v769 = vpop.f32.mrb[0].mxu0
      %v770 = vadd.f32 %v558, %v769
      %v771 = vpop.f32.mrb[0].mxu0
      %v772 = vpop.f32.mrb[0].mxu0
      %v773 = vadd.f32 %v561, %v772
      %v774 = vpop.f32.mrb[0].mxu0
      %775 = vmatprep.mubr.bf16.mxu0 0
      %776 = vmatmul.mubr.bf16.gmra.mrb[0].mxu0 %v668
      %v777 = vpop.f32.mrb[0].mxu0
      %v778 = vadd.f32 %v566, %v777
      %v779 = vpop.f32.mrb[0].mxu0
      %v780 = vpop.f32.mrb[0].mxu0
      %v781 = vadd.f32 %v569, %v780
      %v782 = vpop.f32.mrb[0].mxu0
      %783 = vmatprep.mubr.bf16.mxu0 0
      %784 = vmatmul.mubr.bf16.gmra.mrb[0].mxu0 %v671
      %v785 = vpop.f32.mrb[0].mxu0
      %v786 = vadd.f32 %v574, %v785
      %v787 = vpop.f32.mrb[0].mxu0
      %v788 = vpop.f32.mrb[0].mxu0
      %v789 = vadd.f32 %v577, %v788
      %v790 = vpop.f32.mrb[0].mxu0
      %791 = vmatprep.mubr.bf16.mxu0 0
      %792 = vmatmul.mubr.bf16.gmra.mrb[0].mxu0 %v674
      %v793 = vpop.f32.mrb[0].mxu0
      %v794 = vadd.f32 %v582, %v793
      %v795 = vpop.f32.mrb[0].mxu0
      %v796 = vpop.f32.mrb[0].mxu0
      %v797 = vadd.f32 %v585, %v796
      %v798 = vpop.f32.mrb[0].mxu0
      %799 = vmatprep.mubr.bf16.mxu0 0
      %800 = vmatmul.mubr.bf16.gmra.mrb[0].mxu0 %v677
      %v801 = vpop.f32.mrb[0].mxu0
      %v802 = vadd.f32 %v590, %v801
      %v803 = vpop.f32.mrb[0].mxu0
      %v804 = vpop.f32.mrb[0].mxu0
      %v805 = vadd.f32 %v593, %v804
      %v806 = vpop.f32.mrb[0].mxu0
      %807 = vmatprep.mubr.bf16.mxu0 0
      %808 = vmatmul.mubr.bf16.gmra.mrb[0].mxu0 %v680
      %v809 = vpop.f32.mrb[0].mxu0
      %v810 = vadd.f32 %v598, %v809
      %v811 = vpop.f32.mrb[0].mxu0
      %v812 = vpop.f32.mrb[0].mxu0
      %v813 = vadd.f32 %v601, %v812
      %v814 = vpop.f32.mrb[0].mxu0
      %815 = vmatprep.mubr.bf16.mxu0 0
      %816 = vmatmul.mubr.bf16.gmra.mrb[0].mxu0 %v683
      %v817 = vpop.f32.mrb[0].mxu0
      %v818 = vadd.f32 %v606, %v817
      %v819 = vpop.f32.mrb[0].mxu0
      %v820 = vpop.f32.mrb[0].mxu0
      %v821 = vadd.f32 %v609, %v820
      %v822 = vpop.f32.mrb[0].mxu0
      %823 = vmatprep.mubr.bf16.mxu0 0
      %824 = vmatmul.mubr.bf16.gmra.mrb[0].mxu0 %v686
      %v825 = vpop.f32.mrb[0].mxu0
      %v826 = vadd.f32 %v614, %v825
      %v827 = vpop.f32.mrb[0].mxu0
      %v828 = vpop.f32.mrb[0].mxu0
      %v829 = vadd.f32 %v617, %v828
      %v830 = vpop.f32.mrb[0].mxu0
      %831 = vmatprep.mubr.bf16.mxu0 0
      %832 = vmatmul.mubr.bf16.gmra.mrb[0].mxu0 %v689
      %v833 = vpop.f32.mrb[0].mxu0
      %v834 = vadd.f32 %v622, %v833
      %v835 = vpop.f32.mrb[0].mxu0
      %v836 = vpop.f32.mrb[0].mxu0
      %v837 = vadd.f32 %v625, %v836
      %v838 = vpop.f32.mrb[0].mxu0
      %839 = vmatprep.mubr.bf16.mxu0 0
      %840 = vmatmul.mubr.bf16.gmra.mrb[0].mxu0 %v692
      %v841 = vpop.f32.mrb[0].mxu0
      %v842 = vadd.f32 %v630, %v841
      %v843 = vpop.f32.mrb[0].mxu0
      %v844 = vpop.f32.mrb[0].mxu0
      %v845 = vadd.f32 %v633, %v844
      %v846 = vpop.f32.mrb[0].mxu0
      %847 = vmatprep.mubr.bf16.mxu0 0
      %848 = vmatmul.mubr.bf16.gmra.mrb[0].mxu0 %v695
      %v849 = vpop.f32.mrb[0].mxu0
      %v850 = vadd.f32 %v638, %v849
      %v851 = vpop.f32.mrb[0].mxu0
      %v852 = vpop.f32.mrb[0].mxu0
      %v853 = vadd.f32 %v641, %v852
      %v854 = vpop.f32.mrb[0].mxu0
      %855 = vmatprep.mubr.bf16.mxu0 0
      %856 = vmatmul.mubr.bf16.gmra.mrb[0].mxu0 %v698
      %v857 = vpop.f32.mrb[0].mxu0
      %v858 = vadd.f32 %v646, %v857
      %v859 = vpop.f32.mrb[0].mxu0
      %v860 = vpop.f32.mrb[0].mxu0
      %v861 = vadd.f32 %v649, %v860
      %v862 = vpop.f32.mrb[0].mxu0
      %863 = vdwg.mxu0
      %v864 = vld [vmem:[%s4] sm:$0x1]
      %v866 = vlaneseq
      %v867 = vshrl.u32 %v866, 7
      %v868 = vsub.s32 0, %v867
      %v869 = vrot.slane %v864, %v868
      %v871 = vadd.f32 %v738, %v869
      %v872 = vadd.f32 %v741, %v869
      %v873 = vadd.f32 %v746, %v869
      %v874 = vadd.f32 %v749, %v869
      %v875 = vadd.f32 %v754, %v869
      %v876 = vadd.f32 %v757, %v869
      %v877 = vadd.f32 %v762, %v869
      %v878 = vadd.f32 %v765, %v869
      %v879 = vadd.f32 %v770, %v869
      %v880 = vadd.f32 %v773, %v869
      %v881 = vadd.f32 %v778, %v869
      %v882 = vadd.f32 %v781, %v869
      %v883 = vadd.f32 %v786, %v869
      %v884 = vadd.f32 %v789, %v869
      %v885 = vadd.f32 %v794, %v869
      %v886 = vadd.f32 %v797, %v869
      %v887 = vadd.f32 %v802, %v869
      %v888 = vadd.f32 %v805, %v869
      %v889 = vadd.f32 %v810, %v869
      %v890 = vadd.f32 %v813, %v869
      %v891 = vadd.f32 %v818, %v869
      %v892 = vadd.f32 %v821, %v869
      %v893 = vadd.f32 %v826, %v869
      %v894 = vadd.f32 %v829, %v869
      %v895 = vadd.f32 %v834, %v869
      %v896 = vadd.f32 %v837, %v869
      %v897 = vadd.f32 %v842, %v869
      %v898 = vadd.f32 %v845, %v869
      %v899 = vadd.f32 %v850, %v869
      %v900 = vadd.f32 %v853, %v869
      %v901 = vadd.f32 %v858, %v869
      %v902 = vadd.f32 %v861, %v869
      %v903 = vlaneseq
      %v904 = vshrl.u32 %v903, 7
      %v905 = vadd.s32 %v904, 8
      %v906 = vadd.s32 %v904, 16
      %v907 = vadd.s32 %v904, 24
      %v908 = vadd.s32 %v904, 32
      %v909 = vadd.s32 %v904, 40
      %v910 = vadd.s32 %v904, 48
      %v911 = vadd.s32 %v904, 56
      %v912 = vadd.s32 %v904, 64
      %v913 = vadd.s32 %v904, 72
      %v914 = vadd.s32 %v904, 80
      %v915 = vadd.s32 %v904, 88
      %v916 = vadd.s32 %v904, 96
      %v917 = vadd.s32 %v904, 104
      %v918 = vadd.s32 %v904, 112
      %v919 = vadd.s32 %v904, 120
      %v920 = vadd.s32 %v904, 128
      %v921 = vadd.s32 %v904, 136
      %v922 = vadd.s32 %v904, 144
      %v923 = vadd.s32 %v904, 152
      %v924 = vadd.s32 %v904, 160
      %v925 = vadd.s32 %v904, 168
      %v926 = vadd.s32 %v904, 176
      %v927 = vadd.s32 %v904, 184
      %v928 = vadd.s32 %v904, 192
      %v929 = vadd.s32 %v904, 200
      %v930 = vadd.s32 %v904, 208
      %v931 = vadd.s32 %v904, 216
      %v932 = vadd.s32 %v904, 224
      %v933 = vadd.s32 %v904, 232
      %v934 = vadd.s32 %v904, 240
      %v935 = vadd.s32 %v904, 248
      %vm936 = vcmp.lt.s32.totalorder %v904, 0
      %v937 = vsub.s32 0, %v904
      %v938 = vsel %vm936, %v937, %v904
      %v939 = vshrl.u32 %v938, 4
      %v940 = vand.u32 %v938, 15
      %v941 = vsub.s32 0, %v940
      %v942 = vsel %vm936, %v941, %v940
      %vm943 = vcmp.lt.s32.totalorder %v905, 0
      %v944 = vsub.s32 0, %v905
      %v945 = vsel %vm943, %v944, %v905
      %v946 = vshrl.u32 %v945, 4
      %v947 = vand.u32 %v945, 15
      %v948 = vsub.s32 0, %v947
      %v949 = vsel %vm943, %v948, %v947
      %vm950 = vcmp.lt.s32.totalorder %v906, 0
      %v951 = vsub.s32 0, %v906
      %v952 = vsel %vm950, %v951, %v906
      %v953 = vshrl.u32 %v952, 4
      %v954 = vand.u32 %v952, 15
      %v955 = vsub.s32 0, %v954
      %v956 = vsel %vm950, %v955, %v954
      %vm957 = vcmp.lt.s32.totalorder %v907, 0
      %v958 = vsub.s32 0, %v907
      %v959 = vsel %vm957, %v958, %v907
      %v960 = vshrl.u32 %v959, 4
      %v961 = vand.u32 %v959, 15
      %v962 = vsub.s32 0, %v961
      %v963 = vsel %vm957, %v962, %v961
      %vm964 = vcmp.lt.s32.totalorder %v908, 0
      %v965 = vsub.s32 0, %v908
      %v966 = vsel %vm964, %v965, %v908
      %v967 = vshrl.u32 %v966, 4
      %v968 = vand.u32 %v966, 15
      %v969 = vsub.s32 0, %v968
      %v970 = vsel %vm964, %v969, %v968
      %vm971 = vcmp.lt.s32.totalorder %v909, 0
      %v972 = vsub.s32 0, %v909
      %v973 = vsel %vm971, %v972, %v909
      %v974 = vshrl.u32 %v973, 4
      %v975 = vand.u32 %v973, 15
      %v976 = vsub.s32 0, %v975
      %v977 = vsel %vm971, %v976, %v975
      %vm978 = vcmp.lt.s32.totalorder %v910, 0
      %v979 = vsub.s32 0, %v910
      %v980 = vsel %vm978, %v979, %v910
      %v981 = vshrl.u32 %v980, 4
      %v982 = vand.u32 %v980, 15
      %v983 = vsub.s32 0, %v982
      %v984 = vsel %vm978, %v983, %v982
      %vm985 = vcmp.lt.s32.totalorder %v911, 0
      %v986 = vsub.s32 0, %v911
      %v987 = vsel %vm985, %v986, %v911
      %v988 = vshrl.u32 %v987, 4
      %v989 = vand.u32 %v987, 15
      %v990 = vsub.s32 0, %v989
      %v991 = vsel %vm985, %v990, %v989
      %vm992 = vcmp.lt.s32.totalorder %v912, 0
      %v993 = vsub.s32 0, %v912
      %v994 = vsel %vm992, %v993, %v912
      %v995 = vshrl.u32 %v994, 4
      %v996 = vand.u32 %v994, 15
      %v997 = vsub.s32 0, %v996
      %v998 = vsel %vm992, %v997, %v996
      %vm999 = vcmp.lt.s32.totalorder %v913, 0
      %v1000 = vsub.s32 0, %v913
      %v1001 = vsel %vm999, %v1000, %v913
      %v1002 = vshrl.u32 %v1001, 4
      %v1003 = vand.u32 %v1001, 15
      %v1004 = vsub.s32 0, %v1003
      %v1005 = vsel %vm999, %v1004, %v1003
      %vm1006 = vcmp.lt.s32.totalorder %v914, 0
      %v1007 = vsub.s32 0, %v914
      %v1008 = vsel %vm1006, %v1007, %v914
      %v1009 = vshrl.u32 %v1008, 4
      %v1010 = vand.u32 %v1008, 15
      %v1011 = vsub.s32 0, %v1010
      %v1012 = vsel %vm1006, %v1011, %v1010
      %vm1013 = vcmp.lt.s32.totalorder %v915, 0
      %v1014 = vsub.s32 0, %v915
      %v1015 = vsel %vm1013, %v1014, %v915
      %v1016 = vshrl.u32 %v1015, 4
      %v1017 = vand.u32 %v1015, 15
      %v1018 = vsub.s32 0, %v1017
      %v1019 = vsel %vm1013, %v1018, %v1017
      %vm1020 = vcmp.lt.s32.totalorder %v916, 0
      %v1021 = vsub.s32 0, %v916
      %v1022 = vsel %vm1020, %v1021, %v916
      %v1023 = vshrl.u32 %v1022, 4
      %v1024 = vand.u32 %v1022, 15
      %v1025 = vsub.s32 0, %v1024
      %v1026 = vsel %vm1020, %v1025, %v1024
      %vm1027 = vcmp.lt.s32.totalorder %v917, 0
      %v1028 = vsub.s32 0, %v917
      %v1029 = vsel %vm1027, %v1028, %v917
      %v1030 = vshrl.u32 %v1029, 4
      %v1031 = vand.u32 %v1029, 15
      %v1032 = vsub.s32 0, %v1031
      %v1033 = vsel %vm1027, %v1032, %v1031
      %vm1034 = vcmp.lt.s32.totalorder %v918, 0
      %v1035 = vsub.s32 0, %v918
      %v1036 = vsel %vm1034, %v1035, %v918
      %v1037 = vshrl.u32 %v1036, 4
      %v1038 = vand.u32 %v1036, 15
      %v1039 = vsub.s32 0, %v1038
      %v1040 = vsel %vm1034, %v1039, %v1038
      %vm1041 = vcmp.lt.s32.totalorder %v919, 0
      %v1042 = vsub.s32 0, %v919
      %v1043 = vsel %vm1041, %v1042, %v919
      %v1044 = vshrl.u32 %v1043, 4
      %v1045 = vand.u32 %v1043, 15
      %v1046 = vsub.s32 0, %v1045
      %v1047 = vsel %vm1041, %v1046, %v1045
      %vm1048 = vcmp.lt.s32.totalorder %v920, 0
      %v1049 = vsub.s32 0, %v920
      %v1050 = vsel %vm1048, %v1049, %v920
      %v1051 = vshrl.u32 %v1050, 4
      %v1052 = vand.u32 %v1050, 15
      %v1053 = vsub.s32 0, %v1052
      %v1054 = vsel %vm1048, %v1053, %v1052
      %vm1055 = vcmp.lt.s32.totalorder %v921, 0
      %v1056 = vsub.s32 0, %v921
      %v1057 = vsel %vm1055, %v1056, %v921
      %v1058 = vshrl.u32 %v1057, 4
      %v1059 = vand.u32 %v1057, 15
      %v1060 = vsub.s32 0, %v1059
      %v1061 = vsel %vm1055, %v1060, %v1059
      %vm1062 = vcmp.lt.s32.totalorder %v922, 0
      %v1063 = vsub.s32 0, %v922
      %v1064 = vsel %vm1062, %v1063, %v922
      %v1065 = vshrl.u32 %v1064, 4
      %v1066 = vand.u32 %v1064, 15
      %v1067 = vsub.s32 0, %v1066
      %v1068 = vsel %vm1062, %v1067, %v1066
      %vm1069 = vcmp.lt.s32.totalorder %v923, 0
      %v1070 = vsub.s32 0, %v923
      %v1071 = vsel %vm1069, %v1070, %v923
      %v1072 = vshrl.u32 %v1071, 4
      %v1073 = vand.u32 %v1071, 15
      %v1074 = vsub.s32 0, %v1073
      %v1075 = vsel %vm1069, %v1074, %v1073
      %vm1076 = vcmp.lt.s32.totalorder %v924, 0
      %v1077 = vsub.s32 0, %v924
      %v1078 = vsel %vm1076, %v1077, %v924
      %v1079 = vshrl.u32 %v1078, 4
      %v1080 = vand.u32 %v1078, 15
      %v1081 = vsub.s32 0, %v1080
      %v1082 = vsel %vm1076, %v1081, %v1080
      %vm1083 = vcmp.lt.s32.totalorder %v925, 0
      %v1084 = vsub.s32 0, %v925
      %v1085 = vsel %vm1083, %v1084, %v925
      %v1086 = vshrl.u32 %v1085, 4
      %v1087 = vand.u32 %v1085, 15
      %v1088 = vsub.s32 0, %v1087
      %v1089 = vsel %vm1083, %v1088, %v1087
      %vm1090 = vcmp.lt.s32.totalorder %v926, 0
      %v1091 = vsub.s32 0, %v926
      %v1092 = vsel %vm1090, %v1091, %v926
      %v1093 = vshrl.u32 %v1092, 4
      %v1094 = vand.u32 %v1092, 15
      %v1095 = vsub.s32 0, %v1094
      %v1096 = vsel %vm1090, %v1095, %v1094
      %vm1097 = vcmp.lt.s32.totalorder %v927, 0
      %v1098 = vsub.s32 0, %v927
      %v1099 = vsel %vm1097, %v1098, %v927
      %v1100 = vshrl.u32 %v1099, 4
      %v1101 = vand.u32 %v1099, 15
      %v1102 = vsub.s32 0, %v1101
      %v1103 = vsel %vm1097, %v1102, %v1101
      %vm1104 = vcmp.lt.s32.totalorder %v928, 0
      %v1105 = vsub.s32 0, %v928
      %v1106 = vsel %vm1104, %v1105, %v928
      %v1107 = vshrl.u32 %v1106, 4
      %v1108 = vand.u32 %v1106, 15
      %v1109 = vsub.s32 0, %v1108
      %v1110 = vsel %vm1104, %v1109, %v1108
      %vm1111 = vcmp.lt.s32.totalorder %v929, 0
      %v1112 = vsub.s32 0, %v929
      %v1113 = vsel %vm1111, %v1112, %v929
      %v1114 = vshrl.u32 %v1113, 4
      %v1115 = vand.u32 %v1113, 15
      %v1116 = vsub.s32 0, %v1115
      %v1117 = vsel %vm1111, %v1116, %v1115
      %vm1118 = vcmp.lt.s32.totalorder %v930, 0
      %v1119 = vsub.s32 0, %v930
      %v1120 = vsel %vm1118, %v1119, %v930
      %v1121 = vshrl.u32 %v1120, 4
      %v1122 = vand.u32 %v1120, 15
      %v1123 = vsub.s32 0, %v1122
      %v1124 = vsel %vm1118, %v1123, %v1122
      %vm1125 = vcmp.lt.s32.totalorder %v931, 0
      %v1126 = vsub.s32 0, %v931
      %v1127 = vsel %vm1125, %v1126, %v931
      %v1128 = vshrl.u32 %v1127, 4
      %v1129 = vand.u32 %v1127, 15
      %v1130 = vsub.s32 0, %v1129
      %v1131 = vsel %vm1125, %v1130, %v1129
      %vm1132 = vcmp.lt.s32.totalorder %v932, 0
      %v1133 = vsub.s32 0, %v932
      %v1134 = vsel %vm1132, %v1133, %v932
      %v1135 = vshrl.u32 %v1134, 4
      %v1136 = vand.u32 %v1134, 15
      %v1137 = vsub.s32 0, %v1136
      %v1138 = vsel %vm1132, %v1137, %v1136
      %vm1139 = vcmp.lt.s32.totalorder %v933, 0
      %v1140 = vsub.s32 0, %v933
      %v1141 = vsel %vm1139, %v1140, %v933
      %v1142 = vshrl.u32 %v1141, 4
      %v1143 = vand.u32 %v1141, 15
      %v1144 = vsub.s32 0, %v1143
      %v1145 = vsel %vm1139, %v1144, %v1143
      %vm1146 = vcmp.lt.s32.totalorder %v934, 0
      %v1147 = vsub.s32 0, %v934
      %v1148 = vsel %vm1146, %v1147, %v934
      %v1149 = vshrl.u32 %v1148, 4
      %v1150 = vand.u32 %v1148, 15
      %v1151 = vsub.s32 0, %v1150
      %v1152 = vsel %vm1146, %v1151, %v1150
      %vm1153 = vcmp.lt.s32.totalorder %v935, 0
      %v1154 = vsub.s32 0, %v935
      %v1155 = vsel %vm1153, %v1154, %v935
      %v1156 = vshrl.u32 %v1155, 4
      %v1157 = vand.u32 %v1155, 15
      %v1158 = vsub.s32 0, %v1157
      %v1159 = vsel %vm1153, %v1158, %v1157
      %vm1160 = vcmp.ne.s32.totalorder %v942, 0
      %vm1161 = vcmp.ne.s32.totalorder %v949, 0
      %vm1162 = vcmp.ne.s32.totalorder %v956, 0
      %vm1163 = vcmp.ne.s32.totalorder %v963, 0
      %vm1164 = vcmp.ne.s32.totalorder %v970, 0
      %vm1165 = vcmp.ne.s32.totalorder %v977, 0
      %vm1166 = vcmp.ne.s32.totalorder %v984, 0
      %vm1167 = vcmp.ne.s32.totalorder %v991, 0
      %vm1168 = vcmp.ne.s32.totalorder %v998, 0
      %vm1169 = vcmp.ne.s32.totalorder %v1005, 0
      %vm1170 = vcmp.ne.s32.totalorder %v1012, 0
      %vm1171 = vcmp.ne.s32.totalorder %v1019, 0
      %vm1172 = vcmp.ne.s32.totalorder %v1026, 0
      %vm1173 = vcmp.ne.s32.totalorder %v1033, 0
      %vm1174 = vcmp.ne.s32.totalorder %v1040, 0
      %vm1175 = vcmp.ne.s32.totalorder %v1047, 0
      %vm1176 = vcmp.ne.s32.totalorder %v1054, 0
      %vm1177 = vcmp.ne.s32.totalorder %v1061, 0
      %vm1178 = vcmp.ne.s32.totalorder %v1068, 0
      %vm1179 = vcmp.ne.s32.totalorder %v1075, 0
      %vm1180 = vcmp.ne.s32.totalorder %v1082, 0
      %vm1181 = vcmp.ne.s32.totalorder %v1089, 0
      %vm1182 = vcmp.ne.s32.totalorder %v1096, 0
      %vm1183 = vcmp.ne.s32.totalorder %v1103, 0
      %vm1184 = vcmp.ne.s32.totalorder %v1110, 0
      %vm1185 = vcmp.ne.s32.totalorder %v1117, 0
      %vm1186 = vcmp.ne.s32.totalorder %v1124, 0
      %vm1187 = vcmp.ne.s32.totalorder %v1131, 0
      %vm1188 = vcmp.ne.s32.totalorder %v1138, 0
      %vm1189 = vcmp.ne.s32.totalorder %v1145, 0
      %vm1190 = vcmp.ne.s32.totalorder %v1152, 0
      %vm1191 = vcmp.ne.s32.totalorder %v1159, 0
      %vm1192 = vcmp.lt.s32.totalorder %v942, 0
      %vm1193 = vcmp.lt.s32.totalorder %v949, 0
      %vm1194 = vcmp.lt.s32.totalorder %v956, 0
      %vm1195 = vcmp.lt.s32.totalorder %v963, 0
      %vm1196 = vcmp.lt.s32.totalorder %v970, 0
      %vm1197 = vcmp.lt.s32.totalorder %v977, 0
      %vm1198 = vcmp.lt.s32.totalorder %v984, 0
      %vm1199 = vcmp.lt.s32.totalorder %v991, 0
      %vm1200 = vcmp.lt.s32.totalorder %v998, 0
      %vm1201 = vcmp.lt.s32.totalorder %v1005, 0
      %vm1202 = vcmp.lt.s32.totalorder %v1012, 0
      %vm1203 = vcmp.lt.s32.totalorder %v1019, 0
      %vm1204 = vcmp.lt.s32.totalorder %v1026, 0
      %vm1205 = vcmp.lt.s32.totalorder %v1033, 0
      %vm1206 = vcmp.lt.s32.totalorder %v1040, 0
      %vm1207 = vcmp.lt.s32.totalorder %v1047, 0
      %vm1208 = vcmp.lt.s32.totalorder %v1054, 0
      %vm1209 = vcmp.lt.s32.totalorder %v1061, 0
      %vm1210 = vcmp.lt.s32.totalorder %v1068, 0
      %vm1211 = vcmp.lt.s32.totalorder %v1075, 0
      %vm1212 = vcmp.lt.s32.totalorder %v1082, 0
      %vm1213 = vcmp.lt.s32.totalorder %v1089, 0
      %vm1214 = vcmp.lt.s32.totalorder %v1096, 0
      %vm1215 = vcmp.lt.s32.totalorder %v1103, 0
      %vm1216 = vcmp.lt.s32.totalorder %v1110, 0
      %vm1217 = vcmp.lt.s32.totalorder %v1117, 0
      %vm1218 = vcmp.lt.s32.totalorder %v1124, 0
      %vm1219 = vcmp.lt.s32.totalorder %v1131, 0
      %vm1220 = vcmp.lt.s32.totalorder %v1138, 0
      %vm1221 = vcmp.lt.s32.totalorder %v1145, 0
      %vm1222 = vcmp.lt.s32.totalorder %v1152, 0
      %vm1223 = vcmp.lt.s32.totalorder %v1159, 0
      %vm1224 = vmand %vm1192, %vm1160
      %vm1225 = vmand %vm1193, %vm1161
      %vm1226 = vmand %vm1194, %vm1162
      %vm1227 = vmand %vm1195, %vm1163
      %vm1228 = vmand %vm1196, %vm1164
      %vm1229 = vmand %vm1197, %vm1165
      %vm1230 = vmand %vm1198, %vm1166
      %vm1231 = vmand %vm1199, %vm1167
      %vm1232 = vmand %vm1200, %vm1168
      %vm1233 = vmand %vm1201, %vm1169
      %vm1234 = vmand %vm1202, %vm1170
      %vm1235 = vmand %vm1203, %vm1171
      %vm1236 = vmand %vm1204, %vm1172
      %vm1237 = vmand %vm1205, %vm1173
      %vm1238 = vmand %vm1206, %vm1174
      %vm1239 = vmand %vm1207, %vm1175
      %vm1240 = vmand %vm1208, %vm1176
      %vm1241 = vmand %vm1209, %vm1177
      %vm1242 = vmand %vm1210, %vm1178
      %vm1243 = vmand %vm1211, %vm1179
      %vm1244 = vmand %vm1212, %vm1180
      %vm1245 = vmand %vm1213, %vm1181
      %vm1246 = vmand %vm1214, %vm1182
      %vm1247 = vmand %vm1215, %vm1183
      %vm1248 = vmand %vm1216, %vm1184
      %vm1249 = vmand %vm1217, %vm1185
      %vm1250 = vmand %vm1218, %vm1186
      %vm1251 = vmand %vm1219, %vm1187
      %vm1252 = vmand %vm1220, %vm1188
      %vm1253 = vmand %vm1221, %vm1189
      %vm1254 = vmand %vm1222, %vm1190
      %vm1255 = vmand %vm1223, %vm1191
      %v1256 = vadd.s32 %v942, 16
      %v1257 = vadd.s32 %v949, 16
      %v1258 = vadd.s32 %v956, 16
      %v1259 = vadd.s32 %v963, 16
      %v1260 = vadd.s32 %v970, 16
      %v1261 = vadd.s32 %v977, 16
      %v1262 = vadd.s32 %v984, 16
      %v1263 = vadd.s32 %v991, 16
      %v1264 = vadd.s32 %v998, 16
      %v1265 = vadd.s32 %v1005, 16
      %v1266 = vadd.s32 %v1012, 16
      %v1267 = vadd.s32 %v1019, 16
      %v1268 = vadd.s32 %v1026, 16
      %v1269 = vadd.s32 %v1033, 16
      %v1270 = vadd.s32 %v1040, 16
      %v1271 = vadd.s32 %v1047, 16
      %v1272 = vadd.s32 %v1054, 16
      %v1273 = vadd.s32 %v1061, 16
      %v1274 = vadd.s32 %v1068, 16
      %v1275 = vadd.s32 %v1075, 16
      %v1276 = vadd.s32 %v1082, 16
      %v1277 = vadd.s32 %v1089, 16
      %v1278 = vadd.s32 %v1096, 16
      %v1279 = vadd.s32 %v1103, 16
      %v1280 = vadd.s32 %v1110, 16
      %v1281 = vadd.s32 %v1117, 16
      %v1282 = vadd.s32 %v1124, 16
      %v1283 = vadd.s32 %v1131, 16
      %v1284 = vadd.s32 %v1138, 16
      %v1285 = vadd.s32 %v1145, 16
      %v1286 = vadd.s32 %v1152, 16
      %v1287 = vadd.s32 %v1159, 16
      %v1288 = vsel %vm1224, %v1256, %v942
      %v1289 = vsel %vm1225, %v1257, %v949
      %v1290 = vsel %vm1226, %v1258, %v956
      %v1291 = vsel %vm1227, %v1259, %v963
      %v1292 = vsel %vm1228, %v1260, %v970
      %v1293 = vsel %vm1229, %v1261, %v977
      %v1294 = vsel %vm1230, %v1262, %v984
      %v1295 = vsel %vm1231, %v1263, %v991
      %v1296 = vsel %vm1232, %v1264, %v998
      %v1297 = vsel %vm1233, %v1265, %v1005
      %v1298 = vsel %vm1234, %v1266, %v1012
      %v1299 = vsel %vm1235, %v1267, %v1019
      %v1300 = vsel %vm1236, %v1268, %v1026
      %v1301 = vsel %vm1237, %v1269, %v1033
      %v1302 = vsel %vm1238, %v1270, %v1040
      %v1303 = vsel %vm1239, %v1271, %v1047
      %v1304 = vsel %vm1240, %v1272, %v1054
      %v1305 = vsel %vm1241, %v1273, %v1061
      %v1306 = vsel %vm1242, %v1274, %v1068
      %v1307 = vsel %vm1243, %v1275, %v1075
      %v1308 = vsel %vm1244, %v1276, %v1082
      %v1309 = vsel %vm1245, %v1277, %v1089
      %v1310 = vsel %vm1246, %v1278, %v1096
      %v1311 = vsel %vm1247, %v1279, %v1103
      %v1312 = vsel %vm1248, %v1280, %v1110
      %v1313 = vsel %vm1249, %v1281, %v1117
      %v1314 = vsel %vm1250, %v1282, %v1124
      %v1315 = vsel %vm1251, %v1283, %v1131
      %v1316 = vsel %vm1252, %v1284, %v1138
      %v1317 = vsel %vm1253, %v1285, %v1145
      %v1318 = vsel %vm1254, %v1286, %v1152
      %v1319 = vsel %vm1255, %v1287, %v1159
      %vm1320 = vcmp.eq.s32.totalorder %v1288, 0
      %vm1321 = vcmp.eq.s32.totalorder %v1289, 0
      %vm1322 = vcmp.eq.s32.totalorder %v1290, 0
      %vm1323 = vcmp.eq.s32.totalorder %v1291, 0
      %vm1324 = vcmp.eq.s32.totalorder %v1292, 0
      %vm1325 = vcmp.eq.s32.totalorder %v1293, 0
      %vm1326 = vcmp.eq.s32.totalorder %v1294, 0
      %vm1327 = vcmp.eq.s32.totalorder %v1295, 0
      %vm1328 = vcmp.eq.s32.totalorder %v1296, 0
      %vm1329 = vcmp.eq.s32.totalorder %v1297, 0
      %vm1330 = vcmp.eq.s32.totalorder %v1298, 0
      %vm1331 = vcmp.eq.s32.totalorder %v1299, 0
      %vm1332 = vcmp.eq.s32.totalorder %v1300, 0
      %vm1333 = vcmp.eq.s32.totalorder %v1301, 0
      %vm1334 = vcmp.eq.s32.totalorder %v1302, 0
      %vm1335 = vcmp.eq.s32.totalorder %v1303, 0
      %vm1336 = vcmp.eq.s32.totalorder %v1304, 0
      %vm1337 = vcmp.eq.s32.totalorder %v1305, 0
      %vm1338 = vcmp.eq.s32.totalorder %v1306, 0
      %vm1339 = vcmp.eq.s32.totalorder %v1307, 0
      %vm1340 = vcmp.eq.s32.totalorder %v1308, 0
      %vm1341 = vcmp.eq.s32.totalorder %v1309, 0
      %vm1342 = vcmp.eq.s32.totalorder %v1310, 0
      %vm1343 = vcmp.eq.s32.totalorder %v1311, 0
      %vm1344 = vcmp.eq.s32.totalorder %v1312, 0
      %vm1345 = vcmp.eq.s32.totalorder %v1313, 0
      %vm1346 = vcmp.eq.s32.totalorder %v1314, 0
      %vm1347 = vcmp.eq.s32.totalorder %v1315, 0
      %vm1348 = vcmp.eq.s32.totalorder %v1316, 0
      %vm1349 = vcmp.eq.s32.totalorder %v1317, 0
      %vm1350 = vcmp.eq.s32.totalorder %v1318, 0
      %vm1351 = vcmp.eq.s32.totalorder %v1319, 0
      %v1352 = vrot.slane %v871, 7
      %v1353 = vrot.slane %v872, 7
      %v1354 = vrot.slane %v873, 7
      %v1355 = vrot.slane %v874, 7
      %v1356 = vrot.slane %v875, 7
      %v1357 = vrot.slane %v876, 7
      %v1358 = vrot.slane %v877, 7
      %v1359 = vrot.slane %v878, 7
      %v1360 = vrot.slane %v879, 7
      %v1361 = vrot.slane %v880, 7
      %v1362 = vrot.slane %v881, 7
      %v1363 = vrot.slane %v882, 7
      %v1364 = vrot.slane %v883, 7
      %v1365 = vrot.slane %v884, 7
      %v1366 = vrot.slane %v885, 7
      %v1367 = vrot.slane %v886, 7
      %v1368 = vrot.slane %v887, 7
      %v1369 = vrot.slane %v888, 7
      %v1370 = vrot.slane %v889, 7
      %v1371 = vrot.slane %v890, 7
      %v1372 = vrot.slane %v891, 7
      %v1373 = vrot.slane %v892, 7
      %v1374 = vrot.slane %v893, 7
      %v1375 = vrot.slane %v894, 7
      %v1376 = vrot.slane %v895, 7
      %v1377 = vrot.slane %v896, 7
      %v1378 = vrot.slane %v897, 7
      %v1379 = vrot.slane %v898, 7
      %v1380 = vrot.slane %v899, 7
      %v1381 = vrot.slane %v900, 7
      %v1382 = vrot.slane %v901, 7
      %v1383 = vrot.slane %v902, 7
      %vm1384 = vcmp.lt.s32.totalorder %v904, 1
      %v1385 = vsel %vm1384, %v1382, %v1383
      %v1386 = vsel %vm1384, %v1381, %v1382
      %v1387 = vsel %vm1384, %v1380, %v1381
      %v1388 = vsel %vm1384, %v1379, %v1380
      %v1389 = vsel %vm1384, %v1378, %v1379
      %v1390 = vsel %vm1384, %v1377, %v1378
      %v1391 = vsel %vm1384, %v1376, %v1377
      %v1392 = vsel %vm1384, %v1375, %v1376
      %v1393 = vsel %vm1384, %v1374, %v1375
      %v1394 = vsel %vm1384, %v1373, %v1374
      %v1395 = vsel %vm1384, %v1372, %v1373
      %v1396 = vsel %vm1384, %v1371, %v1372
      %v1397 = vsel %vm1384, %v1370, %v1371
      %v1398 = vsel %vm1384, %v1369, %v1370
      %v1399 = vsel %vm1384, %v1368, %v1369
      %v1400 = vsel %vm1384, %v1367, %v1368
      %v1401 = vsel %vm1384, %v1366, %v1367
      %v1402 = vsel %vm1384, %v1365, %v1366
      %v1403 = vsel %vm1384, %v1364, %v1365
      %v1404 = vsel %vm1384, %v1363, %v1364
      %v1405 = vsel %vm1384, %v1362, %v1363
      %v1406 = vsel %vm1384, %v1361, %v1362
      %v1407 = vsel %vm1384, %v1360, %v1361
      %v1408 = vsel %vm1384, %v1359, %v1360
      %v1409 = vsel %vm1384, %v1358, %v1359
      %v1410 = vsel %vm1384, %v1357, %v1358
      %v1411 = vsel %vm1384, %v1356, %v1357
      %v1412 = vsel %vm1384, %v1355, %v1356
      %v1413 = vsel %vm1384, %v1354, %v1355
      %v1414 = vsel %vm1384, %v1353, %v1354
      %v1415 = vsel %vm1384, %v1352, %v1353
      %v1416 = vsel %vm1384, %v1383, %v1352
      %v1417 = vsel %vm1320, 0.0, %v1416
      %v1418 = vsel %vm1321, 0.0, %v1415
      %v1419 = vsel %vm1322, 0.0, %v1414
      %v1420 = vsel %vm1323, 0.0, %v1413
      %v1421 = vsel %vm1324, 0.0, %v1412
      %v1422 = vsel %vm1325, 0.0, %v1411
      %v1423 = vsel %vm1326, 0.0, %v1410
      %v1424 = vsel %vm1327, 0.0, %v1409
      %v1425 = vsel %vm1328, 0.0, %v1408
      %v1426 = vsel %vm1329, 0.0, %v1407
      %v1427 = vsel %vm1330, 0.0, %v1406
      %v1428 = vsel %vm1331, 0.0, %v1405
      %v1429 = vsel %vm1332, 0.0, %v1404
      %v1430 = vsel %vm1333, 0.0, %v1403
      %v1431 = vsel %vm1334, 0.0, %v1402
      %v1432 = vsel %vm1335, 0.0, %v1401
      %v1433 = vsel %vm1336, 0.0, %v1400
      %v1434 = vsel %vm1337, 0.0, %v1399
      %v1435 = vsel %vm1338, 0.0, %v1398
      %v1436 = vsel %vm1339, 0.0, %v1397
      %v1437 = vsel %vm1340, 0.0, %v1396
      %v1438 = vsel %vm1341, 0.0, %v1395
      %v1439 = vsel %vm1342, 0.0, %v1394
      %v1440 = vsel %vm1343, 0.0, %v1393
      %v1441 = vsel %vm1344, 0.0, %v1392
      %v1442 = vsel %vm1345, 0.0, %v1391
      %v1443 = vsel %vm1346, 0.0, %v1390
      %v1444 = vsel %vm1347, 0.0, %v1389
      %v1445 = vsel %vm1348, 0.0, %v1388
      %v1446 = vsel %vm1349, 0.0, %v1387
      %v1447 = vsel %vm1350, 0.0, %v1386
      %v1448 = vsel %vm1351, 0.0, %v1385
      %vm1449 = vcmp.eq.s32.totalorder %v1288, 15
      %vm1450 = vcmp.eq.s32.totalorder %v1289, 15
      %vm1451 = vcmp.eq.s32.totalorder %v1290, 15
      %vm1452 = vcmp.eq.s32.totalorder %v1291, 15
      %vm1453 = vcmp.eq.s32.totalorder %v1292, 15
      %vm1454 = vcmp.eq.s32.totalorder %v1293, 15
      %vm1455 = vcmp.eq.s32.totalorder %v1294, 15
      %vm1456 = vcmp.eq.s32.totalorder %v1295, 15
      %vm1457 = vcmp.eq.s32.totalorder %v1296, 15
      %vm1458 = vcmp.eq.s32.totalorder %v1297, 15
      %vm1459 = vcmp.eq.s32.totalorder %v1298, 15
      %vm1460 = vcmp.eq.s32.totalorder %v1299, 15
      %vm1461 = vcmp.eq.s32.totalorder %v1300, 15
      %vm1462 = vcmp.eq.s32.totalorder %v1301, 15
      %vm1463 = vcmp.eq.s32.totalorder %v1302, 15
      %vm1464 = vcmp.eq.s32.totalorder %v1303, 15
      %vm1465 = vcmp.eq.s32.totalorder %v1304, 15
      %vm1466 = vcmp.eq.s32.totalorder %v1305, 15
      %vm1467 = vcmp.eq.s32.totalorder %v1306, 15
      %vm1468 = vcmp.eq.s32.totalorder %v1307, 15
      %vm1469 = vcmp.eq.s32.totalorder %v1308, 15
      %vm1470 = vcmp.eq.s32.totalorder %v1309, 15
      %vm1471 = vcmp.eq.s32.totalorder %v1310, 15
      %vm1472 = vcmp.eq.s32.totalorder %v1311, 15
      %vm1473 = vcmp.eq.s32.totalorder %v1312, 15
      %vm1474 = vcmp.eq.s32.totalorder %v1313, 15
      %vm1475 = vcmp.eq.s32.totalorder %v1314, 15
      %vm1476 = vcmp.eq.s32.totalorder %v1315, 15
      %vm1477 = vcmp.eq.s32.totalorder %v1316, 15
      %vm1478 = vcmp.eq.s32.totalorder %v1317, 15
      %vm1479 = vcmp.eq.s32.totalorder %v1318, 15
      %vm1480 = vcmp.eq.s32.totalorder %v1319, 15
      %v1481 = vrot.slane %v871, 1
      %v1482 = vrot.slane %v872, 1
      %v1483 = vrot.slane %v873, 1
      %v1484 = vrot.slane %v874, 1
      %v1485 = vrot.slane %v875, 1
      %v1486 = vrot.slane %v876, 1
      %v1487 = vrot.slane %v877, 1
      %v1488 = vrot.slane %v878, 1
      %v1489 = vrot.slane %v879, 1
      %v1490 = vrot.slane %v880, 1
      %v1491 = vrot.slane %v881, 1
      %v1492 = vrot.slane %v882, 1
      %v1493 = vrot.slane %v883, 1
      %v1494 = vrot.slane %v884, 1
      %v1495 = vrot.slane %v885, 1
      %v1496 = vrot.slane %v886, 1
      %v1497 = vrot.slane %v887, 1
      %v1498 = vrot.slane %v888, 1
      %v1499 = vrot.slane %v889, 1
      %v1500 = vrot.slane %v890, 1
      %v1501 = vrot.slane %v891, 1
      %v1502 = vrot.slane %v892, 1
      %v1503 = vrot.slane %v893, 1
      %v1504 = vrot.slane %v894, 1
      %v1505 = vrot.slane %v895, 1
      %v1506 = vrot.slane %v896, 1
      %v1507 = vrot.slane %v897, 1
      %v1508 = vrot.slane %v898, 1
      %v1509 = vrot.slane %v899, 1
      %v1510 = vrot.slane %v900, 1
      %v1511 = vrot.slane %v901, 1
      %v1512 = vrot.slane %v902, 1
      %vm1513 = vcmp.lt.s32.totalorder %v904, 7
      %v1514 = vsel %vm1513, %v1511, %v1512
      %v1515 = vsel %vm1513, %v1510, %v1511
      %v1516 = vsel %vm1513, %v1509, %v1510
      %v1517 = vsel %vm1513, %v1508, %v1509
      %v1518 = vsel %vm1513, %v1507, %v1508
      %v1519 = vsel %vm1513, %v1506, %v1507
      %v1520 = vsel %vm1513, %v1505, %v1506
      %v1521 = vsel %vm1513, %v1504, %v1505
      %v1522 = vsel %vm1513, %v1503, %v1504
      %v1523 = vsel %vm1513, %v1502, %v1503
      %v1524 = vsel %vm1513, %v1501, %v1502
      %v1525 = vsel %vm1513, %v1500, %v1501
      %v1526 = vsel %vm1513, %v1499, %v1500
      %v1527 = vsel %vm1513, %v1498, %v1499
      %v1528 = vsel %vm1513, %v1497, %v1498
      %v1529 = vsel %vm1513, %v1496, %v1497
      %v1530 = vsel %vm1513, %v1495, %v1496
      %v1531 = vsel %vm1513, %v1494, %v1495
      %v1532 = vsel %vm1513, %v1493, %v1494
      %v1533 = vsel %vm1513, %v1492, %v1493
      %v1534 = vsel %vm1513, %v1491, %v1492
      %v1535 = vsel %vm1513, %v1490, %v1491
      %v1536 = vsel %vm1513, %v1489, %v1490
      %v1537 = vsel %vm1513, %v1488, %v1489
      %v1538 = vsel %vm1513, %v1487, %v1488
      %v1539 = vsel %vm1513, %v1486, %v1487
      %v1540 = vsel %vm1513, %v1485, %v1486
      %v1541 = vsel %vm1513, %v1484, %v1485
      %v1542 = vsel %vm1513, %v1483, %v1484
      %v1543 = vsel %vm1513, %v1482, %v1483
      %v1544 = vsel %vm1513, %v1481, %v1482
      %v1545 = vsel %vm1513, %v1512, %v1481
      %v1546 = vsel %vm1449, 0.0, %v1544
      %v1547 = vsel %vm1450, 0.0, %v1543
      %v1548 = vsel %vm1451, 0.0, %v1542
      %v1549 = vsel %vm1452, 0.0, %v1541
      %v1550 = vsel %vm1453, 0.0, %v1540
      %v1551 = vsel %vm1454, 0.0, %v1539
      %v1552 = vsel %vm1455, 0.0, %v1538
      %v1553 = vsel %vm1456, 0.0, %v1537
      %v1554 = vsel %vm1457, 0.0, %v1536
      %v1555 = vsel %vm1458, 0.0, %v1535
      %v1556 = vsel %vm1459, 0.0, %v1534
      %v1557 = vsel %vm1460, 0.0, %v1533
      %v1558 = vsel %vm1461, 0.0, %v1532
      %v1559 = vsel %vm1462, 0.0, %v1531
      %v1560 = vsel %vm1463, 0.0, %v1530
      %v1561 = vsel %vm1464, 0.0, %v1529
      %v1562 = vsel %vm1465, 0.0, %v1528
      %v1563 = vsel %vm1466, 0.0, %v1527
      %v1564 = vsel %vm1467, 0.0, %v1526
      %v1565 = vsel %vm1468, 0.0, %v1525
      %v1566 = vsel %vm1469, 0.0, %v1524
      %v1567 = vsel %vm1470, 0.0, %v1523
      %v1568 = vsel %vm1471, 0.0, %v1522
      %v1569 = vsel %vm1472, 0.0, %v1521
      %v1570 = vsel %vm1473, 0.0, %v1520
      %v1571 = vsel %vm1474, 0.0, %v1519
      %v1572 = vsel %vm1475, 0.0, %v1518
      %v1573 = vsel %vm1476, 0.0, %v1517
      %v1574 = vsel %vm1477, 0.0, %v1516
      %v1575 = vsel %vm1478, 0.0, %v1515
      %v1576 = vsel %vm1479, 0.0, %v1514
      %v1577 = vsel %vm1480, 0.0, %v1545
      %1610 = vrot.lane.b32.xlu0 %v871, 16
      %v1611 = vpop.permute.xlu0 %1610
      %1612 = vrot.lane.b32.xlu0 %v872, 16
      %v1613 = vpop.permute.xlu0 %1612
      %1614 = vrot.lane.b32.xlu0 %v873, 16
      %v1615 = vpop.permute.xlu0 %1614
      %1616 = vrot.lane.b32.xlu0 %v874, 16
      %v1617 = vpop.permute.xlu0 %1616
      %1618 = vrot.lane.b32.xlu0 %v875, 16
      %v1619 = vpop.permute.xlu0 %1618
      %1620 = vrot.lane.b32.xlu0 %v876, 16
      %v1621 = vpop.permute.xlu0 %1620
      %1622 = vrot.lane.b32.xlu0 %v877, 16
      %v1623 = vpop.permute.xlu0 %1622
      %1624 = vrot.lane.b32.xlu0 %v878, 16
      %v1625 = vpop.permute.xlu0 %1624
      %1626 = vrot.lane.b32.xlu0 %v879, 16
      %v1627 = vpop.permute.xlu0 %1626
      %1628 = vrot.lane.b32.xlu0 %v880, 16
      %v1629 = vpop.permute.xlu0 %1628
      %1630 = vrot.lane.b32.xlu0 %v881, 16
      %v1631 = vpop.permute.xlu0 %1630
      %1632 = vrot.lane.b32.xlu0 %v882, 16
      %v1633 = vpop.permute.xlu0 %1632
      %1634 = vrot.lane.b32.xlu0 %v883, 16
      %v1635 = vpop.permute.xlu0 %1634
      %1636 = vrot.lane.b32.xlu0 %v884, 16
      %v1637 = vpop.permute.xlu0 %1636
      %1638 = vrot.lane.b32.xlu0 %v885, 16
      %v1639 = vpop.permute.xlu0 %1638
      %1640 = vrot.lane.b32.xlu0 %v886, 16
      %v1641 = vpop.permute.xlu0 %1640
      %1642 = vrot.lane.b32.xlu0 %v887, 16
      %v1643 = vpop.permute.xlu0 %1642
      %1644 = vrot.lane.b32.xlu0 %v888, 16
      %v1645 = vpop.permute.xlu0 %1644
      %1646 = vrot.lane.b32.xlu0 %v889, 16
      %v1647 = vpop.permute.xlu0 %1646
      %1648 = vrot.lane.b32.xlu0 %v890, 16
      %v1649 = vpop.permute.xlu0 %1648
      %1650 = vrot.lane.b32.xlu0 %v891, 16
      %v1651 = vpop.permute.xlu0 %1650
      %1652 = vrot.lane.b32.xlu0 %v892, 16
      %v1653 = vpop.permute.xlu0 %1652
      %1654 = vrot.lane.b32.xlu0 %v893, 16
      %v1655 = vpop.permute.xlu0 %1654
      %1656 = vrot.lane.b32.xlu0 %v894, 16
      %v1657 = vpop.permute.xlu0 %1656
      %1658 = vrot.lane.b32.xlu0 %v895, 16
      %v1659 = vpop.permute.xlu0 %1658
      %1660 = vrot.lane.b32.xlu0 %v896, 16
      %v1661 = vpop.permute.xlu0 %1660
      %1662 = vrot.lane.b32.xlu0 %v897, 16
      %v1663 = vpop.permute.xlu0 %1662
      %1664 = vrot.lane.b32.xlu0 %v898, 16
      %v1665 = vpop.permute.xlu0 %1664
      %1666 = vrot.lane.b32.xlu0 %v899, 16
      %v1667 = vpop.permute.xlu0 %1666
      %1668 = vrot.lane.b32.xlu0 %v900, 16
      %v1669 = vpop.permute.xlu0 %1668
      %1670 = vrot.lane.b32.xlu0 %v901, 16
      %v1671 = vpop.permute.xlu0 %1670
      %1672 = vrot.lane.b32.xlu0 %v902, 16
      %v1673 = vpop.permute.xlu0 %1672
      %1738 = vrot.lane.b32.xlu0 %v1546, 32
      %v1739 = vpop.permute.xlu0 %1738
      %1740 = vrot.lane.b32.xlu0 %v1547, 32
      %v1741 = vpop.permute.xlu0 %1740
      %1742 = vrot.lane.b32.xlu0 %v1548, 32
      %v1743 = vpop.permute.xlu0 %1742
      %1744 = vrot.lane.b32.xlu0 %v1549, 32
      %v1745 = vpop.permute.xlu0 %1744
      %1746 = vrot.lane.b32.xlu0 %v1550, 32
      %v1747 = vpop.permute.xlu0 %1746
      %1748 = vrot.lane.b32.xlu0 %v1551, 32
      %v1749 = vpop.permute.xlu0 %1748
      %1750 = vrot.lane.b32.xlu0 %v1552, 32
      %v1751 = vpop.permute.xlu0 %1750
      %1752 = vrot.lane.b32.xlu0 %v1553, 32
      %v1753 = vpop.permute.xlu0 %1752
      %1754 = vrot.lane.b32.xlu0 %v1554, 32
      %v1755 = vpop.permute.xlu0 %1754
      %1756 = vrot.lane.b32.xlu0 %v1555, 32
      %v1757 = vpop.permute.xlu0 %1756
      %1758 = vrot.lane.b32.xlu0 %v1556, 32
      %v1759 = vpop.permute.xlu0 %1758
      %1760 = vrot.lane.b32.xlu0 %v1557, 32
      %v1761 = vpop.permute.xlu0 %1760
      %1762 = vrot.lane.b32.xlu0 %v1558, 32
      %v1763 = vpop.permute.xlu0 %1762
      %1764 = vrot.lane.b32.xlu0 %v1559, 32
      %v1765 = vpop.permute.xlu0 %1764
      %1766 = vrot.lane.b32.xlu0 %v1560, 32
      %v1767 = vpop.permute.xlu0 %1766
      %1768 = vrot.lane.b32.xlu0 %v1561, 32
      %v1769 = vpop.permute.xlu0 %1768
      %1770 = vrot.lane.b32.xlu0 %v1562, 32
      %v1771 = vpop.permute.xlu0 %1770
      %1772 = vrot.lane.b32.xlu0 %v1563, 32
      %v1773 = vpop.permute.xlu0 %1772
      %1774 = vrot.lane.b32.xlu0 %v1564, 32
      %v1775 = vpop.permute.xlu0 %1774
      %1776 = vrot.lane.b32.xlu0 %v1565, 32
      %v1777 = vpop.permute.xlu0 %1776
      %1778 = vrot.lane.b32.xlu0 %v1566, 32
      %v1779 = vpop.permute.xlu0 %1778
      %1780 = vrot.lane.b32.xlu0 %v1567, 32
      %v1781 = vpop.permute.xlu0 %1780
      %1782 = vrot.lane.b32.xlu0 %v1568, 32
      %v1783 = vpop.permute.xlu0 %1782
      %1784 = vrot.lane.b32.xlu0 %v1569, 32
      %v1785 = vpop.permute.xlu0 %1784
      %1786 = vrot.lane.b32.xlu0 %v1570, 32
      %v1787 = vpop.permute.xlu0 %1786
      %1788 = vrot.lane.b32.xlu0 %v1571, 32
      %v1789 = vpop.permute.xlu0 %1788
      %1790 = vrot.lane.b32.xlu0 %v1572, 32
      %v1791 = vpop.permute.xlu0 %1790
      %1792 = vrot.lane.b32.xlu0 %v1573, 32
      %v1793 = vpop.permute.xlu0 %1792
      %1794 = vrot.lane.b32.xlu0 %v1574, 32
      %v1795 = vpop.permute.xlu0 %1794
      %1796 = vrot.lane.b32.xlu0 %v1575, 32
      %v1797 = vpop.permute.xlu0 %1796
      %1798 = vrot.lane.b32.xlu0 %v1576, 32
      %v1799 = vpop.permute.xlu0 %1798
      %1800 = vrot.lane.b32.xlu0 %v1577, 32
      %v1801 = vpop.permute.xlu0 %1800
      %vm1834 = vcmask 130048
      %v1835 = vsel %vm1834, %v1417, %v1611
      %v1836 = vsel %vm1834, %v1418, %v1613
      %v1837 = vsel %vm1834, %v1419, %v1615
      %v1838 = vsel %vm1834, %v1420, %v1617
      %v1839 = vsel %vm1834, %v1421, %v1619
      %v1840 = vsel %vm1834, %v1422, %v1621
      %v1841 = vsel %vm1834, %v1423, %v1623
      %v1842 = vsel %vm1834, %v1424, %v1625
      %v1843 = vsel %vm1834, %v1425, %v1627
      %v1844 = vsel %vm1834, %v1426, %v1629
      %v1845 = vsel %vm1834, %v1427, %v1631
      %v1846 = vsel %vm1834, %v1428, %v1633
      %v1847 = vsel %vm1834, %v1429, %v1635
      %v1848 = vsel %vm1834, %v1430, %v1637
      %v1849 = vsel %vm1834, %v1431, %v1639
      %v1850 = vsel %vm1834, %v1432, %v1641
      %v1851 = vsel %vm1834, %v1433, %v1643
      %v1852 = vsel %vm1834, %v1434, %v1645
      %v1853 = vsel %vm1834, %v1435, %v1647
      %v1854 = vsel %vm1834, %v1436, %v1649
      %v1855 = vsel %vm1834, %v1437, %v1651
      %v1856 = vsel %vm1834, %v1438, %v1653
      %v1857 = vsel %vm1834, %v1439, %v1655
      %v1858 = vsel %vm1834, %v1440, %v1657
      %v1859 = vsel %vm1834, %v1441, %v1659
      %v1860 = vsel %vm1834, %v1442, %v1661
      %v1861 = vsel %vm1834, %v1443, %v1663
      %v1862 = vsel %vm1834, %v1444, %v1665
      %v1863 = vsel %vm1834, %v1445, %v1667
      %v1864 = vsel %vm1834, %v1446, %v1669
      %v1865 = vsel %vm1834, %v1447, %v1671
      %v1866 = vsel %vm1834, %v1448, %v1673
      %vm1867 = vcmask 261120
      %v1868 = vsel %vm1867, %v1835, %v1739
      %v1869 = vsel %vm1867, %v1836, %v1741
      %v1870 = vsel %vm1867, %v1837, %v1743
      %v1871 = vsel %vm1867, %v1838, %v1745
      %v1872 = vsel %vm1867, %v1839, %v1747
      %v1873 = vsel %vm1867, %v1840, %v1749
      %v1874 = vsel %vm1867, %v1841, %v1751
      %v1875 = vsel %vm1867, %v1842, %v1753
      %v1876 = vsel %vm1867, %v1843, %v1755
      %v1877 = vsel %vm1867, %v1844, %v1757
      %v1878 = vsel %vm1867, %v1845, %v1759
      %v1879 = vsel %vm1867, %v1846, %v1761
      %v1880 = vsel %vm1867, %v1847, %v1763
      %v1881 = vsel %vm1867, %v1848, %v1765
      %v1882 = vsel %vm1867, %v1849, %v1767
      %v1883 = vsel %vm1867, %v1850, %v1769
      %v1884 = vsel %vm1867, %v1851, %v1771
      %v1885 = vsel %vm1867, %v1852, %v1773
      %v1886 = vsel %vm1867, %v1853, %v1775
      %v1887 = vsel %vm1867, %v1854, %v1777
      %v1888 = vsel %vm1867, %v1855, %v1779
      %v1889 = vsel %vm1867, %v1856, %v1781
      %v1890 = vsel %vm1867, %v1857, %v1783
      %v1891 = vsel %vm1867, %v1858, %v1785
      %v1892 = vsel %vm1867, %v1859, %v1787
      %v1893 = vsel %vm1867, %v1860, %v1789
      %v1894 = vsel %vm1867, %v1861, %v1791
      %v1895 = vsel %vm1867, %v1862, %v1793
      %v1896 = vsel %vm1867, %v1863, %v1795
      %v1897 = vsel %vm1867, %v1864, %v1797
      %v1898 = vsel %vm1867, %v1865, %v1799
      %v1899 = vsel %vm1867, %v1866, %v1801
      %vm1900 = vcmask 392192
      %1901 = vst.msk [vmem:[#allocation2] sm:$0xff] %vm1900, 0
      %1902 = vst.msk [vmem:[#allocation2 + $0x88] sm:$0xff] %vm1900, 0
      %v1903 = vpack.c.bf16 %v1869, %v1868
      %v1904 = vpack.c.bf16 %v1871, %v1870
      %v1905 = vpack.c.bf16 %v1873, %v1872
      %v1906 = vpack.c.bf16 %v1875, %v1874
      %v1907 = vpack.c.bf16 %v1877, %v1876
      %v1908 = vpack.c.bf16 %v1879, %v1878
      %v1909 = vpack.c.bf16 %v1881, %v1880
      %v1910 = vpack.c.bf16 %v1883, %v1882
      %v1911 = vpack.c.bf16 %v1885, %v1884
      %v1912 = vpack.c.bf16 %v1887, %v1886
      %v1913 = vpack.c.bf16 %v1889, %v1888
      %v1914 = vpack.c.bf16 %v1891, %v1890
      %v1915 = vpack.c.bf16 %v1893, %v1892
      %v1916 = vpack.c.bf16 %v1895, %v1894
      %v1917 = vpack.c.bf16 %v1897, %v1896
      %v1918 = vpack.c.bf16 %v1899, %v1898
      %1919 = vst.msk [vmem:[#allocation2 + $0x8] sm:$0xff] %vm1900, %v1903
      %1920 = vst.msk [vmem:[#allocation2 + $0x10] sm:$0xff] %vm1900, %v1904
      %1921 = vst.msk [vmem:[#allocation2 + $0x18] sm:$0xff] %vm1900, %v1905
      %1922 = vst.msk [vmem:[#allocation2 + $0x20] sm:$0xff] %vm1900, %v1906
      %1923 = vst.msk [vmem:[#allocation2 + $0x28] sm:$0xff] %vm1900, %v1907
      %1924 = vst.msk [vmem:[#allocation2 + $0x30] sm:$0xff] %vm1900, %v1908
      %1925 = vst.msk [vmem:[#allocation2 + $0x38] sm:$0xff] %vm1900, %v1909
      %1926 = vst.msk [vmem:[#allocation2 + $0x40] sm:$0xff] %vm1900, %v1910
      %1927 = vst.msk [vmem:[#allocation2 + $0x48] sm:$0xff] %vm1900, %v1911
      %1928 = vst.msk [vmem:[#allocation2 + $0x50] sm:$0xff] %vm1900, %v1912
      %1929 = vst.msk [vmem:[#allocation2 + $0x58] sm:$0xff] %vm1900, %v1913
      %1930 = vst.msk [vmem:[#allocation2 + $0x60] sm:$0xff] %vm1900, %v1914
      %1931 = vst.msk [vmem:[#allocation2 + $0x68] sm:$0xff] %vm1900, %v1915
      %1932 = vst.msk [vmem:[#allocation2 + $0x70] sm:$0xff] %vm1900, %v1916
      %1933 = vst.msk [vmem:[#allocation2 + $0x78] sm:$0xff] %vm1900, %v1917
      %1934 = vst.msk [vmem:[#allocation2 + $0x80] sm:$0xff] %vm1900, %v1918
      %v1935 = vld [vmem:[#allocation2] sm:$0xff]
      %v1936 = vld [vmem:[#allocation2 + $0x8] sm:$0xff]
      %v1937 = vld [vmem:[#allocation2 + $0x10] sm:$0xff]
      %v1938 = vld [vmem:[#allocation2 + $0x18] sm:$0xff]
      %v1939 = vld [vmem:[#allocation2 + $0x20] sm:$0xff]
      %v1940 = vld [vmem:[#allocation2 + $0x28] sm:$0xff]
      %v1941 = vld [vmem:[#allocation2 + $0x30] sm:$0xff]
      %v1942 = vld [vmem:[#allocation2 + $0x38] sm:$0xff]
      %v1943 = vld [vmem:[#allocation2 + $0x40] sm:$0xff]
      %v1944 = vld [vmem:[#allocation2 + $0x48] sm:$0xff]
      %v1945 = vld [vmem:[#allocation2 + $0x50] sm:$0xff]
      %v1946 = vld [vmem:[#allocation2 + $0x58] sm:$0xff]
      %v1947 = vld [vmem:[#allocation2 + $0x60] sm:$0xff]
      %v1948 = vld [vmem:[#allocation2 + $0x68] sm:$0xff]
      %v1949 = vld [vmem:[#allocation2 + $0x70] sm:$0xff]
      %v1950 = vld [vmem:[#allocation2 + $0x78] sm:$0xff]
      %v1951 = vld [vmem:[%s5] sm:$0xf]
      %v1952 = vld [vmem:[%s5 + $0x4] sm:$0xf]
      %v1953 = vld [vmem:[%s5 + $0x8] sm:$0xf]
      %v1954 = vld [vmem:[%s5 + $0xc] sm:$0xf]
      %v1955 = vld [vmem:[%s5 + $0x10] sm:$0xf]
      %v1956 = vld [vmem:[%s5 + $0x14] sm:$0xf]
      %v1957 = vld [vmem:[#allocation2 + $0x80] sm:$0xff]
      %s1958 = scalar_lea.vmem %s5, 24
      %v1959 = vld [vmem:[%s1958] sm:$0xf]
      %v1960 = vld [vmem:[%s1958 + $0x4] sm:$0xf]
      %v1961 = vld [vmem:[%s1958 + $0x8] sm:$0xf]
      %v1962 = vld [vmem:[%s1958 + $0xc] sm:$0xf]
      %v1963 = vld [vmem:[%s1958 + $0x10] sm:$0xf]
      %v1964 = vld [vmem:[%s1958 + $0x14] sm:$0xf]
      %v1971 = vunpack.c.l.b16 %v1959
      %v1972 = vunpack.c.l.b16 %v1960
      %v1973 = vunpack.c.l.b16 %v1961
      %v1974 = vunpack.c.l.b16 %v1962
      %v1975 = vunpack.c.l.b16 %v1963
      %v1976 = vunpack.c.l.b16 %v1964
      %v1977 = vpack.c.b16 %v1972, %v1971
      %v1978 = vpack.c.b16 %v1974, %v1973
      %v1979 = vpack.c.b16 %v1976, %v1975
      %v1984 = vsel %vm1900, %v1936, 0
      %v1987 = vsel %vm1900, %v1937, 0
      %v1990 = vsel %vm1900, %v1938, 0
      %v1993 = vsel %vm1900, %v1939, 0
      %v1996 = vsel %vm1900, %v1940, 0
      %v1999 = vsel %vm1900, %v1941, 0
      %v2002 = vsel %vm1900, %v1942, 0
      %v2005 = vsel %vm1900, %v1943, 0
      %v2008 = vsel %vm1900, %v1944, 0
      %v2011 = vsel %vm1900, %v1945, 0
      %v2014 = vsel %vm1900, %v1946, 0
      %v2017 = vsel %vm1900, %v1947, 0
      %v2020 = vsel %vm1900, %v1948, 0
      %v2023 = vsel %vm1900, %v1949, 0
      %v2026 = vsel %vm1900, %v1950, 0
      %v2029 = vsel %vm1900, %v1957, 0
      %2031 = vmatprep.subr.bf16.mxu0 0
      %2032 = vmatpush1.bf16.msra.mxu0 %v1977
      %2033 = vmatprep.subr.bf16.mxu0 0
      %2034 = vmatpush1.bf16.msra.mxu0 %v1978
      %2035 = vmatprep.subr.bf16.mxu0 0
      %2036 = vmatpush1.bf16.msra.mxu0 %v1979
      %2037 = vmatprep.subr.bf16.mxu0 0
      %2038 = vmatpush1.bf16.msra.mxu0 0
      %2039 = vmatprep.subr.bf16.mxu0 0
      %2040 = vmatpush1.bf16.msra.mxu0 0
      %2041 = vmatprep.subr.bf16.mxu0 0
      %2042 = vmatpush1.bf16.msra.mxu0 0
      %2043 = vmatprep.subr.bf16.mxu0 0
      %2044 = vmatpush1.bf16.msra.mxu0 0
      %2045 = vmatprep.subr.bf16.mxu0 0
      %2046 = vmatpush1.bf16.msra.mxu0 0
      %2047 = vmatprep.subr.bf16.mxu0 0
      %2048 = vmatpush1.bf16.msra.mxu0 0
      %2049 = vmatprep.subr.bf16.mxu0 0
      %2050 = vmatpush1.bf16.msra.mxu0 0
      %2051 = vmatprep.subr.bf16.mxu0 0
      %2052 = vmatpush1.bf16.msra.mxu0 0
      %2053 = vmatprep.subr.bf16.mxu0 0
      %2054 = vmatpush1.bf16.msra.mxu0 0
      %2055 = vmatprep.subr.bf16.mxu0 0
      %2056 = vmatpush1.bf16.msra.mxu0 0
      %2057 = vmatprep.subr.bf16.mxu0 0
      %2058 = vmatpush1.bf16.msra.mxu0 0
      %2059 = vmatprep.subr.bf16.mxu0 0
      %2060 = vmatpush1.bf16.msra.mxu0 0
      %2061 = vmatprep.subr.bf16.mxu0 0
      %2062 = vmatpush1.bf16.msra.mxu0 0
      %2063 = vmatprep.mubr.bf16.mxu0 0
      %2064 = vmatmul.mubr.bf16.gmra.mrb[0].mxu0 %v1984
      %v2065 = vpop.f32.mrb[0].mxu0
      %v2066 = vadd.f32 0.0, %v2065
      %v2067 = vpop.f32.mrb[0].mxu0
      %v2068 = vpop.f32.mrb[0].mxu0
      %v2069 = vadd.f32 0.0, %v2068
      %v2070 = vpop.f32.mrb[0].mxu0
      %2071 = vmatprep.mubr.bf16.mxu0 0
      %2072 = vmatmul.mubr.bf16.gmra.mrb[0].mxu0 %v1987
      %v2073 = vpop.f32.mrb[0].mxu0
      %v2074 = vadd.f32 0.0, %v2073
      %v2075 = vpop.f32.mrb[0].mxu0
      %v2076 = vpop.f32.mrb[0].mxu0
      %v2077 = vadd.f32 0.0, %v2076
      %v2078 = vpop.f32.mrb[0].mxu0
      %2079 = vmatprep.mubr.bf16.mxu0 0
      %2080 = vmatmul.mubr.bf16.gmra.mrb[0].mxu0 %v1990
      %v2081 = vpop.f32.mrb[0].mxu0
      %v2082 = vadd.f32 0.0, %v2081
      %v2083 = vpop.f32.mrb[0].mxu0
      %v2084 = vpop.f32.mrb[0].mxu0
      %v2085 = vadd.f32 0.0, %v2084
      %v2086 = vpop.f32.mrb[0].mxu0
      %2087 = vmatprep.mubr.bf16.mxu0 0
      %2088 = vmatmul.mubr.bf16.gmra.mrb[0].mxu0 %v1993
      %v2089 = vpop.f32.mrb[0].mxu0
      %v2090 = vadd.f32 0.0, %v2089
      %v2091 = vpop.f32.mrb[0].mxu0
      %v2092 = vpop.f32.mrb[0].mxu0
      %v2093 = vadd.f32 0.0, %v2092
      %v2094 = vpop.f32.mrb[0].mxu0
      %2095 = vmatprep.mubr.bf16.mxu0 0
      %2096 = vmatmul.mubr.bf16.gmra.mrb[0].mxu0 %v1996
      %v2097 = vpop.f32.mrb[0].mxu0
      %v2098 = vadd.f32 0.0, %v2097
      %v2099 = vpop.f32.mrb[0].mxu0
      %v2100 = vpop.f32.mrb[0].mxu0
      %v2101 = vadd.f32 0.0, %v2100
      %v2102 = vpop.f32.mrb[0].mxu0
      %2103 = vmatprep.mubr.bf16.mxu0 0
      %2104 = vmatmul.mubr.bf16.gmra.mrb[0].mxu0 %v1999
      %v2105 = vpop.f32.mrb[0].mxu0
      %v2106 = vadd.f32 0.0, %v2105
      %v2107 = vpop.f32.mrb[0].mxu0
      %v2108 = vpop.f32.mrb[0].mxu0
      %v2109 = vadd.f32 0.0, %v2108
      %v2110 = vpop.f32.mrb[0].mxu0
      %2111 = vmatprep.mubr.bf16.mxu0 0
      %2112 = vmatmul.mubr.bf16.gmra.mrb[0].mxu0 %v2002
      %v2113 = vpop.f32.mrb[0].mxu0
      %v2114 = vadd.f32 0.0, %v2113
      %v2115 = vpop.f32.mrb[0].mxu0
      %v2116 = vpop.f32.mrb[0].mxu0
      %v2117 = vadd.f32 0.0, %v2116
      %v2118 = vpop.f32.mrb[0].mxu0
      %2119 = vmatprep.mubr.bf16.mxu0 0
      %2120 = vmatmul.mubr.bf16.gmra.mrb[0].mxu0 %v2005
      %v2121 = vpop.f32.mrb[0].mxu0
      %v2122 = vadd.f32 0.0, %v2121
      %v2123 = vpop.f32.mrb[0].mxu0
      %v2124 = vpop.f32.mrb[0].mxu0
      %v2125 = vadd.f32 0.0, %v2124
      %v2126 = vpop.f32.mrb[0].mxu0
      %2127 = vmatprep.mubr.bf16.mxu0 0
      %2128 = vmatmul.mubr.bf16.gmra.mrb[0].mxu0 %v2008
      %v2129 = vpop.f32.mrb[0].mxu0
      %v2130 = vadd.f32 0.0, %v2129
      %v2131 = vpop.f32.mrb[0].mxu0
      %v2132 = vpop.f32.mrb[0].mxu0
      %v2133 = vadd.f32 0.0, %v2132
      %v2134 = vpop.f32.mrb[0].mxu0
      %2135 = vmatprep.mubr.bf16.mxu0 0
      %2136 = vmatmul.mubr.bf16.gmra.mrb[0].mxu0 %v2011
      %v2137 = vpop.f32.mrb[0].mxu0
      %v2138 = vadd.f32 0.0, %v2137
      %v2139 = vpop.f32.mrb[0].mxu0
      %v2140 = vpop.f32.mrb[0].mxu0
      %v2141 = vadd.f32 0.0, %v2140
      %v2142 = vpop.f32.mrb[0].mxu0
      %2143 = vmatprep.mubr.bf16.mxu0 0
      %2144 = vmatmul.mubr.bf16.gmra.mrb[0].mxu0 %v2014
      %v2145 = vpop.f32.mrb[0].mxu0
      %v2146 = vadd.f32 0.0, %v2145
      %v2147 = vpop.f32.mrb[0].mxu0
      %v2148 = vpop.f32.mrb[0].mxu0
      %v2149 = vadd.f32 0.0, %v2148
      %v2150 = vpop.f32.mrb[0].mxu0
      %2151 = vmatprep.mubr.bf16.mxu0 0
      %2152 = vmatmul.mubr.bf16.gmra.mrb[0].mxu0 %v2017
      %v2153 = vpop.f32.mrb[0].mxu0
      %v2154 = vadd.f32 0.0, %v2153
      %v2155 = vpop.f32.mrb[0].mxu0
      %v2156 = vpop.f32.mrb[0].mxu0
      %v2157 = vadd.f32 0.0, %v2156
      %v2158 = vpop.f32.mrb[0].mxu0
      %2159 = vmatprep.mubr.bf16.mxu0 0
      %2160 = vmatmul.mubr.bf16.gmra.mrb[0].mxu0 %v2020
      %v2161 = vpop.f32.mrb[0].mxu0
      %v2162 = vadd.f32 0.0, %v2161
      %v2163 = vpop.f32.mrb[0].mxu0
      %v2164 = vpop.f32.mrb[0].mxu0
      %v2165 = vadd.f32 0.0, %v2164
      %v2166 = vpop.f32.mrb[0].mxu0
      %2167 = vmatprep.mubr.bf16.mxu0 0
      %2168 = vmatmul.mubr.bf16.gmra.mrb[0].mxu0 %v2023
      %v2169 = vpop.f32.mrb[0].mxu0
      %v2170 = vadd.f32 0.0, %v2169
      %v2171 = vpop.f32.mrb[0].mxu0
      %v2172 = vpop.f32.mrb[0].mxu0
      %v2173 = vadd.f32 0.0, %v2172
      %v2174 = vpop.f32.mrb[0].mxu0
      %2175 = vmatprep.mubr.bf16.mxu0 0
      %2176 = vmatmul.mubr.bf16.gmra.mrb[0].mxu0 %v2026
      %v2177 = vpop.f32.mrb[0].mxu0
      %v2178 = vadd.f32 0.0, %v2177
      %v2179 = vpop.f32.mrb[0].mxu0
      %v2180 = vpop.f32.mrb[0].mxu0
      %v2181 = vadd.f32 0.0, %v2180
      %v2182 = vpop.f32.mrb[0].mxu0
      %2183 = vmatprep.mubr.bf16.mxu0 0
      %2184 = vmatmul.mubr.bf16.gmra.mrb[0].mxu0 %v2029
      %v2185 = vpop.f32.mrb[0].mxu0
      %v2186 = vadd.f32 0.0, %v2185
      %v2187 = vpop.f32.mrb[0].mxu0
      %v2188 = vpop.f32.mrb[0].mxu0
      %v2189 = vadd.f32 0.0, %v2188
      %v2190 = vpop.f32.mrb[0].mxu0
      %2191 = vdwg.mxu0
      %v2198 = vunpack.c.l.b16 %v1951
      %v2199 = vunpack.c.l.b16 %v1952
      %v2200 = vunpack.c.l.b16 %v1953
      %v2201 = vunpack.c.l.b16 %v1954
      %v2202 = vunpack.c.l.b16 %v1955
      %v2203 = vunpack.c.l.b16 %v1956
      %v2204 = vpack.c.b16 %v2199, %v2198
      %v2205 = vpack.c.b16 %v2201, %v2200
      %v2206 = vpack.c.b16 %v2203, %v2202
      %v2211 = vsel %vm1900, %v1935, 0
      %2213 = vmatprep.subr.bf16.mxu0 0
      %2214 = vmatpush1.bf16.msra.mxu0 %v2204
      %2215 = vmatprep.subr.bf16.mxu0 0
      %2216 = vmatpush1.bf16.msra.mxu0 %v2205
      %2217 = vmatprep.subr.bf16.mxu0 0
      %2218 = vmatpush1.bf16.msra.mxu0 %v2206
      %2219 = vmatprep.subr.bf16.mxu0 0
      %2220 = vmatpush1.bf16.msra.mxu0 0
      %2221 = vmatprep.subr.bf16.mxu0 0
      %2222 = vmatpush1.bf16.msra.mxu0 0
      %2223 = vmatprep.subr.bf16.mxu0 0
      %2224 = vmatpush1.bf16.msra.mxu0 0
      %2225 = vmatprep.subr.bf16.mxu0 0
      %2226 = vmatpush1.bf16.msra.mxu0 0
      %2227 = vmatprep.subr.bf16.mxu0 0
      %2228 = vmatpush1.bf16.msra.mxu0 0
      %2229 = vmatprep.subr.bf16.mxu0 0
      %2230 = vmatpush1.bf16.msra.mxu0 0
      %2231 = vmatprep.subr.bf16.mxu0 0
      %2232 = vmatpush1.bf16.msra.mxu0 0
      %2233 = vmatprep.subr.bf16.mxu0 0
      %2234 = vmatpush1.bf16.msra.mxu0 0
      %2235 = vmatprep.subr.bf16.mxu0 0
      %2236 = vmatpush1.bf16.msra.mxu0 0
      %2237 = vmatprep.subr.bf16.mxu0 0
      %2238 = vmatpush1.bf16.msra.mxu0 0
      %2239 = vmatprep.subr.bf16.mxu0 0
      %2240 = vmatpush1.bf16.msra.mxu0 0
      %2241 = vmatprep.subr.bf16.mxu0 0
      %2242 = vmatpush1.bf16.msra.mxu0 0
      %2243 = vmatprep.subr.bf16.mxu0 0
      %2244 = vmatpush1.bf16.msra.mxu0 0
      %2245 = vmatprep.mubr.bf16.mxu0 0
      %2246 = vmatmul.mubr.bf16.gmra.mrb[0].mxu0 %v2211
      %v2247 = vpop.f32.mrb[0].mxu0
      %v2248 = vadd.f32 %v2066, %v2247
      %v2249 = vpop.f32.mrb[0].mxu0
      %v2250 = vpop.f32.mrb[0].mxu0
      %v2251 = vadd.f32 %v2069, %v2250
      %v2252 = vpop.f32.mrb[0].mxu0
      %2253 = vmatprep.mubr.bf16.mxu0 0
      %2254 = vmatmul.mubr.bf16.gmra.mrb[0].mxu0 %v1984
      %v2255 = vpop.f32.mrb[0].mxu0
      %v2256 = vadd.f32 %v2074, %v2255
      %v2257 = vpop.f32.mrb[0].mxu0
      %v2258 = vpop.f32.mrb[0].mxu0
      %v2259 = vadd.f32 %v2077, %v2258
      %v2260 = vpop.f32.mrb[0].mxu0
      %2261 = vmatprep.mubr.bf16.mxu0 0
      %2262 = vmatmul.mubr.bf16.gmra.mrb[0].mxu0 %v1987
      %v2263 = vpop.f32.mrb[0].mxu0
      %v2264 = vadd.f32 %v2082, %v2263
      %v2265 = vpop.f32.mrb[0].mxu0
      %v2266 = vpop.f32.mrb[0].mxu0
      %v2267 = vadd.f32 %v2085, %v2266
      %v2268 = vpop.f32.mrb[0].mxu0
      %2269 = vmatprep.mubr.bf16.mxu0 0
      %2270 = vmatmul.mubr.bf16.gmra.mrb[0].mxu0 %v1990
      %v2271 = vpop.f32.mrb[0].mxu0
      %v2272 = vadd.f32 %v2090, %v2271
      %v2273 = vpop.f32.mrb[0].mxu0
      %v2274 = vpop.f32.mrb[0].mxu0
      %v2275 = vadd.f32 %v2093, %v2274
      %v2276 = vpop.f32.mrb[0].mxu0
      %2277 = vmatprep.mubr.bf16.mxu0 0
      %2278 = vmatmul.mubr.bf16.gmra.mrb[0].mxu0 %v1993
      %v2279 = vpop.f32.mrb[0].mxu0
      %v2280 = vadd.f32 %v2098, %v2279
      %v2281 = vpop.f32.mrb[0].mxu0
      %v2282 = vpop.f32.mrb[0].mxu0
      %v2283 = vadd.f32 %v2101, %v2282
      %v2284 = vpop.f32.mrb[0].mxu0
      %2285 = vmatprep.mubr.bf16.mxu0 0
      %2286 = vmatmul.mubr.bf16.gmra.mrb[0].mxu0 %v1996
      %v2287 = vpop.f32.mrb[0].mxu0
      %v2288 = vadd.f32 %v2106, %v2287
      %v2289 = vpop.f32.mrb[0].mxu0
      %v2290 = vpop.f32.mrb[0].mxu0
      %v2291 = vadd.f32 %v2109, %v2290
      %v2292 = vpop.f32.mrb[0].mxu0
      %2293 = vmatprep.mubr.bf16.mxu0 0
      %2294 = vmatmul.mubr.bf16.gmra.mrb[0].mxu0 %v1999
      %v2295 = vpop.f32.mrb[0].mxu0
      %v2296 = vadd.f32 %v2114, %v2295
      %v2297 = vpop.f32.mrb[0].mxu0
      %v2298 = vpop.f32.mrb[0].mxu0
      %v2299 = vadd.f32 %v2117, %v2298
      %v2300 = vpop.f32.mrb[0].mxu0
      %2301 = vmatprep.mubr.bf16.mxu0 0
      %2302 = vmatmul.mubr.bf16.gmra.mrb[0].mxu0 %v2002
      %v2303 = vpop.f32.mrb[0].mxu0
      %v2304 = vadd.f32 %v2122, %v2303
      %v2305 = vpop.f32.mrb[0].mxu0
      %v2306 = vpop.f32.mrb[0].mxu0
      %v2307 = vadd.f32 %v2125, %v2306
      %v2308 = vpop.f32.mrb[0].mxu0
      %2309 = vmatprep.mubr.bf16.mxu0 0
      %2310 = vmatmul.mubr.bf16.gmra.mrb[0].mxu0 %v2005
      %v2311 = vpop.f32.mrb[0].mxu0
      %v2312 = vadd.f32 %v2130, %v2311
      %v2313 = vpop.f32.mrb[0].mxu0
      %v2314 = vpop.f32.mrb[0].mxu0
      %v2315 = vadd.f32 %v2133, %v2314
      %v2316 = vpop.f32.mrb[0].mxu0
      %2317 = vmatprep.mubr.bf16.mxu0 0
      %2318 = vmatmul.mubr.bf16.gmra.mrb[0].mxu0 %v2008
      %v2319 = vpop.f32.mrb[0].mxu0
      %v2320 = vadd.f32 %v2138, %v2319
      %v2321 = vpop.f32.mrb[0].mxu0
      %v2322 = vpop.f32.mrb[0].mxu0
      %v2323 = vadd.f32 %v2141, %v2322
      %v2324 = vpop.f32.mrb[0].mxu0
      %2325 = vmatprep.mubr.bf16.mxu0 0
      %2326 = vmatmul.mubr.bf16.gmra.mrb[0].mxu0 %v2011
      %v2327 = vpop.f32.mrb[0].mxu0
      %v2328 = vadd.f32 %v2146, %v2327
      %v2329 = vpop.f32.mrb[0].mxu0
      %v2330 = vpop.f32.mrb[0].mxu0
      %v2331 = vadd.f32 %v2149, %v2330
      %v2332 = vpop.f32.mrb[0].mxu0
      %2333 = vmatprep.mubr.bf16.mxu0 0
      %2334 = vmatmul.mubr.bf16.gmra.mrb[0].mxu0 %v2014
      %v2335 = vpop.f32.mrb[0].mxu0
      %v2336 = vadd.f32 %v2154, %v2335
      %v2337 = vpop.f32.mrb[0].mxu0
      %v2338 = vpop.f32.mrb[0].mxu0
      %v2339 = vadd.f32 %v2157, %v2338
      %v2340 = vpop.f32.mrb[0].mxu0
      %2341 = vmatprep.mubr.bf16.mxu0 0
      %2342 = vmatmul.mubr.bf16.gmra.mrb[0].mxu0 %v2017
      %v2343 = vpop.f32.mrb[0].mxu0
      %v2344 = vadd.f32 %v2162, %v2343
      %v2345 = vpop.f32.mrb[0].mxu0
      %v2346 = vpop.f32.mrb[0].mxu0
      %v2347 = vadd.f32 %v2165, %v2346
      %v2348 = vpop.f32.mrb[0].mxu0
      %2349 = vmatprep.mubr.bf16.mxu0 0
      %2350 = vmatmul.mubr.bf16.gmra.mrb[0].mxu0 %v2020
      %v2351 = vpop.f32.mrb[0].mxu0
      %v2352 = vadd.f32 %v2170, %v2351
      %v2353 = vpop.f32.mrb[0].mxu0
      %v2354 = vpop.f32.mrb[0].mxu0
      %v2355 = vadd.f32 %v2173, %v2354
      %v2356 = vpop.f32.mrb[0].mxu0
      %2357 = vmatprep.mubr.bf16.mxu0 0
      %2358 = vmatmul.mubr.bf16.gmra.mrb[0].mxu0 %v2023
      %v2359 = vpop.f32.mrb[0].mxu0
      %v2360 = vadd.f32 %v2178, %v2359
      %v2361 = vpop.f32.mrb[0].mxu0
      %v2362 = vpop.f32.mrb[0].mxu0
      %v2363 = vadd.f32 %v2181, %v2362
      %v2364 = vpop.f32.mrb[0].mxu0
      %2365 = vmatprep.mubr.bf16.mxu0 0
      %2366 = vmatmul.mubr.bf16.gmra.mrb[0].mxu0 %v2026
      %v2367 = vpop.f32.mrb[0].mxu0
      %v2368 = vadd.f32 %v2186, %v2367
      %v2369 = vpop.f32.mrb[0].mxu0
      %v2370 = vpop.f32.mrb[0].mxu0
      %v2371 = vadd.f32 %v2189, %v2370
      %v2372 = vpop.f32.mrb[0].mxu0
      %2373 = vdwg.mxu0
      %v2374 = vld [vmem:[#allocation2 + $0x10] sm:$0xff]
      %v2375 = vld [vmem:[#allocation2 + $0x18] sm:$0xff]
      %v2376 = vld [vmem:[#allocation2 + $0x20] sm:$0xff]
      %v2377 = vld [vmem:[#allocation2 + $0x28] sm:$0xff]
      %v2378 = vld [vmem:[#allocation2 + $0x30] sm:$0xff]
      %v2379 = vld [vmem:[#allocation2 + $0x38] sm:$0xff]
      %v2380 = vld [vmem:[#allocation2 + $0x40] sm:$0xff]
      %v2381 = vld [vmem:[#allocation2 + $0x48] sm:$0xff]
      %v2382 = vld [vmem:[#allocation2 + $0x50] sm:$0xff]
      %v2383 = vld [vmem:[#allocation2 + $0x58] sm:$0xff]
      %v2384 = vld [vmem:[#allocation2 + $0x60] sm:$0xff]
      %v2385 = vld [vmem:[#allocation2 + $0x68] sm:$0xff]
      %v2386 = vld [vmem:[#allocation2 + $0x70] sm:$0xff]
      %v2387 = vld [vmem:[#allocation2 + $0x78] sm:$0xff]
      %v2388 = vld [vmem:[#allocation2 + $0x80] sm:$0xff]
      %v2389 = vld [vmem:[#allocation2 + $0x88] sm:$0xff]
      %s2390 = scalar_lea.vmem %s5, 48
      %v2391 = vld [vmem:[%s2390] sm:$0xf]
      %v2392 = vld [vmem:[%s2390 + $0x4] sm:$0xf]
      %v2393 = vld [vmem:[%s2390 + $0x8] sm:$0xf]
      %v2394 = vld [vmem:[%s2390 + $0xc] sm:$0xf]
      %v2395 = vld [vmem:[%s2390 + $0x10] sm:$0xf]
      %v2396 = vld [vmem:[%s2390 + $0x14] sm:$0xf]
      %v2403 = vunpack.c.l.b16 %v2391
      %v2404 = vunpack.c.l.b16 %v2392
      %v2405 = vunpack.c.l.b16 %v2393
      %v2406 = vunpack.c.l.b16 %v2394
      %v2407 = vunpack.c.l.b16 %v2395
      %v2408 = vunpack.c.l.b16 %v2396
      %v2409 = vpack.c.b16 %v2404, %v2403
      %v2410 = vpack.c.b16 %v2406, %v2405
      %v2411 = vpack.c.b16 %v2408, %v2407
      %v2416 = vsel %vm1900, %v2374, 0
      %v2419 = vsel %vm1900, %v2375, 0
      %v2422 = vsel %vm1900, %v2376, 0
      %v2425 = vsel %vm1900, %v2377, 0
      %v2428 = vsel %vm1900, %v2378, 0
      %v2431 = vsel %vm1900, %v2379, 0
      %v2434 = vsel %vm1900, %v2380, 0
      %v2437 = vsel %vm1900, %v2381, 0
      %v2440 = vsel %vm1900, %v2382, 0
      %v2443 = vsel %vm1900, %v2383, 0
      %v2446 = vsel %vm1900, %v2384, 0
      %v2449 = vsel %vm1900, %v2385, 0
      %v2452 = vsel %vm1900, %v2386, 0
      %v2455 = vsel %vm1900, %v2387, 0
      %v2458 = vsel %vm1900, %v2388, 0
      %v2461 = vsel %vm1900, %v2389, 0
      %2463 = vmatprep.subr.bf16.mxu0 0
      %2464 = vmatpush1.bf16.msra.mxu0 %v2409
      %2465 = vmatprep.subr.bf16.mxu0 0
      %2466 = vmatpush1.bf16.msra.mxu0 %v2410
      %2467 = vmatprep.subr.bf16.mxu0 0
      %2468 = vmatpush1.bf16.msra.mxu0 %v2411
      %2469 = vmatprep.subr.bf16.mxu0 0
      %2470 = vmatpush1.bf16.msra.mxu0 0
      %2471 = vmatprep.subr.bf16.mxu0 0
      %2472 = vmatpush1.bf16.msra.mxu0 0
      %2473 = vmatprep.subr.bf16.mxu0 0
      %2474 = vmatpush1.bf16.msra.mxu0 0
      %2475 = vmatprep.subr.bf16.mxu0 0
      %2476 = vmatpush1.bf16.msra.mxu0 0
      %2477 = vmatprep.subr.bf16.mxu0 0
      %2478 = vmatpush1.bf16.msra.mxu0 0
      %2479 = vmatprep.subr.bf16.mxu0 0
      %2480 = vmatpush1.bf16.msra.mxu0 0
      %2481 = vmatprep.subr.bf16.mxu0 0
      %2482 = vmatpush1.bf16.msra.mxu0 0
      %2483 = vmatprep.subr.bf16.mxu0 0
      %2484 = vmatpush1.bf16.msra.mxu0 0
      %2485 = vmatprep.subr.bf16.mxu0 0
      %2486 = vmatpush1.bf16.msra.mxu0 0
      %2487 = vmatprep.subr.bf16.mxu0 0
      %2488 = vmatpush1.bf16.msra.mxu0 0
      %2489 = vmatprep.subr.bf16.mxu0 0
      %2490 = vmatpush1.bf16.msra.mxu0 0
      %2491 = vmatprep.subr.bf16.mxu0 0
      %2492 = vmatpush1.bf16.msra.mxu0 0
      %2493 = vmatprep.subr.bf16.mxu0 0
      %2494 = vmatpush1.bf16.msra.mxu0 0
      %2495 = vmatprep.mubr.bf16.mxu0 0
      %2496 = vmatmul.mubr.bf16.gmra.mrb[0].mxu0 %v2416
      %v2497 = vpop.f32.mrb[0].mxu0
      %v2498 = vadd.f32 0.0, %v2497
      %v2499 = vpop.f32.mrb[0].mxu0
      %v2500 = vpop.f32.mrb[0].mxu0
      %v2501 = vadd.f32 0.0, %v2500
      %v2502 = vpop.f32.mrb[0].mxu0
      %2503 = vmatprep.mubr.bf16.mxu0 0
      %2504 = vmatmul.mubr.bf16.gmra.mrb[0].mxu0 %v2419
      %v2505 = vpop.f32.mrb[0].mxu0
      %v2506 = vadd.f32 0.0, %v2505
      %v2507 = vpop.f32.mrb[0].mxu0
      %v2508 = vpop.f32.mrb[0].mxu0
      %v2509 = vadd.f32 0.0, %v2508
      %v2510 = vpop.f32.mrb[0].mxu0
      %2511 = vmatprep.mubr.bf16.mxu0 0
      %2512 = vmatmul.mubr.bf16.gmra.mrb[0].mxu0 %v2422
      %v2513 = vpop.f32.mrb[0].mxu0
      %v2514 = vadd.f32 0.0, %v2513
      %v2515 = vpop.f32.mrb[0].mxu0
      %v2516 = vpop.f32.mrb[0].mxu0
      %v2517 = vadd.f32 0.0, %v2516
      %v2518 = vpop.f32.mrb[0].mxu0
      %2519 = vmatprep.mubr.bf16.mxu0 0
      %2520 = vmatmul.mubr.bf16.gmra.mrb[0].mxu0 %v2425
      %v2521 = vpop.f32.mrb[0].mxu0
      %v2522 = vadd.f32 0.0, %v2521
      %v2523 = vpop.f32.mrb[0].mxu0
      %v2524 = vpop.f32.mrb[0].mxu0
      %v2525 = vadd.f32 0.0, %v2524
      %v2526 = vpop.f32.mrb[0].mxu0
      %2527 = vmatprep.mubr.bf16.mxu0 0
      %2528 = vmatmul.mubr.bf16.gmra.mrb[0].mxu0 %v2428
      %v2529 = vpop.f32.mrb[0].mxu0
      %v2530 = vadd.f32 0.0, %v2529
      %v2531 = vpop.f32.mrb[0].mxu0
      %v2532 = vpop.f32.mrb[0].mxu0
      %v2533 = vadd.f32 0.0, %v2532
      %v2534 = vpop.f32.mrb[0].mxu0
      %2535 = vmatprep.mubr.bf16.mxu0 0
      %2536 = vmatmul.mubr.bf16.gmra.mrb[0].mxu0 %v2431
      %v2537 = vpop.f32.mrb[0].mxu0
      %v2538 = vadd.f32 0.0, %v2537
      %v2539 = vpop.f32.mrb[0].mxu0
      %v2540 = vpop.f32.mrb[0].mxu0
      %v2541 = vadd.f32 0.0, %v2540
      %v2542 = vpop.f32.mrb[0].mxu0
      %2543 = vmatprep.mubr.bf16.mxu0 0
      %2544 = vmatmul.mubr.bf16.gmra.mrb[0].mxu0 %v2434
      %v2545 = vpop.f32.mrb[0].mxu0
      %v2546 = vadd.f32 0.0, %v2545
      %v2547 = vpop.f32.mrb[0].mxu0
      %v2548 = vpop.f32.mrb[0].mxu0
      %v2549 = vadd.f32 0.0, %v2548
      %v2550 = vpop.f32.mrb[0].mxu0
      %2551 = vmatprep.mubr.bf16.mxu0 0
      %2552 = vmatmul.mubr.bf16.gmra.mrb[0].mxu0 %v2437
      %v2553 = vpop.f32.mrb[0].mxu0
      %v2554 = vadd.f32 0.0, %v2553
      %v2555 = vpop.f32.mrb[0].mxu0
      %v2556 = vpop.f32.mrb[0].mxu0
      %v2557 = vadd.f32 0.0, %v2556
      %v2558 = vpop.f32.mrb[0].mxu0
      %2559 = vmatprep.mubr.bf16.mxu0 0
      %2560 = vmatmul.mubr.bf16.gmra.mrb[0].mxu0 %v2440
      %v2561 = vpop.f32.mrb[0].mxu0
      %v2562 = vadd.f32 0.0, %v2561
      %v2563 = vpop.f32.mrb[0].mxu0
      %v2564 = vpop.f32.mrb[0].mxu0
      %v2565 = vadd.f32 0.0, %v2564
      %v2566 = vpop.f32.mrb[0].mxu0
      %2567 = vmatprep.mubr.bf16.mxu0 0
      %2568 = vmatmul.mubr.bf16.gmra.mrb[0].mxu0 %v2443
      %v2569 = vpop.f32.mrb[0].mxu0
      %v2570 = vadd.f32 0.0, %v2569
      %v2571 = vpop.f32.mrb[0].mxu0
      %v2572 = vpop.f32.mrb[0].mxu0
      %v2573 = vadd.f32 0.0, %v2572
      %v2574 = vpop.f32.mrb[0].mxu0
      %2575 = vmatprep.mubr.bf16.mxu0 0
      %2576 = vmatmul.mubr.bf16.gmra.mrb[0].mxu0 %v2446
      %v2577 = vpop.f32.mrb[0].mxu0
      %v2578 = vadd.f32 0.0, %v2577
      %v2579 = vpop.f32.mrb[0].mxu0
      %v2580 = vpop.f32.mrb[0].mxu0
      %v2581 = vadd.f32 0.0, %v2580
      %v2582 = vpop.f32.mrb[0].mxu0
      %2583 = vmatprep.mubr.bf16.mxu0 0
      %2584 = vmatmul.mubr.bf16.gmra.mrb[0].mxu0 %v2449
      %v2585 = vpop.f32.mrb[0].mxu0
      %v2586 = vadd.f32 0.0, %v2585
      %v2587 = vpop.f32.mrb[0].mxu0
      %v2588 = vpop.f32.mrb[0].mxu0
      %v2589 = vadd.f32 0.0, %v2588
      %v2590 = vpop.f32.mrb[0].mxu0
      %2591 = vmatprep.mubr.bf16.mxu0 0
      %2592 = vmatmul.mubr.bf16.gmra.mrb[0].mxu0 %v2452
      %v2593 = vpop.f32.mrb[0].mxu0
      %v2594 = vadd.f32 0.0, %v2593
      %v2595 = vpop.f32.mrb[0].mxu0
      %v2596 = vpop.f32.mrb[0].mxu0
      %v2597 = vadd.f32 0.0, %v2596
      %v2598 = vpop.f32.mrb[0].mxu0
      %2599 = vmatprep.mubr.bf16.mxu0 0
      %2600 = vmatmul.mubr.bf16.gmra.mrb[0].mxu0 %v2455
      %v2601 = vpop.f32.mrb[0].mxu0
      %v2602 = vadd.f32 0.0, %v2601
      %v2603 = vpop.f32.mrb[0].mxu0
      %v2604 = vpop.f32.mrb[0].mxu0
      %v2605 = vadd.f32 0.0, %v2604
      %v2606 = vpop.f32.mrb[0].mxu0
      %2607 = vmatprep.mubr.bf16.mxu0 0
      %2608 = vmatmul.mubr.bf16.gmra.mrb[0].mxu0 %v2458
      %v2609 = vpop.f32.mrb[0].mxu0
      %v2610 = vadd.f32 0.0, %v2609
      %v2611 = vpop.f32.mrb[0].mxu0
      %v2612 = vpop.f32.mrb[0].mxu0
      %v2613 = vadd.f32 0.0, %v2612
      %v2614 = vpop.f32.mrb[0].mxu0
      %2615 = vmatprep.mubr.bf16.mxu0 0
      %2616 = vmatmul.mubr.bf16.gmra.mrb[0].mxu0 %v2461
      %v2617 = vpop.f32.mrb[0].mxu0
      %v2618 = vadd.f32 0.0, %v2617
      %v2619 = vpop.f32.mrb[0].mxu0
      %v2620 = vpop.f32.mrb[0].mxu0
      %v2621 = vadd.f32 0.0, %v2620
      %v2622 = vpop.f32.mrb[0].mxu0
      %2623 = vdwg.mxu0
      %v2624 = vadd.f32 %v2248, %v2498
      %v2625 = vadd.f32 %v2251, %v2501
      %v2626 = vadd.f32 %v2256, %v2506
      %v2627 = vadd.f32 %v2259, %v2509
      %v2628 = vadd.f32 %v2264, %v2514
      %v2629 = vadd.f32 %v2267, %v2517
      %v2630 = vadd.f32 %v2272, %v2522
      %v2631 = vadd.f32 %v2275, %v2525
      %v2632 = vadd.f32 %v2280, %v2530
      %v2633 = vadd.f32 %v2283, %v2533
      %v2634 = vadd.f32 %v2288, %v2538
      %v2635 = vadd.f32 %v2291, %v2541
      %v2636 = vadd.f32 %v2296, %v2546
      %v2637 = vadd.f32 %v2299, %v2549
      %v2638 = vadd.f32 %v2304, %v2554
      %v2639 = vadd.f32 %v2307, %v2557
      %v2640 = vadd.f32 %v2312, %v2562
      %v2641 = vadd.f32 %v2315, %v2565
      %v2642 = vadd.f32 %v2320, %v2570
      %v2643 = vadd.f32 %v2323, %v2573
      %v2644 = vadd.f32 %v2328, %v2578
      %v2645 = vadd.f32 %v2331, %v2581
      %v2646 = vadd.f32 %v2336, %v2586
      %v2647 = vadd.f32 %v2339, %v2589
      %v2648 = vadd.f32 %v2344, %v2594
      %v2649 = vadd.f32 %v2347, %v2597
      %v2650 = vadd.f32 %v2352, %v2602
      %v2651 = vadd.f32 %v2355, %v2605
      %v2652 = vadd.f32 %v2360, %v2610
      %v2653 = vadd.f32 %v2363, %v2613
      %v2654 = vadd.f32 %v2368, %v2618
      %v2655 = vadd.f32 %v2371, %v2621
      %v2656 = vld [vmem:[%s6] sm:$0x1]
      %v2658 = vlaneseq
      %v2659 = vshrl.u32 %v2658, 7
      %v2660 = vsub.s32 0, %v2659
      %v2661 = vrot.slane %v2656, %v2660
      %v2663 = vadd.f32 %v2624, %v2661
      %v2664 = vadd.f32 %v2625, %v2661
      %v2665 = vadd.f32 %v2626, %v2661
      %v2666 = vadd.f32 %v2627, %v2661
      %v2667 = vadd.f32 %v2628, %v2661
      %v2668 = vadd.f32 %v2629, %v2661
      %v2669 = vadd.f32 %v2630, %v2661
      %v2670 = vadd.f32 %v2631, %v2661
      %v2671 = vadd.f32 %v2632, %v2661
      %v2672 = vadd.f32 %v2633, %v2661
      %v2673 = vadd.f32 %v2634, %v2661
      %v2674 = vadd.f32 %v2635, %v2661
      %v2675 = vadd.f32 %v2636, %v2661
      %v2676 = vadd.f32 %v2637, %v2661
      %v2677 = vadd.f32 %v2638, %v2661
      %v2678 = vadd.f32 %v2639, %v2661
      %v2679 = vadd.f32 %v2640, %v2661
      %v2680 = vadd.f32 %v2641, %v2661
      %v2681 = vadd.f32 %v2642, %v2661
      %v2682 = vadd.f32 %v2643, %v2661
      %v2683 = vadd.f32 %v2644, %v2661
      %v2684 = vadd.f32 %v2645, %v2661
      %v2685 = vadd.f32 %v2646, %v2661
      %v2686 = vadd.f32 %v2647, %v2661
      %v2687 = vadd.f32 %v2648, %v2661
      %v2688 = vadd.f32 %v2649, %v2661
      %v2689 = vadd.f32 %v2650, %v2661
      %v2690 = vadd.f32 %v2651, %v2661
      %v2691 = vadd.f32 %v2652, %v2661
      %v2692 = vadd.f32 %v2653, %v2661
      %v2693 = vadd.f32 %v2654, %v2661
      %v2694 = vadd.f32 %v2655, %v2661
      %v2695 = vxor.u32 %v2663, 2147483648
      %v2696 = vxor.u32 %v2664, 2147483648
      %v2697 = vxor.u32 %v2665, 2147483648
      %v2698 = vxor.u32 %v2666, 2147483648
      %v2699 = vxor.u32 %v2667, 2147483648
      %v2700 = vxor.u32 %v2668, 2147483648
      %v2701 = vxor.u32 %v2669, 2147483648
      %v2702 = vxor.u32 %v2670, 2147483648
      %v2703 = vxor.u32 %v2671, 2147483648
      %v2704 = vxor.u32 %v2672, 2147483648
      %v2705 = vxor.u32 %v2673, 2147483648
      %v2706 = vxor.u32 %v2674, 2147483648
      %v2707 = vxor.u32 %v2675, 2147483648
      %v2708 = vxor.u32 %v2676, 2147483648
      %v2709 = vxor.u32 %v2677, 2147483648
      %v2710 = vxor.u32 %v2678, 2147483648
      %v2711 = vxor.u32 %v2679, 2147483648
      %v2712 = vxor.u32 %v2680, 2147483648
      %v2713 = vxor.u32 %v2681, 2147483648
      %v2714 = vxor.u32 %v2682, 2147483648
      %v2715 = vxor.u32 %v2683, 2147483648
      %v2716 = vxor.u32 %v2684, 2147483648
      %v2717 = vxor.u32 %v2685, 2147483648
      %v2718 = vxor.u32 %v2686, 2147483648
      %v2719 = vxor.u32 %v2687, 2147483648
      %v2720 = vxor.u32 %v2688, 2147483648
      %v2721 = vxor.u32 %v2689, 2147483648
      %v2722 = vxor.u32 %v2690, 2147483648
      %v2723 = vxor.u32 %v2691, 2147483648
      %v2724 = vxor.u32 %v2692, 2147483648
      %v2725 = vxor.u32 %v2693, 2147483648
      %v2726 = vxor.u32 %v2694, 2147483648
      %v2727 = vmul.f32 %v2695, 1.442695
      %v2728 = vpow.pop %v2727
      %v2729 = vmul.f32 %v2696, 1.442695
      %v2730 = vpow.pop %v2729
      %v2731 = vmul.f32 %v2697, 1.442695
      %v2732 = vpow.pop %v2731
      %v2733 = vmul.f32 %v2698, 1.442695
      %v2734 = vpow.pop %v2733
      %v2735 = vmul.f32 %v2699, 1.442695
      %v2736 = vpow.pop %v2735
      %v2737 = vmul.f32 %v2700, 1.442695
      %v2738 = vpow.pop %v2737
      %v2739 = vmul.f32 %v2701, 1.442695
      %v2740 = vpow.pop %v2739
      %v2741 = vmul.f32 %v2702, 1.442695
      %v2742 = vpow.pop %v2741
      %v2743 = vmul.f32 %v2703, 1.442695
      %v2744 = vpow.pop %v2743
      %v2745 = vmul.f32 %v2704, 1.442695
      %v2746 = vpow.pop %v2745
      %v2747 = vmul.f32 %v2705, 1.442695
      %v2748 = vpow.pop %v2747
      %v2749 = vmul.f32 %v2706, 1.442695
      %v2750 = vpow.pop %v2749
      %v2751 = vmul.f32 %v2707, 1.442695
      %v2752 = vpow.pop %v2751
      %v2753 = vmul.f32 %v2708, 1.442695
      %v2754 = vpow.pop %v2753
      %v2755 = vmul.f32 %v2709, 1.442695
      %v2756 = vpow.pop %v2755
      %v2757 = vmul.f32 %v2710, 1.442695
      %v2758 = vpow.pop %v2757
      %v2759 = vmul.f32 %v2711, 1.442695
      %v2760 = vpow.pop %v2759
      %v2761 = vmul.f32 %v2712, 1.442695
      %v2762 = vpow.pop %v2761
      %v2763 = vmul.f32 %v2713, 1.442695
      %v2764 = vpow.pop %v2763
      %v2765 = vmul.f32 %v2714, 1.442695
      %v2766 = vpow.pop %v2765
      %v2767 = vmul.f32 %v2715, 1.442695
      %v2768 = vpow.pop %v2767
      %v2769 = vmul.f32 %v2716, 1.442695
      %v2770 = vpow.pop %v2769
      %v2771 = vmul.f32 %v2717, 1.442695
      %v2772 = vpow.pop %v2771
      %v2773 = vmul.f32 %v2718, 1.442695
      %v2774 = vpow.pop %v2773
      %v2775 = vmul.f32 %v2719, 1.442695
      %v2776 = vpow.pop %v2775
      %v2777 = vmul.f32 %v2720, 1.442695
      %v2778 = vpow.pop %v2777
      %v2779 = vmul.f32 %v2721, 1.442695
      %v2780 = vpow.pop %v2779
      %v2781 = vmul.f32 %v2722, 1.442695
      %v2782 = vpow.pop %v2781
      %v2783 = vmul.f32 %v2723, 1.442695
      %v2784 = vpow.pop %v2783
      %v2785 = vmul.f32 %v2724, 1.442695
      %v2786 = vpow.pop %v2785
      %v2787 = vmul.f32 %v2725, 1.442695
      %v2788 = vpow.pop %v2787
      %v2789 = vmul.f32 %v2726, 1.442695
      %v2790 = vpow.pop %v2789
      %v2791 = vadd.f32 %v2728, 1.0
      %v2792 = vadd.f32 %v2730, 1.0
      %v2793 = vadd.f32 %v2732, 1.0
      %v2794 = vadd.f32 %v2734, 1.0
      %v2795 = vadd.f32 %v2736, 1.0
      %v2796 = vadd.f32 %v2738, 1.0
      %v2797 = vadd.f32 %v2740, 1.0
      %v2798 = vadd.f32 %v2742, 1.0
      %v2799 = vadd.f32 %v2744, 1.0
      %v2800 = vadd.f32 %v2746, 1.0
      %v2801 = vadd.f32 %v2748, 1.0
      %v2802 = vadd.f32 %v2750, 1.0
      %v2803 = vadd.f32 %v2752, 1.0
      %v2804 = vadd.f32 %v2754, 1.0
      %v2805 = vadd.f32 %v2756, 1.0
      %v2806 = vadd.f32 %v2758, 1.0
      %v2807 = vadd.f32 %v2760, 1.0
      %v2808 = vadd.f32 %v2762, 1.0
      %v2809 = vadd.f32 %v2764, 1.0
      %v2810 = vadd.f32 %v2766, 1.0
      %v2811 = vadd.f32 %v2768, 1.0
      %v2812 = vadd.f32 %v2770, 1.0
      %v2813 = vadd.f32 %v2772, 1.0
      %v2814 = vadd.f32 %v2774, 1.0
      %v2815 = vadd.f32 %v2776, 1.0
      %v2816 = vadd.f32 %v2778, 1.0
      %v2817 = vadd.f32 %v2780, 1.0
      %v2818 = vadd.f32 %v2782, 1.0
      %v2819 = vadd.f32 %v2784, 1.0
      %v2820 = vadd.f32 %v2786, 1.0
      %v2821 = vadd.f32 %v2788, 1.0
      %v2822 = vadd.f32 %v2790, 1.0
      %v2823 = vrcp.pop %v2791
      %v2824 = vmul.f32 1.0, %v2823
      %v2825 = vrcp.pop %v2792
      %v2826 = vmul.f32 1.0, %v2825
      %v2827 = vrcp.pop %v2793
      %v2828 = vmul.f32 1.0, %v2827
      %v2829 = vrcp.pop %v2794
      %v2830 = vmul.f32 1.0, %v2829
      %v2831 = vrcp.pop %v2795
      %v2832 = vmul.f32 1.0, %v2831
      %v2833 = vrcp.pop %v2796
      %v2834 = vmul.f32 1.0, %v2833
      %v2835 = vrcp.pop %v2797
      %v2836 = vmul.f32 1.0, %v2835
      %v2837 = vrcp.pop %v2798
      %v2838 = vmul.f32 1.0, %v2837
      %v2839 = vrcp.pop %v2799
      %v2840 = vmul.f32 1.0, %v2839
      %v2841 = vrcp.pop %v2800
      %v2842 = vmul.f32 1.0, %v2841
      %v2843 = vrcp.pop %v2801
      %v2844 = vmul.f32 1.0, %v2843
      %v2845 = vrcp.pop %v2802
      %v2846 = vmul.f32 1.0, %v2845
      %v2847 = vrcp.pop %v2803
      %v2848 = vmul.f32 1.0, %v2847
      %v2849 = vrcp.pop %v2804
      %v2850 = vmul.f32 1.0, %v2849
      %v2851 = vrcp.pop %v2805
      %v2852 = vmul.f32 1.0, %v2851
      %v2853 = vrcp.pop %v2806
      %v2854 = vmul.f32 1.0, %v2853
      %v2855 = vrcp.pop %v2807
      %v2856 = vmul.f32 1.0, %v2855
      %v2857 = vrcp.pop %v2808
      %v2858 = vmul.f32 1.0, %v2857
      %v2859 = vrcp.pop %v2809
      %v2860 = vmul.f32 1.0, %v2859
      %v2861 = vrcp.pop %v2810
      %v2862 = vmul.f32 1.0, %v2861
      %v2863 = vrcp.pop %v2811
      %v2864 = vmul.f32 1.0, %v2863
      %v2865 = vrcp.pop %v2812
      %v2866 = vmul.f32 1.0, %v2865
      %v2867 = vrcp.pop %v2813
      %v2868 = vmul.f32 1.0, %v2867
      %v2869 = vrcp.pop %v2814
      %v2870 = vmul.f32 1.0, %v2869
      %v2871 = vrcp.pop %v2815
      %v2872 = vmul.f32 1.0, %v2871
      %v2873 = vrcp.pop %v2816
      %v2874 = vmul.f32 1.0, %v2873
      %v2875 = vrcp.pop %v2817
      %v2876 = vmul.f32 1.0, %v2875
      %v2877 = vrcp.pop %v2818
      %v2878 = vmul.f32 1.0, %v2877
      %v2879 = vrcp.pop %v2819
      %v2880 = vmul.f32 1.0, %v2879
      %v2881 = vrcp.pop %v2820
      %v2882 = vmul.f32 1.0, %v2881
      %v2883 = vrcp.pop %v2821
      %v2884 = vmul.f32 1.0, %v2883
      %v2885 = vrcp.pop %v2822
      %v2886 = vmul.f32 1.0, %v2885
      %v2887 = vtanh.pop %v2663
      %v2888 = vtanh.pop %v2664
      %v2889 = vtanh.pop %v2665
      %v2890 = vtanh.pop %v2666
      %v2891 = vtanh.pop %v2667
      %v2892 = vtanh.pop %v2668
      %v2893 = vtanh.pop %v2669
      %v2894 = vtanh.pop %v2670
      %v2895 = vtanh.pop %v2671
      %v2896 = vtanh.pop %v2672
      %v2897 = vtanh.pop %v2673
      %v2898 = vtanh.pop %v2674
      %v2899 = vtanh.pop %v2675
      %v2900 = vtanh.pop %v2676
      %v2901 = vtanh.pop %v2677
      %v2902 = vtanh.pop %v2678
      %v2903 = vtanh.pop %v2679
      %v2904 = vtanh.pop %v2680
      %v2905 = vtanh.pop %v2681
      %v2906 = vtanh.pop %v2682
      %v2907 = vtanh.pop %v2683
      %v2908 = vtanh.pop %v2684
      %v2909 = vtanh.pop %v2685
      %v2910 = vtanh.pop %v2686
      %v2911 = vtanh.pop %v2687
      %v2912 = vtanh.pop %v2688
      %v2913 = vtanh.pop %v2689
      %v2914 = vtanh.pop %v2690
      %v2915 = vtanh.pop %v2691
      %v2916 = vtanh.pop %v2692
      %v2917 = vtanh.pop %v2693
      %v2918 = vtanh.pop %v2694
      %2951 = vrot.lane.b32.xlu0 %v2887, 124
      %v2952 = vpop.permute.xlu0 %2951
      %2953 = vrot.lane.b32.xlu0 %v2888, 124
      %v2954 = vpop.permute.xlu0 %2953
      %2955 = vrot.lane.b32.xlu0 %v2889, 124
      %v2956 = vpop.permute.xlu0 %2955
      %2957 = vrot.lane.b32.xlu0 %v2890, 124
      %v2958 = vpop.permute.xlu0 %2957
      %2959 = vrot.lane.b32.xlu0 %v2891, 124
      %v2960 = vpop.permute.xlu0 %2959
      %2961 = vrot.lane.b32.xlu0 %v2892, 124
      %v2962 = vpop.permute.xlu0 %2961
      %2963 = vrot.lane.b32.xlu0 %v2893, 124
      %v2964 = vpop.permute.xlu0 %2963
      %2965 = vrot.lane.b32.xlu0 %v2894, 124
      %v2966 = vpop.permute.xlu0 %2965
      %2967 = vrot.lane.b32.xlu0 %v2895, 124
      %v2968 = vpop.permute.xlu0 %2967
      %2969 = vrot.lane.b32.xlu0 %v2896, 124
      %v2970 = vpop.permute.xlu0 %2969
      %2971 = vrot.lane.b32.xlu0 %v2897, 124
      %v2972 = vpop.permute.xlu0 %2971
      %2973 = vrot.lane.b32.xlu0 %v2898, 124
      %v2974 = vpop.permute.xlu0 %2973
      %2975 = vrot.lane.b32.xlu0 %v2899, 124
      %v2976 = vpop.permute.xlu0 %2975
      %2977 = vrot.lane.b32.xlu0 %v2900, 124
      %v2978 = vpop.permute.xlu0 %2977
      %2979 = vrot.lane.b32.xlu0 %v2901, 124
      %v2980 = vpop.permute.xlu0 %2979
      %2981 = vrot.lane.b32.xlu0 %v2902, 124
      %v2982 = vpop.permute.xlu0 %2981
      %2983 = vrot.lane.b32.xlu0 %v2903, 124
      %v2984 = vpop.permute.xlu0 %2983
      %2985 = vrot.lane.b32.xlu0 %v2904, 124
      %v2986 = vpop.permute.xlu0 %2985
      %2987 = vrot.lane.b32.xlu0 %v2905, 124
      %v2988 = vpop.permute.xlu0 %2987
      %2989 = vrot.lane.b32.xlu0 %v2906, 124
      %v2990 = vpop.permute.xlu0 %2989
      %2991 = vrot.lane.b32.xlu0 %v2907, 124
      %v2992 = vpop.permute.xlu0 %2991
      %2993 = vrot.lane.b32.xlu0 %v2908, 124
      %v2994 = vpop.permute.xlu0 %2993
      %2995 = vrot.lane.b32.xlu0 %v2909, 124
      %v2996 = vpop.permute.xlu0 %2995
      %2997 = vrot.lane.b32.xlu0 %v2910, 124
      %v2998 = vpop.permute.xlu0 %2997
      %2999 = vrot.lane.b32.xlu0 %v2911, 124
      %v3000 = vpop.permute.xlu0 %2999
      %3001 = vrot.lane.b32.xlu0 %v2912, 124
      %v3002 = vpop.permute.xlu0 %3001
      %3003 = vrot.lane.b32.xlu0 %v2913, 124
      %v3004 = vpop.permute.xlu0 %3003
      %3005 = vrot.lane.b32.xlu0 %v2914, 124
      %v3006 = vpop.permute.xlu0 %3005
      %3007 = vrot.lane.b32.xlu0 %v2915, 124
      %v3008 = vpop.permute.xlu0 %3007
      %3009 = vrot.lane.b32.xlu0 %v2916, 124
      %v3010 = vpop.permute.xlu0 %3009
      %3011 = vrot.lane.b32.xlu0 %v2917, 124
      %v3012 = vpop.permute.xlu0 %3011
      %3013 = vrot.lane.b32.xlu0 %v2918, 124
      %v3014 = vpop.permute.xlu0 %3013
      %v3047 = vmul.f32 %v2824, %v2952
      %v3048 = vmul.f32 %v2826, %v2954
      %v3049 = vmul.f32 %v2828, %v2956
      %v3050 = vmul.f32 %v2830, %v2958
      %v3051 = vmul.f32 %v2832, %v2960
      %v3052 = vmul.f32 %v2834, %v2962
      %v3053 = vmul.f32 %v2836, %v2964
      %v3054 = vmul.f32 %v2838, %v2966
      %v3055 = vmul.f32 %v2840, %v2968
      %v3056 = vmul.f32 %v2842, %v2970
      %v3057 = vmul.f32 %v2844, %v2972
      %v3058 = vmul.f32 %v2846, %v2974
      %v3059 = vmul.f32 %v2848, %v2976
      %v3060 = vmul.f32 %v2850, %v2978
      %v3061 = vmul.f32 %v2852, %v2980
      %v3062 = vmul.f32 %v2854, %v2982
      %v3063 = vmul.f32 %v2856, %v2984
      %v3064 = vmul.f32 %v2858, %v2986
      %v3065 = vmul.f32 %v2860, %v2988
      %v3066 = vmul.f32 %v2862, %v2990
      %v3067 = vmul.f32 %v2864, %v2992
      %v3068 = vmul.f32 %v2866, %v2994
      %v3069 = vmul.f32 %v2868, %v2996
      %v3070 = vmul.f32 %v2870, %v2998
      %v3071 = vmul.f32 %v2872, %v3000
      %v3072 = vmul.f32 %v2874, %v3002
      %v3073 = vmul.f32 %v2876, %v3004
      %v3074 = vmul.f32 %v2878, %v3006
      %v3075 = vmul.f32 %v2880, %v3008
      %v3076 = vmul.f32 %v2882, %v3010
      %v3077 = vmul.f32 %v2884, %v3012
      %v3078 = vmul.f32 %v2886, %v3014
      %v3079 = vsel %vm438, %v3047, 0.0
      %v3080 = vsel %vm438, %v3048, 0.0
      %v3081 = vadd.f32 %v3079, %v3080
      %v3082 = vsel %vm438, %v3049, 0.0
      %v3083 = vadd.f32 %v3081, %v3082
      %v3084 = vsel %vm438, %v3050, 0.0
      %v3085 = vadd.f32 %v3083, %v3084
      %v3086 = vsel %vm438, %v3051, 0.0
      %v3087 = vadd.f32 %v3085, %v3086
      %v3088 = vsel %vm438, %v3052, 0.0
      %v3089 = vadd.f32 %v3087, %v3088
      %v3090 = vsel %vm438, %v3053, 0.0
      %v3091 = vadd.f32 %v3089, %v3090
      %v3092 = vsel %vm438, %v3054, 0.0
      %v3093 = vadd.f32 %v3091, %v3092
      %v3094 = vsel %vm438, %v3055, 0.0
      %v3095 = vadd.f32 %v3093, %v3094
      %v3096 = vsel %vm438, %v3056, 0.0
      %v3097 = vadd.f32 %v3095, %v3096
      %v3098 = vsel %vm438, %v3057, 0.0
      %v3099 = vadd.f32 %v3097, %v3098
      %v3100 = vsel %vm438, %v3058, 0.0
      %v3101 = vadd.f32 %v3099, %v3100
      %v3102 = vsel %vm438, %v3059, 0.0
      %v3103 = vadd.f32 %v3101, %v3102
      %v3104 = vsel %vm438, %v3060, 0.0
      %v3105 = vadd.f32 %v3103, %v3104
      %v3106 = vsel %vm438, %v3061, 0.0
      %v3107 = vadd.f32 %v3105, %v3106
      %v3108 = vsel %vm438, %v3062, 0.0
      %v3109 = vadd.f32 %v3107, %v3108
      %v3110 = vsel %vm438, %v3063, 0.0
      %v3111 = vadd.f32 %v3109, %v3110
      %v3112 = vsel %vm438, %v3064, 0.0
      %v3113 = vadd.f32 %v3111, %v3112
      %v3114 = vsel %vm438, %v3065, 0.0
      %v3115 = vadd.f32 %v3113, %v3114
      %v3116 = vsel %vm438, %v3066, 0.0
      %v3117 = vadd.f32 %v3115, %v3116
      %v3118 = vsel %vm438, %v3067, 0.0
      %v3119 = vadd.f32 %v3117, %v3118
      %v3120 = vsel %vm438, %v3068, 0.0
      %v3121 = vadd.f32 %v3119, %v3120
      %v3122 = vsel %vm438, %v3069, 0.0
      %v3123 = vadd.f32 %v3121, %v3122
      %v3124 = vsel %vm438, %v3070, 0.0
      %v3125 = vadd.f32 %v3123, %v3124
      %v3126 = vsel %vm438, %v3071, 0.0
      %v3127 = vadd.f32 %v3125, %v3126
      %v3128 = vsel %vm438, %v3072, 0.0
      %v3129 = vadd.f32 %v3127, %v3128
      %v3130 = vsel %vm438, %v3073, 0.0
      %v3131 = vadd.f32 %v3129, %v3130
      %v3132 = vsel %vm438, %v3074, 0.0
      %v3133 = vadd.f32 %v3131, %v3132
      %v3134 = vsel %vm438, %v3075, 0.0
      %v3135 = vadd.f32 %v3133, %v3134
      %v3136 = vsel %vm438, %v3076, 0.0
      %v3137 = vadd.f32 %v3135, %v3136
      %v3138 = vsel %vm438, %v3077, 0.0
      %v3139 = vadd.f32 %v3137, %v3138
      %v3140 = vsel %vm438, %v3078, 0.0
      %v3141 = vadd.f32 %v3139, %v3140
      %v3142 = vrot.slane %v3141, 4
      %v3143 = vadd.f32 %v3141, %v3142
      %v3144 = vrot.slane %v3143, 2
      %v3145 = vadd.f32 %v3143, %v3144
      %v3146 = vrot.slane %v3145, 1
      %v3147 = vadd.f32 %v3145, %v3146
      %v3148 = vrcp.pop 256.0
      %v3149 = vmul.f32 %v3147, %v3148
      %v3150 = vmul.f32 %v3149, %v340
      %v3151 = vmul.f32 %v3149, %v341
      %v3152 = vmul.f32 %v3149, %v342
      %v3153 = vmul.f32 %v3149, %v343
      %v3154 = vmul.f32 %v3149, %v344
      %v3155 = vmul.f32 %v3149, %v345
      %v3156 = vmul.f32 %v3149, %v346
      %v3157 = vmul.f32 %v3149, %v347
      %v3158 = vmul.f32 %v3149, %v348
      %v3159 = vmul.f32 %v3149, %v349
      %v3160 = vmul.f32 %v3149, %v350
      %v3161 = vmul.f32 %v3149, %v351
      %v3162 = vmul.f32 %v3149, %v352
      %v3163 = vmul.f32 %v3149, %v353
      %v3164 = vmul.f32 %v3149, %v354
      %v3165 = vmul.f32 %v3149, %v355
      %v3166 = vmul.f32 %v3149, %v356
      %v3167 = vmul.f32 %v3149, %v357
      %v3168 = vmul.f32 %v3149, %v358
      %v3169 = vmul.f32 %v3149, %v359
      %v3170 = vmul.f32 %v3149, %v360
      %v3171 = vmul.f32 %v3149, %v361
      %v3172 = vmul.f32 %v3149, %v362
      %v3173 = vmul.f32 %v3149, %v363
      %v3174 = vmul.f32 %v3149, %v364
      %v3175 = vmul.f32 %v3149, %v365
      %v3176 = vmul.f32 %v3149, %v366
      %v3177 = vmul.f32 %v3149, %v367
      %v3178 = vmul.f32 %v3149, %v368
      %v3179 = vmul.f32 %v3149, %v369
      %v3180 = vmul.f32 %v3149, %v370
      %v3181 = vmul.f32 %v3149, %v371
      %3182 = vst.msk [vmem:[%s333] sm:$0xff] %vm438, %v3150
      %3183 = vst.msk [vmem:[%s333 + $0x8] sm:$0xff] %vm438, %v3151
      %3184 = vst.msk [vmem:[%s333 + $0x10] sm:$0xff] %vm438, %v3152
      %3185 = vst.msk [vmem:[%s333 + $0x18] sm:$0xff] %vm438, %v3153
      %3186 = vst.msk [vmem:[%s333 + $0x20] sm:$0xff] %vm438, %v3154
      %3187 = vst.msk [vmem:[%s333 + $0x28] sm:$0xff] %vm438, %v3155
      %3188 = vst.msk [vmem:[%s333 + $0x30] sm:$0xff] %vm438, %v3156
      %3189 = vst.msk [vmem:[%s333 + $0x38] sm:$0xff] %vm438, %v3157
      %3190 = vst.msk [vmem:[%s333 + $0x40] sm:$0xff] %vm438, %v3158
      %3191 = vst.msk [vmem:[%s333 + $0x48] sm:$0xff] %vm438, %v3159
      %3192 = vst.msk [vmem:[%s333 + $0x50] sm:$0xff] %vm438, %v3160
      %3193 = vst.msk [vmem:[%s333 + $0x58] sm:$0xff] %vm438, %v3161
      %3194 = vst.msk [vmem:[%s333 + $0x60] sm:$0xff] %vm438, %v3162
      %3195 = vst.msk [vmem:[%s333 + $0x68] sm:$0xff] %vm438, %v3163
      %3196 = vst.msk [vmem:[%s333 + $0x70] sm:$0xff] %vm438, %v3164
      %3197 = vst.msk [vmem:[%s333 + $0x78] sm:$0xff] %vm438, %v3165
      %3198 = vst.msk [vmem:[%s333 + $0x80] sm:$0xff] %vm438, %v3166
      %3199 = vst.msk [vmem:[%s333 + $0x88] sm:$0xff] %vm438, %v3167
      %3200 = vst.msk [vmem:[%s333 + $0x90] sm:$0xff] %vm438, %v3168
      %3201 = vst.msk [vmem:[%s333 + $0x98] sm:$0xff] %vm438, %v3169
      %3202 = vst.msk [vmem:[%s333 + $0xa0] sm:$0xff] %vm438, %v3170
      %3203 = vst.msk [vmem:[%s333 + $0xa8] sm:$0xff] %vm438, %v3171
      %3204 = vst.msk [vmem:[%s333 + $0xb0] sm:$0xff] %vm438, %v3172
      %3205 = vst.msk [vmem:[%s333 + $0xb8] sm:$0xff] %vm438, %v3173
      %3206 = vst.msk [vmem:[%s333 + $0xc0] sm:$0xff] %vm438, %v3174
      %3207 = vst.msk [vmem:[%s333 + $0xc8] sm:$0xff] %vm438, %v3175
      %3208 = vst.msk [vmem:[%s333 + $0xd0] sm:$0xff] %vm438, %v3176
      %3209 = vst.msk [vmem:[%s333 + $0xd8] sm:$0xff] %vm438, %v3177
      %3210 = vst.msk [vmem:[%s333 + $0xe0] sm:$0xff] %vm438, %v3178
      %3211 = vst.msk [vmem:[%s333 + $0xe8] sm:$0xff] %vm438, %v3179
      %3212 = vst.msk [vmem:[%s333 + $0xf0] sm:$0xff] %vm438, %v3180
      %3213 = vst.msk [vmem:[%s333 + $0xf8] sm:$0xff] %vm438, %v3181
      %v3214 = vsub.f32 1.0, %v3149
      %v3215 = vmul.f32 %v3214, %v372
      %v3216 = vmul.f32 %v3214, %v373
      %v3217 = vmul.f32 %v3214, %v374
      %v3218 = vmul.f32 %v3214, %v375
      %v3219 = vmul.f32 %v3214, %v376
      %v3220 = vmul.f32 %v3214, %v377
      %v3221 = vmul.f32 %v3214, %v378
      %v3222 = vmul.f32 %v3214, %v379
      %v3223 = vmul.f32 %v3214, %v380
      %v3224 = vmul.f32 %v3214, %v381
      %v3225 = vmul.f32 %v3214, %v382
      %v3226 = vmul.f32 %v3214, %v383
      %v3227 = vmul.f32 %v3214, %v384
      %v3228 = vmul.f32 %v3214, %v385
      %v3229 = vmul.f32 %v3214, %v386
      %v3230 = vmul.f32 %v3214, %v387
      %v3231 = vmul.f32 %v3214, %v388
      %v3232 = vmul.f32 %v3214, %v389
      %v3233 = vmul.f32 %v3214, %v390
      %v3234 = vmul.f32 %v3214, %v391
      %v3235 = vmul.f32 %v3214, %v392
      %v3236 = vmul.f32 %v3214, %v393
      %v3237 = vmul.f32 %v3214, %v394
      %v3238 = vmul.f32 %v3214, %v395
      %v3239 = vmul.f32 %v3214, %v396
      %v3240 = vmul.f32 %v3214, %v397
      %v3241 = vmul.f32 %v3214, %v398
      %v3242 = vmul.f32 %v3214, %v399
      %v3243 = vmul.f32 %v3214, %v400
      %v3244 = vmul.f32 %v3214, %v401
      %v3245 = vmul.f32 %v3214, %v402
      %v3246 = vmul.f32 %v3214, %v403
      %3247 = vst.msk [vmem:[%s338] sm:$0xff] %vm438, %v3215
      %3248 = vst.msk [vmem:[%s338 + $0x8] sm:$0xff] %vm438, %v3216
      %3249 = vst.msk [vmem:[%s338 + $0x10] sm:$0xff] %vm438, %v3217
      %3250 = vst.msk [vmem:[%s338 + $0x18] sm:$0xff] %vm438, %v3218
      %3251 = vst.msk [vmem:[%s338 + $0x20] sm:$0xff] %vm438, %v3219
      %3252 = vst.msk [vmem:[%s338 + $0x28] sm:$0xff] %vm438, %v3220
      %3253 = vst.msk [vmem:[%s338 + $0x30] sm:$0xff] %vm438, %v3221
      %3254 = vst.msk [vmem:[%s338 + $0x38] sm:$0xff] %vm438, %v3222
      %3255 = vst.msk [vmem:[%s338 + $0x40] sm:$0xff] %vm438, %v3223
      %3256 = vst.msk [vmem:[%s338 + $0x48] sm:$0xff] %vm438, %v3224
      %3257 = vst.msk [vmem:[%s338 + $0x50] sm:$0xff] %vm438, %v3225
      %3258 = vst.msk [vmem:[%s338 + $0x58] sm:$0xff] %vm438, %v3226
      %3259 = vst.msk [vmem:[%s338 + $0x60] sm:$0xff] %vm438, %v3227
      %3260 = vst.msk [vmem:[%s338 + $0x68] sm:$0xff] %vm438, %v3228
      %3261 = vst.msk [vmem:[%s338 + $0x70] sm:$0xff] %vm438, %v3229
      %3262 = vst.msk [vmem:[%s338 + $0x78] sm:$0xff] %vm438, %v3230
      %3263 = vst.msk [vmem:[%s338 + $0x80] sm:$0xff] %vm438, %v3231
      %3264 = vst.msk [vmem:[%s338 + $0x88] sm:$0xff] %vm438, %v3232
      %3265 = vst.msk [vmem:[%s338 + $0x90] sm:$0xff] %vm438, %v3233
      %3266 = vst.msk [vmem:[%s338 + $0x98] sm:$0xff] %vm438, %v3234
      %3267 = vst.msk [vmem:[%s338 + $0xa0] sm:$0xff] %vm438, %v3235
      %3268 = vst.msk [vmem:[%s338 + $0xa8] sm:$0xff] %vm438, %v3236
      %3269 = vst.msk [vmem:[%s338 + $0xb0] sm:$0xff] %vm438, %v3237
      %3270 = vst.msk [vmem:[%s338 + $0xb8] sm:$0xff] %vm438, %v3238
      %3271 = vst.msk [vmem:[%s338 + $0xc0] sm:$0xff] %vm438, %v3239
      %3272 = vst.msk [vmem:[%s338 + $0xc8] sm:$0xff] %vm438, %v3240
      %3273 = vst.msk [vmem:[%s338 + $0xd0] sm:$0xff] %vm438, %v3241
      %3274 = vst.msk [vmem:[%s338 + $0xd8] sm:$0xff] %vm438, %v3242
      %3275 = vst.msk [vmem:[%s338 + $0xe0] sm:$0xff] %vm438, %v3243
      %3276 = vst.msk [vmem:[%s338 + $0xe8] sm:$0xff] %vm438, %v3244
      %3277 = vst.msk [vmem:[%s338 + $0xf0] sm:$0xff] %vm438, %v3245
      %3278 = vst.msk [vmem:[%s338 + $0xf8] sm:$0xff] %vm438, %v3246
      %p3279 = scmp.lt.s32.totalorder %s20, 1
      %s3280 = scalar_select %p3279, %s20, 1
      %s3281 = smul.addr %s3280, 32
      %s3282 = smul.addr %s3281, 8
      %s3283 = scalar_lea.vmem %s7, %s3282
      %p3284 = scmp.lt.s32.totalorder %s20, 1
      %s3285 = scalar_select %p3284, %s20, 1
      %s3286 = smul.addr %s3285, 32
      %s3287 = smul.addr %s3286, 8
      %s3288 = scalar_lea.vmem %s8, %s3287
      // Predicated region
      $region49: #{react_forward.1} parent=47 // pred_check
        %p3289 = pneg %p195
      $region50: #{react_forward.1} parent=47 // pred_check_branch
        %3291 = sbr.rel (%p3289) target = $region52
      $region51: #{react_forward.1} parent=47 // pred_region
        _
      $region52: #{react_forward.1} parent=47 // pred_fallthru
        _
      // Predicated region
      $region53: #{react_forward.1} parent=47 // pred_check
        %p3292 = pneg %p221
      $region54: #{react_forward.1} parent=47 // pred_check_branch
        %3294 = sbr.rel (%p3292) target = $region56
      $region55: #{react_forward.1} parent=47 // pred_region
        _
      $region56: #{react_forward.1} parent=47 // pred_fallthru
        _
    $region48: #{react_forward.1} parent=5 // pred_fallthru
      _
    %p3295 = scmp.le.s32.totalorder 2, %s15
    // Predicated region
    $region57: #{react_forward.1} parent=5 // pred_check
      %p3296 = pneg %p3295
    $region58: #{react_forward.1} parent=5 // pred_check_branch
      %3298 = sbr.rel (%p3296) target = $region60
    $region59: #{react_forward.1} parent=5 // pred_region
      %s3299 = ssub.s32 %s15, 2
      // Predicated region
      $region61: #{react_forward.1} parent=59 // pred_check
        %p3300 = pneg %p201
      $region62: #{react_forward.1} parent=59 // pred_check_branch
        %3302 = sbr.rel (%p3300) target = $region64
      $region63: #{react_forward.1} parent=59 // pred_region
        %p3303 = scmp.lt.s32.totalorder %s21, 1
        %s3304 = scalar_select %p3303, %s21, 1
        %s3305 = smul.addr %s3304, 32
        %s3306 = smul.addr %s3305, 8
        %s3307 = scalar_lea.vmem %s7, %s3306
      $region64: #{react_forward.1} parent=59 // pred_fallthru
        _
      // Predicated region
      $region65: #{react_forward.1} parent=59 // pred_check
        %p3308 = pneg %p227
      $region66: #{react_forward.1} parent=59 // pred_check_branch
        %3310 = sbr.rel (%p3308) target = $region68
      $region67: #{react_forward.1} parent=59 // pred_region
        %p3311 = scmp.lt.s32.totalorder %s21, 1
        %s3312 = scalar_select %p3311, %s21, 1
        %s3313 = smul.addr %s3312, 32
        %s3314 = smul.addr %s3313, 8
        %s3315 = scalar_lea.vmem %s8, %s3314
      $region68: #{react_forward.1} parent=59 // pred_fallthru
        _
    $region60: #{react_forward.1} parent=5 // pred_fallthru
      _
  $region6: #{react_forward.1} parent=0 // loop_footer
    %s19 = sadd.s32 1, %s15
  $region7: #{react_forward.1} parent=0 // loop_footer_branch
    %14 = sbr.rel target = $region3
  $region8: #{react_forward.1} parent=0 // loop_exit
    _

</llo_original>
